<compile_context>
chip_gen: v5e
topology: v5e:2x2
jax: 0.10.0
libtpu: 0.0.40
codegen_flags: <defaults>
</compile_context>

<pallas_src>
import jax
import jax.numpy as jnp
from jax.experimental import pallas as pl
from jax.experimental.pallas import tpu as pltpu


def _make_resblock_kernel(bt, h, w, c):
    hp, wp = h + 2, w + 2
    m = bt * h * w
    kc = 9 * c

    def kernel(x_ref, w1_ref, w2_ref, o_ref, pad_ref, col_ref):
        # --- re-zero only the 1-pixel border; the interior is fully
        #     overwritten every step (needed because each TensorCore owns its
        #     own uninitialized scratch under the "parallel" batch axis). ---
        zrow = jnp.zeros((bt, 1, wp, c), jnp.float32)
        zcol = jnp.zeros((bt, hp, 1, c), jnp.float32)
        pad_ref[:, 0:1, :, :] = zrow
        pad_ref[:, hp - 1:hp, :, :] = zrow
        pad_ref[:, :, 0:1, :] = zcol
        pad_ref[:, :, wp - 1:wp, :] = zcol

        # --- stage input interior: one bulk store ---
        pad_ref[:, 1:1 + h, 1:1 + w, :] = x_ref[...]

        def conv3x3(w_ref):
            # Build the im2col operand ONCE per conv: the 9 shifted interior
            # views are placed side by side along channels, so K ordering is
            # (dy, dx, cin) and matches the (9C, C)-reshaped HWIO weight.
            for dy in range(3):
                for dx in range(3):
                    t = dy * 3 + dx
                    col_ref[:, :, :, t * c:(t + 1) * c] = \
                        pad_ref[:, dy:dy + h, dx:dx + w, :]
            patch = col_ref[...].reshape(m, kc)          # leading-dim merge only
            # Single fused MXU matmul per conv: (M, 9C) x (9C, C) -> (M, C)
            return jnp.dot(patch, w_ref[...],
                           preferred_element_type=jnp.float32)

        h1 = jnp.maximum(conv3x3(w1_ref), 0.0)           # conv1 + ReLU, (m, c)
        # hand-off: reuse the same padded scratch for conv2's input
        pad_ref[:, 1:1 + h, 1:1 + w, :] = h1.reshape(bt, h, w, c)

        y = conv3x3(w2_ref) + x_ref[...].reshape(m, c)   # conv2 + residual
        o_ref[...] = jnp.maximum(y, 0.0).reshape(bt, h, w, c)   # final ReLU

    return kernel


def _pick_block_batch(n, max_bt=8):
    # Prefer >= 4 grid steps (keeps both v7x TensorCores and the BlockSpec
    # pipeline busy), then >= 2, taking the largest batch tile that fits.
    for min_steps in (4, 2, 1):
        cands = [bt for bt in range(1, min(n, max_bt) + 1)
                 if n % bt == 0 and n // bt >= min_steps]
        if cands:
            return max(cands)
    return 1


def resblock_forward(x_nchw, w1_oihw, w2_oihw, *, block_batch=None):
    """ResBlock forward.  x: (N, C, H, W) f32; weights OIHW (C, C, 3, 3)."""
    n, c, h, w = x_nchw.shape
    bt = _pick_block_batch(n) if block_batch is None else block_batch
    assert n % bt == 0
    hp, wp = h + 2, w + 2

    # Glue (plain JAX, outside the kernel): NCHW -> NHWC activations,
    # OIHW -> HWIO weights folded to the fused (9*Cin, Cout) contraction form.
    x_nhwc = jnp.transpose(x_nchw, (0, 2, 3, 1)).astype(jnp.float32)
    w1 = jnp.transpose(w1_oihw, (2, 3, 1, 0)).astype(jnp.float32).reshape(9 * c, c)
    w2 = jnp.transpose(w2_oihw, (2, 3, 1, 0)).astype(jnp.float32).reshape(9 * c, c)

    kernel = _make_resblock_kernel(bt, h, w, c)

    out_nhwc = pl.pallas_call(
        kernel,
        out_shape=jax.ShapeDtypeStruct((n, h, w, c), jnp.float32),
        grid_spec=pltpu.PrefetchScalarGridSpec(
            num_scalar_prefetch=0,
            grid=(n // bt,),
            in_specs=[
                pl.BlockSpec((bt, h, w, c), lambda b: (b, 0, 0, 0)),
                pl.BlockSpec((9 * c, c), lambda b: (0, 0)),
                pl.BlockSpec((9 * c, c), lambda b: (0, 0)),
            ],
            out_specs=pl.BlockSpec((bt, h, w, c), lambda b: (b, 0, 0, 0)),
            scratch_shapes=[
                pltpu.VMEM((bt, hp, wp, c), jnp.float32),     # padded activations
                pltpu.VMEM((bt, h, w, 9 * c), jnp.float32),   # im2col operand
            ],
        ),
        compiler_params=pltpu.CompilerParams(
            dimension_semantics=("parallel",),
            vmem_limit_bytes=32 * 1024 * 1024),
    )(x_nhwc, w1, w2)

    return jnp.transpose(out_nhwc, (0, 3, 1, 2))            # back to NCHW


def ref_forward(x, w1, w2):
    """Pure-JAX reference matching PyTorch Conv2d(pad=1, bias=False) semantics."""
    dn = ('NCHW', 'OIHW', 'NCHW')
    a = jax.lax.conv_general_dilated(x, w1, (1, 1), 'SAME', dimension_numbers=dn,
                                     precision=jax.lax.Precision.HIGHEST)
    a = jnp.maximum(a, 0.0)
    a = jax.lax.conv_general_dilated(a, w2, (1, 1), 'SAME', dimension_numbers=dn,
                                     precision=jax.lax.Precision.HIGHEST)
    return jnp.maximum(a + x, 0.0)


if __name__ == "__main__":
    key = jax.random.PRNGKey(0)
    kx, k1, k2 = jax.random.split(key, 3)

    N, C, H, W = 2, 32, 16, 16                     # small shapes; n_channels=32
    x = jax.random.normal(kx, (N, C, H, W), jnp.float32)
    w1 = jax.random.normal(k1, (C, C, 3, 3), jnp.float32) * 0.1   # OIHW, no bias
    w2 = jax.random.normal(k2, (C, C, 3, 3), jnp.float32) * 0.1

    out = jax.block_until_ready(resblock_forward(x, w1, w2))
    assert out.shape == (N, C, H, W)

    ref = ref_forward(x, w1, w2)
    if not jnp.allclose(out, ref, rtol=1e-3, atol=1e-3):
        raise AssertionError(
            f"mismatch vs reference, max abs err = {jnp.max(jnp.abs(out - ref))}")
    print("KERNEL_OK")
</pallas_src>

<mosaic_0001>
module attributes {stable_mosaic.version = 11 : i64} {
  func.func @kernel(%arg0: i32, %arg1: memref<1x16x16x32xf32, #tpu.memory_space<vmem>>, %arg2: memref<288x32xf32, #tpu.memory_space<vmem>>, %arg3: memref<288x32xf32, #tpu.memory_space<vmem>>, %arg4: memref<1x16x16x32xf32, #tpu.memory_space<vmem>>, %arg5: memref<1x18x18x32xf32, #tpu.memory_space<vmem>>, %arg6: memref<1x16x16x288xf32, #tpu.memory_space<vmem>>) attributes {dimension_semantics = [#tpu.dimension_semantics<parallel>], iteration_bounds = array<i64: 2>, scalar_prefetch = 0 : i64, scratch_operands = 2 : i64, tpu.core_type = #tpu.core_type<tc>, window_params = [{transform_indices = @transform_0, window_bounds = array<i64: 1, 16, 16, 32>}, {pipeline_mode = #tpu.pipeline_mode<synchronous>, transform_indices = @transform_1, window_bounds = array<i64: 288, 32>}, {pipeline_mode = #tpu.pipeline_mode<synchronous>, transform_indices = @transform_2, window_bounds = array<i64: 288, 32>}, {transform_indices = @transform_3, window_bounds = array<i64: 1, 16, 16, 32>}]} {
    %cst = arith.constant 0.000000e+00 : f32
    %0 = vector.broadcast %cst : f32 to vector<1x1x18x32xf32>
    %cst_0 = arith.constant 0.000000e+00 : f32
    %1 = vector.broadcast %cst_0 : f32 to vector<1x18x1x32xf32>
    %c0 = arith.constant 0 : index
    %c0_1 = arith.constant 0 : index
    %c0_2 = arith.constant 0 : index
    %c0_3 = arith.constant 0 : index
    %2 = vector.load %arg5[%c0, %c0_1, %c0_2, %c0_3] : memref<1x18x18x32xf32, #tpu.memory_space<vmem>>, vector<1x1x18x32xf32>
    tpu.vector_store %arg5[%c0, %c0_1, %c0_2, %c0_3], %0 {strides = array<i32>} : memref<1x18x18x32xf32, #tpu.memory_space<vmem>>, vector<1x1x18x32xf32>,
    %c0_4 = arith.constant 0 : index
    %c17 = arith.constant 17 : index
    %c0_5 = arith.constant 0 : index
    %c0_6 = arith.constant 0 : index
    %3 = vector.load %arg5[%c0_4, %c17, %c0_5, %c0_6] : memref<1x18x18x32xf32, #tpu.memory_space<vmem>>, vector<1x1x18x32xf32>
    tpu.vector_store %arg5[%c0_4, %c17, %c0_5, %c0_6], %0 {strides = array<i32>} : memref<1x18x18x32xf32, #tpu.memory_space<vmem>>, vector<1x1x18x32xf32>,
    %c0_7 = arith.constant 0 : index
    %c0_8 = arith.constant 0 : index
    %c0_9 = arith.constant 0 : index
    %c0_10 = arith.constant 0 : index
    %4 = vector.load %arg5[%c0_7, %c0_8, %c0_9, %c0_10] : memref<1x18x18x32xf32, #tpu.memory_space<vmem>>, vector<1x18x1x32xf32>
    tpu.vector_store %arg5[%c0_7, %c0_8, %c0_9, %c0_10], %1 {strides = array<i32>} : memref<1x18x18x32xf32, #tpu.memory_space<vmem>>, vector<1x18x1x32xf32>,
    %c0_11 = arith.constant 0 : index
    %c0_12 = arith.constant 0 : index
    %c17_13 = arith.constant 17 : index
    %c0_14 = arith.constant 0 : index
    %5 = vector.load %arg5[%c0_11, %c0_12, %c17_13, %c0_14] : memref<1x18x18x32xf32, #tpu.memory_space<vmem>>, vector<1x18x1x32xf32>
    tpu.vector_store %arg5[%c0_11, %c0_12, %c17_13, %c0_14], %1 {strides = array<i32>} : memref<1x18x18x32xf32, #tpu.memory_space<vmem>>, vector<1x18x1x32xf32>,
    %c0_15 = arith.constant 0 : index
    %c0_16 = arith.constant 0 : index
    %c0_17 = arith.constant 0 : index
    %c0_18 = arith.constant 0 : index
    %6 = vector.load %arg1[%c0_15, %c0_16, %c0_17, %c0_18] : memref<1x16x16x32xf32, #tpu.memory_space<vmem>>, vector<1x16x16x32xf32>
    %c0_19 = arith.constant 0 : index
    %c1 = arith.constant 1 : index
    %c1_20 = arith.constant 1 : index
    %c0_21 = arith.constant 0 : index
    %7 = vector.load %arg5[%c0_19, %c1, %c1_20, %c0_21] : memref<1x18x18x32xf32, #tpu.memory_space<vmem>>, vector<1x16x16x32xf32>
    tpu.vector_store %arg5[%c0_19, %c1, %c1_20, %c0_21], %6 {strides = array<i32>} : memref<1x18x18x32xf32, #tpu.memory_space<vmem>>, vector<1x16x16x32xf32>,
    %c0_22 = arith.constant 0 : index
    %c0_23 = arith.constant 0 : index
    %c0_24 = arith.constant 0 : index
    %c0_25 = arith.constant 0 : index
    %8 = vector.load %arg5[%c0_22, %c0_23, %c0_24, %c0_25] : memref<1x18x18x32xf32, #tpu.memory_space<vmem>>, vector<1x16x16x32xf32>
    %c0_26 = arith.constant 0 : index
    %c0_27 = arith.constant 0 : index
    %c0_28 = arith.constant 0 : index
    %c0_29 = arith.constant 0 : index
    %9 = vector.load %arg6[%c0_26, %c0_27, %c0_28, %c0_29] : memref<1x16x16x288xf32, #tpu.memory_space<vmem>>, vector<1x16x16x32xf32>
    tpu.vector_store %arg6[%c0_26, %c0_27, %c0_28, %c0_29], %8 {strides = array<i32>} : memref<1x16x16x288xf32, #tpu.memory_space<vmem>>, vector<1x16x16x32xf32>,
    %c0_30 = arith.constant 0 : index
    %c0_31 = arith.constant 0 : index
    %c1_32 = arith.constant 1 : index
    %c0_33 = arith.constant 0 : index
    %10 = vector.load %arg5[%c0_30, %c0_31, %c1_32, %c0_33] : memref<1x18x18x32xf32, #tpu.memory_space<vmem>>, vector<1x16x16x32xf32>
    %c0_34 = arith.constant 0 : index
    %c0_35 = arith.constant 0 : index
    %c0_36 = arith.constant 0 : index
    %c32 = arith.constant 32 : index
    %11 = vector.load %arg6[%c0_34, %c0_35, %c0_36, %c32] : memref<1x16x16x288xf32, #tpu.memory_space<vmem>>, vector<1x16x16x32xf32>
    tpu.vector_store %arg6[%c0_34, %c0_35, %c0_36, %c32], %10 {strides = array<i32>} : memref<1x16x16x288xf32, #tpu.memory_space<vmem>>, vector<1x16x16x32xf32>,
    %c0_37 = arith.constant 0 : index
    %c0_38 = arith.constant 0 : index
    %c2 = arith.constant 2 : index
    %c0_39 = arith.constant 0 : index
    %12 = vector.load %arg5[%c0_37, %c0_38, %c2, %c0_39] : memref<1x18x18x32xf32, #tpu.memory_space<vmem>>, vector<1x16x16x32xf32>
    %c0_40 = arith.constant 0 : index
    %c0_41 = arith.constant 0 : index
    %c0_42 = arith.constant 0 : index
    %c64 = arith.constant 64 : index
    %13 = vector.load %arg6[%c0_40, %c0_41, %c0_42, %c64] : memref<1x16x16x288xf32, #tpu.memory_space<vmem>>, vector<1x16x16x32xf32>
    tpu.vector_store %arg6[%c0_40, %c0_41, %c0_42, %c64], %12 {strides = array<i32>} : memref<1x16x16x288xf32, #tpu.memory_space<vmem>>, vector<1x16x16x32xf32>,
    %c0_43 = arith.constant 0 : index
    %c1_44 = arith.constant 1 : index
    %c0_45 = arith.constant 0 : index
    %c0_46 = arith.constant 0 : index
    %14 = vector.load %arg5[%c0_43, %c1_44, %c0_45, %c0_46] : memref<1x18x18x32xf32, #tpu.memory_space<vmem>>, vector<1x16x16x32xf32>
    %c0_47 = arith.constant 0 : index
    %c0_48 = arith.constant 0 : index
    %c0_49 = arith.constant 0 : index
    %c96 = arith.constant 96 : index
    %15 = vector.load %arg6[%c0_47, %c0_48, %c0_49, %c96] : memref<1x16x16x288xf32, #tpu.memory_space<vmem>>, vector<1x16x16x32xf32>
    tpu.vector_store %arg6[%c0_47, %c0_48, %c0_49, %c96], %14 {strides = array<i32>} : memref<1x16x16x288xf32, #tpu.memory_space<vmem>>, vector<1x16x16x32xf32>,
    %c0_50 = arith.constant 0 : index
    %c1_51 = arith.constant 1 : index
    %c1_52 = arith.constant 1 : index
    %c0_53 = arith.constant 0 : index
    %16 = vector.load %arg5[%c0_50, %c1_51, %c1_52, %c0_53] : memref<1x18x18x32xf32, #tpu.memory_space<vmem>>, vector<1x16x16x32xf32>
    %c0_54 = arith.constant 0 : index
    %c0_55 = arith.constant 0 : index
    %c0_56 = arith.constant 0 : index
    %c128 = arith.constant 128 : index
    %17 = vector.load %arg6[%c0_54, %c0_55, %c0_56, %c128] : memref<1x16x16x288xf32, #tpu.memory_space<vmem>>, vector<1x16x16x32xf32>
    tpu.vector_store %arg6[%c0_54, %c0_55, %c0_56, %c128], %16 {strides = array<i32>} : memref<1x16x16x288xf32, #tpu.memory_space<vmem>>, vector<1x16x16x32xf32>,
    %c0_57 = arith.constant 0 : index
    %c1_58 = arith.constant 1 : index
    %c2_59 = arith.constant 2 : index
    %c0_60 = arith.constant 0 : index
    %18 = vector.load %arg5[%c0_57, %c1_58, %c2_59, %c0_60] : memref<1x18x18x32xf32, #tpu.memory_space<vmem>>, vector<1x16x16x32xf32>
    %c0_61 = arith.constant 0 : index
    %c0_62 = arith.constant 0 : index
    %c0_63 = arith.constant 0 : index
    %c160 = arith.constant 160 : index
    %19 = vector.load %arg6[%c0_61, %c0_62, %c0_63, %c160] : memref<1x16x16x288xf32, #tpu.memory_space<vmem>>, vector<1x16x16x32xf32>
    tpu.vector_store %arg6[%c0_61, %c0_62, %c0_63, %c160], %18 {strides = array<i32>} : memref<1x16x16x288xf32, #tpu.memory_space<vmem>>, vector<1x16x16x32xf32>,
    %c0_64 = arith.constant 0 : index
    %c2_65 = arith.constant 2 : index
    %c0_66 = arith.constant 0 : index
    %c0_67 = arith.constant 0 : index
    %20 = vector.load %arg5[%c0_64, %c2_65, %c0_66, %c0_67] : memref<1x18x18x32xf32, #tpu.memory_space<vmem>>, vector<1x16x16x32xf32>
    %c0_68 = arith.constant 0 : index
    %c0_69 = arith.constant 0 : index
    %c0_70 = arith.constant 0 : index
    %c192 = arith.constant 192 : index
    %21 = vector.load %arg6[%c0_68, %c0_69, %c0_70, %c192] : memref<1x16x16x288xf32, #tpu.memory_space<vmem>>, vector<1x16x16x32xf32>
    tpu.vector_store %arg6[%c0_68, %c0_69, %c0_70, %c192], %20 {strides = array<i32>} : memref<1x16x16x288xf32, #tpu.memory_space<vmem>>, vector<1x16x16x32xf32>,
    %c0_71 = arith.constant 0 : index
    %c2_72 = arith.constant 2 : index
    %c1_73 = arith.constant 1 : index
    %c0_74 = arith.constant 0 : index
    %22 = vector.load %arg5[%c0_71, %c2_72, %c1_73, %c0_74] : memref<1x18x18x32xf32, #tpu.memory_space<vmem>>, vector<1x16x16x32xf32>
    %c0_75 = arith.constant 0 : index
    %c0_76 = arith.constant 0 : index
    %c0_77 = arith.constant 0 : index
    %c224 = arith.constant 224 : index
    %23 = vector.load %arg6[%c0_75, %c0_76, %c0_77, %c224] : memref<1x16x16x288xf32, #tpu.memory_space<vmem>>, vector<1x16x16x32xf32>
    tpu.vector_store %arg6[%c0_75, %c0_76, %c0_77, %c224], %22 {strides = array<i32>} : memref<1x16x16x288xf32, #tpu.memory_space<vmem>>, vector<1x16x16x32xf32>,
    %c0_78 = arith.constant 0 : index
    %c2_79 = arith.constant 2 : index
    %c2_80 = arith.constant 2 : index
    %c0_81 = arith.constant 0 : index
    %24 = vector.load %arg5[%c0_78, %c2_79, %c2_80, %c0_81] : memref<1x18x18x32xf32, #tpu.memory_space<vmem>>, vector<1x16x16x32xf32>
    %c0_82 = arith.constant 0 : index
    %c0_83 = arith.constant 0 : index
    %c0_84 = arith.constant 0 : index
    %c256 = arith.constant 256 : index
    %25 = vector.load %arg6[%c0_82, %c0_83, %c0_84, %c256] : memref<1x16x16x288xf32, #tpu.memory_space<vmem>>, vector<1x16x16x32xf32>
    tpu.vector_store %arg6[%c0_82, %c0_83, %c0_84, %c256], %24 {strides = array<i32>} : memref<1x16x16x288xf32, #tpu.memory_space<vmem>>, vector<1x16x16x32xf32>,
    %c0_85 = arith.constant 0 : index
    %c0_86 = arith.constant 0 : index
    %c0_87 = arith.constant 0 : index
    %c0_88 = arith.constant 0 : index
    %26 = vector.load %arg6[%c0_85, %c0_86, %c0_87, %c0_88] : memref<1x16x16x288xf32, #tpu.memory_space<vmem>>, vector<1x16x16x288xf32>
    %27 = vector.shape_cast %26 : vector<1x16x16x288xf32> to vector<256x288xf32>
    %c0_89 = arith.constant 0 : index
    %c0_90 = arith.constant 0 : index
    %28 = vector.load %arg2[%c0_89, %c0_90] : memref<288x32xf32, #tpu.memory_space<vmem>>, vector<288x32xf32>
    %cst_91 = arith.constant dense<0.000000e+00> : vector<256x32xf32>
    %29 = tpu.matmul %27, %28, %cst_91 {dimension_numbers = #tpu.dot_dimension_numbers<[1], [0], [0], [1], [0, 0, 1, 1], [], []>} : vector<256x288xf32>, vector<288x32xf32>, vector<256x32xf32> -> vector<256x32xf32>
    %cst_92 = arith.constant 0.000000e+00 : f32
    %30 = vector.broadcast %cst_92 : f32 to vector<256x32xf32>
    %31 = arith.maximumf %29, %30 : vector<256x32xf32>
    %32 = vector.shape_cast %31 : vector<256x32xf32> to vector<1x16x16x32xf32>
    %c0_93 = arith.constant 0 : index
    %c1_94 = arith.constant 1 : index
    %c1_95 = arith.constant 1 : index
    %c0_96 = arith.constant 0 : index
    %33 = vector.load %arg5[%c0_93, %c1_94, %c1_95, %c0_96] : memref<1x18x18x32xf32, #tpu.memory_space<vmem>>, vector<1x16x16x32xf32>
    tpu.vector_store %arg5[%c0_93, %c1_94, %c1_95, %c0_96], %32 {strides = array<i32>} : memref<1x18x18x32xf32, #tpu.memory_space<vmem>>, vector<1x16x16x32xf32>,
    %c0_97 = arith.constant 0 : index
    %c0_98 = arith.constant 0 : index
    %c0_99 = arith.constant 0 : index
    %c0_100 = arith.constant 0 : index
    %34 = vector.load %arg5[%c0_97, %c0_98, %c0_99, %c0_100] : memref<1x18x18x32xf32, #tpu.memory_space<vmem>>, vector<1x16x16x32xf32>
    %c0_101 = arith.constant 0 : index
    %c0_102 = arith.constant 0 : index
    %c0_103 = arith.constant 0 : index
    %c0_104 = arith.constant 0 : index
    %35 = vector.load %arg6[%c0_101, %c0_102, %c0_103, %c0_104] : memref<1x16x16x288xf32, #tpu.memory_space<vmem>>, vector<1x16x16x32xf32>
    tpu.vector_store %arg6[%c0_101, %c0_102, %c0_103, %c0_104], %34 {strides = array<i32>} : memref<1x16x16x288xf32, #tpu.memory_space<vmem>>, vector<1x16x16x32xf32>,
    %c0_105 = arith.constant 0 : index
    %c0_106 = arith.constant 0 : index
    %c1_107 = arith.constant 1 : index
    %c0_108 = arith.constant 0 : index
    %36 = vector.load %arg5[%c0_105, %c0_106, %c1_107, %c0_108] : memref<1x18x18x32xf32, #tpu.memory_space<vmem>>, vector<1x16x16x32xf32>
    %c0_109 = arith.constant 0 : index
    %c0_110 = arith.constant 0 : index
    %c0_111 = arith.constant 0 : index
    %c32_112 = arith.constant 32 : index
    %37 = vector.load %arg6[%c0_109, %c0_110, %c0_111, %c32_112] : memref<1x16x16x288xf32, #tpu.memory_space<vmem>>, vector<1x16x16x32xf32>
    tpu.vector_store %arg6[%c0_109, %c0_110, %c0_111, %c32_112], %36 {strides = array<i32>} : memref<1x16x16x288xf32, #tpu.memory_space<vmem>>, vector<1x16x16x32xf32>,
    %c0_113 = arith.constant 0 : index
    %c0_114 = arith.constant 0 : index
    %c2_115 = arith.constant 2 : index
    %c0_116 = arith.constant 0 : index
    %38 = vector.load %arg5[%c0_113, %c0_114, %c2_115, %c0_116] : memref<1x18x18x32xf32, #tpu.memory_space<vmem>>, vector<1x16x16x32xf32>
    %c0_117 = arith.constant 0 : index
    %c0_118 = arith.constant 0 : index
    %c0_119 = arith.constant 0 : index
    %c64_120 = arith.constant 64 : index
    %39 = vector.load %arg6[%c0_117, %c0_118, %c0_119, %c64_120] : memref<1x16x16x288xf32, #tpu.memory_space<vmem>>, vector<1x16x16x32xf32>
    tpu.vector_store %arg6[%c0_117, %c0_118, %c0_119, %c64_120], %38 {strides = array<i32>} : memref<1x16x16x288xf32, #tpu.memory_space<vmem>>, vector<1x16x16x32xf32>,
    %c0_121 = arith.constant 0 : index
    %c1_122 = arith.constant 1 : index
    %c0_123 = arith.constant 0 : index
    %c0_124 = arith.constant 0 : index
    %40 = vector.load %arg5[%c0_121, %c1_122, %c0_123, %c0_124] : memref<1x18x18x32xf32, #tpu.memory_space<vmem>>, vector<1x16x16x32xf32>
    %c0_125 = arith.constant 0 : index
    %c0_126 = arith.constant 0 : index
    %c0_127 = arith.constant 0 : index
    %c96_128 = arith.constant 96 : index
    %41 = vector.load %arg6[%c0_125, %c0_126, %c0_127, %c96_128] : memref<1x16x16x288xf32, #tpu.memory_space<vmem>>, vector<1x16x16x32xf32>
    tpu.vector_store %arg6[%c0_125, %c0_126, %c0_127, %c96_128], %40 {strides = array<i32>} : memref<1x16x16x288xf32, #tpu.memory_space<vmem>>, vector<1x16x16x32xf32>,
    %c0_129 = arith.constant 0 : index
    %c1_130 = arith.constant 1 : index
    %c1_131 = arith.constant 1 : index
    %c0_132 = arith.constant 0 : index
    %42 = vector.load %arg5[%c0_129, %c1_130, %c1_131, %c0_132] : memref<1x18x18x32xf32, #tpu.memory_space<vmem>>, vector<1x16x16x32xf32>
    %c0_133 = arith.constant 0 : index
    %c0_134 = arith.constant 0 : index
    %c0_135 = arith.constant 0 : index
    %c128_136 = arith.constant 128 : index
    %43 = vector.load %arg6[%c0_133, %c0_134, %c0_135, %c128_136] : memref<1x16x16x288xf32, #tpu.memory_space<vmem>>, vector<1x16x16x32xf32>
    tpu.vector_store %arg6[%c0_133, %c0_134, %c0_135, %c128_136], %42 {strides = array<i32>} : memref<1x16x16x288xf32, #tpu.memory_space<vmem>>, vector<1x16x16x32xf32>,
    %c0_137 = arith.constant 0 : index
    %c1_138 = arith.constant 1 : index
    %c2_139 = arith.constant 2 : index
    %c0_140 = arith.constant 0 : index
    %44 = vector.load %arg5[%c0_137, %c1_138, %c2_139, %c0_140] : memref<1x18x18x32xf32, #tpu.memory_space<vmem>>, vector<1x16x16x32xf32>
    %c0_141 = arith.constant 0 : index
    %c0_142 = arith.constant 0 : index
    %c0_143 = arith.constant 0 : index
    %c160_144 = arith.constant 160 : index
    %45 = vector.load %arg6[%c0_141, %c0_142, %c0_143, %c160_144] : memref<1x16x16x288xf32, #tpu.memory_space<vmem>>, vector<1x16x16x32xf32>
    tpu.vector_store %arg6[%c0_141, %c0_142, %c0_143, %c160_144], %44 {strides = array<i32>} : memref<1x16x16x288xf32, #tpu.memory_space<vmem>>, vector<1x16x16x32xf32>,
    %c0_145 = arith.constant 0 : index
    %c2_146 = arith.constant 2 : index
    %c0_147 = arith.constant 0 : index
    %c0_148 = arith.constant 0 : index
    %46 = vector.load %arg5[%c0_145, %c2_146, %c0_147, %c0_148] : memref<1x18x18x32xf32, #tpu.memory_space<vmem>>, vector<1x16x16x32xf32>
    %c0_149 = arith.constant 0 : index
    %c0_150 = arith.constant 0 : index
    %c0_151 = arith.constant 0 : index
    %c192_152 = arith.constant 192 : index
    %47 = vector.load %arg6[%c0_149, %c0_150, %c0_151, %c192_152] : memref<1x16x16x288xf32, #tpu.memory_space<vmem>>, vector<1x16x16x32xf32>
    tpu.vector_store %arg6[%c0_149, %c0_150, %c0_151, %c192_152], %46 {strides = array<i32>} : memref<1x16x16x288xf32, #tpu.memory_space<vmem>>, vector<1x16x16x32xf32>,
    %c0_153 = arith.constant 0 : index
    %c2_154 = arith.constant 2 : index
    %c1_155 = arith.constant 1 : index
    %c0_156 = arith.constant 0 : index
    %48 = vector.load %arg5[%c0_153, %c2_154, %c1_155, %c0_156] : memref<1x18x18x32xf32, #tpu.memory_space<vmem>>, vector<1x16x16x32xf32>
    %c0_157 = arith.constant 0 : index
    %c0_158 = arith.constant 0 : index
    %c0_159 = arith.constant 0 : index
    %c224_160 = arith.constant 224 : index
    %49 = vector.load %arg6[%c0_157, %c0_158, %c0_159, %c224_160] : memref<1x16x16x288xf32, #tpu.memory_space<vmem>>, vector<1x16x16x32xf32>
    tpu.vector_store %arg6[%c0_157, %c0_158, %c0_159, %c224_160], %48 {strides = array<i32>} : memref<1x16x16x288xf32, #tpu.memory_space<vmem>>, vector<1x16x16x32xf32>,
    %c0_161 = arith.constant 0 : index
    %c2_162 = arith.constant 2 : index
    %c2_163 = arith.constant 2 : index
    %c0_164 = arith.constant 0 : index
    %50 = vector.load %arg5[%c0_161, %c2_162, %c2_163, %c0_164] : memref<1x18x18x32xf32, #tpu.memory_space<vmem>>, vector<1x16x16x32xf32>
    %c0_165 = arith.constant 0 : index
    %c0_166 = arith.constant 0 : index
    %c0_167 = arith.constant 0 : index
    %c256_168 = arith.constant 256 : index
    %51 = vector.load %arg6[%c0_165, %c0_166, %c0_167, %c256_168] : memref<1x16x16x288xf32, #tpu.memory_space<vmem>>, vector<1x16x16x32xf32>
    tpu.vector_store %arg6[%c0_165, %c0_166, %c0_167, %c256_168], %50 {strides = array<i32>} : memref<1x16x16x288xf32, #tpu.memory_space<vmem>>, vector<1x16x16x32xf32>,
    %c0_169 = arith.constant 0 : index
    %c0_170 = arith.constant 0 : index
    %c0_171 = arith.constant 0 : index
    %c0_172 = arith.constant 0 : index
    %52 = vector.load %arg6[%c0_169, %c0_170, %c0_171, %c0_172] : memref<1x16x16x288xf32, #tpu.memory_space<vmem>>, vector<1x16x16x288xf32>
    %53 = vector.shape_cast %52 : vector<1x16x16x288xf32> to vector<256x288xf32>
    %c0_173 = arith.constant 0 : index
    %c0_174 = arith.constant 0 : index
    %54 = vector.load %arg3[%c0_173, %c0_174] : memref<288x32xf32, #tpu.memory_space<vmem>>, vector<288x32xf32>
    %cst_175 = arith.constant dense<0.000000e+00> : vector<256x32xf32>
    %55 = tpu.matmul %53, %54, %cst_175 {dimension_numbers = #tpu.dot_dimension_numbers<[1], [0], [0], [1], [0, 0, 1, 1], [], []>} : vector<256x288xf32>, vector<288x32xf32>, vector<256x32xf32> -> vector<256x32xf32>
    %c0_176 = arith.constant 0 : index
    %c0_177 = arith.constant 0 : index
    %c0_178 = arith.constant 0 : index
    %c0_179 = arith.constant 0 : index
    %56 = vector.load %arg1[%c0_176, %c0_177, %c0_178, %c0_179] : memref<1x16x16x32xf32, #tpu.memory_space<vmem>>, vector<1x16x16x32xf32>
    %57 = vector.shape_cast %56 : vector<1x16x16x32xf32> to vector<256x32xf32>
    %58 = arith.addf %55, %57 : vector<256x32xf32>
    %cst_180 = arith.constant 0.000000e+00 : f32
    %59 = vector.broadcast %cst_180 : f32 to vector<256x32xf32>
    %60 = arith.maximumf %58, %59 : vector<256x32xf32>
    %61 = vector.shape_cast %60 : vector<256x32xf32> to vector<1x16x16x32xf32>
    %c0_181 = arith.constant 0 : index
    %c0_182 = arith.constant 0 : index
    %c0_183 = arith.constant 0 : index
    %c0_184 = arith.constant 0 : index
    %62 = vector.load %arg4[%c0_181, %c0_182, %c0_183, %c0_184] : memref<1x16x16x32xf32, #tpu.memory_space<vmem>>, vector<1x16x16x32xf32>
    tpu.vector_store %arg4[%c0_181, %c0_182, %c0_183, %c0_184], %61 {strides = array<i32>} : memref<1x16x16x32xf32, #tpu.memory_space<vmem>>, vector<1x16x16x32xf32>,
    return
  }
  func.func @transform_0(%arg0: i32) -> (i32, i32, i32, i32) {
    %c0_i32 = arith.constant 0 : i32
    %c0_i32_0 = arith.constant 0 : i32
    %c0_i32_1 = arith.constant 0 : i32
    %c0_i32_2 = arith.constant 0 : i32
    return %arg0, %c0_i32, %c0_i32_0, %c0_i32_1 : i32, i32, i32, i32
  }
  func.func @transform_1(%arg0: i32) -> (i32, i32) {
    %c0_i32 = arith.constant 0 : i32
    %c0_i32_0 = arith.constant 0 : i32
    %c0_i32_1 = arith.constant 0 : i32
    return %c0_i32, %c0_i32_0 : i32, i32
  }
  func.func @transform_2(%arg0: i32) -> (i32, i32) {
    %c0_i32 = arith.constant 0 : i32
    %c0_i32_0 = arith.constant 0 : i32
    %c0_i32_1 = arith.constant 0 : i32
    return %c0_i32, %c0_i32_0 : i32, i32
  }
  func.func @transform_3(%arg0: i32) -> (i32, i32, i32, i32) {
    %c0_i32 = arith.constant 0 : i32
    %c0_i32_0 = arith.constant 0 : i32
    %c0_i32_1 = arith.constant 0 : i32
    %c0_i32_2 = arith.constant 0 : i32
    return %arg0, %c0_i32, %c0_i32_0, %c0_i32_1 : i32, i32, i32, i32
  }
}

</mosaic_0001>

<llo_original>
// kernel: tpu_custom_call.1
$region0: #{tpu_custom_call.1}
  #allocation0 [shape = 'u32[]', space=smem, size = 0x4, offset = 0x4, fixed_abs, tag = 'smem constant byte address 0x4 - core index']
  #allocation1 [shape = 'u32[72,128]{1,0:T(1,128)}', space=vmem, size = 0x9000, scoped, tag = 'internal scratch']
  #allocation2 [shape = 'f32[1,18,18,32]{3,2,1,0:T(8,128)}', space=vmem, size = 0x36000, scoped, tag = 'scratch operand']
  #allocation3 [shape = 'f32[1,16,16,288]{3,2,1,0:T(8,128)}', space=vmem, size = 0x60000, scoped, tag = 'scratch operand']
  %s0 = inlined_call_operand.vmem [shape: f32[2,16,16,32], index: 0, kind: input, shape index: {}]
  %s1 = inlined_call_operand.vmem [shape: f32[288,32], index: 1, kind: input, shape index: {}]
  %s2 = inlined_call_operand.vmem [shape: f32[288,32], index: 2, kind: input, shape index: {}]
  %s3 = inlined_call_operand.hbm [shape: f32[2,16,16,32], index: 3, kind: output, shape index: {}]
  %s4 = sld [smem:[#allocation0]]
  $region45: #{tpu_custom_call.1} parent=0
    _
  %s6 = ssub.s32 1, %s4
  %s7 = scalar_select 0, %s6, %s4
  $region1: #{tpu_custom_call.1} parent=0
    #allocation4 [shape = 'u8[262144]{0}', space=vmem, size = 0x40000, scoped, tag = 'output window, operand 0']
    #allocation5 [shape = 's32[2]{0}', space=sflag, size = 0x8, scoped, tag = 'scoped memory for tpu_custom_call.1']
    %8 = vsyncpa [#allocation5], 0
    %s9 = scalar_lea.sflag [#allocation5], 1
    %10 = vsyncpa %s9, 0
    loop: start=0, step=1, limit=4
    $region2: #{tpu_custom_call.1} parent=1 // loop_pre_header
      _
    $region3: #{tpu_custom_call.1} parent=1 // loop_header
      %s12 = sphi 0, %s16
      %p13 = scmp.ge.s32.totalorder %s12, 4
      %s22 = sphi 0, %s24
      %s25 = sphi 0, %s22
      %s26 = sphi 0, %s25
      %s42 = sphi 0, %s26
      %s46 = sphi 0, %s46
      %s48 = sphi 0, %s46
      %s49 = sphi 0, %s48
      %s63 = sphi 0, %s49
      %s67 = sphi 0, %s67
      %s69 = sphi 0, %s67
      %s70 = sphi 0, %s69
      %s84 = sphi 0, %s70
      %s90 = sphi 0, %s92
      %s93 = sphi 0, %s90
      %s94 = sphi 0, %s93
      %s110 = sphi 0, %s94
    $region4: #{tpu_custom_call.1} parent=1 // loop_header_branch
      %15 = sbr.rel (%p13) target = $region8
    $region5: #{tpu_custom_call.1} parent=1 // loop_body
      %s17 = ssub.s32 %s12, 1
      %s18 = ssub.s32 %s12, 2
      %s19 = sadd.s32 %s12, 1
      %s20 = ssub.s32 %s12, %s19
      %p21 = scmp.eq.s32.totalorder %s20, 0
      %s23 = sadd.s32 %s22, 1
      %s24 = scalar_select %p21, %s22, %s23
      %p27 = pneg %p21
      %p28 = scmp.eq.s32.totalorder %s12, 1
      %p29 = por %p27, %p28
      %p30 = scmp.ne.s32.totalorder %s22, %s25
      %p31 = scmp.eq.s32.totalorder %s12, 0
      %p32 = por %p30, %p31
      %p33 = scmp.ne.s32.totalorder %s22, %s25
      %p34 = scmp.eq.s32.totalorder %s17, 1
      %p35 = por %p33, %p34
      %p36 = scmp.ne.s32.totalorder %s25, %s26
      %p37 = scmp.eq.s32.totalorder %s17, 0
      %p38 = por %p36, %p37
      %p39 = scmp.ne.s32.totalorder %s25, %s26
      %p40 = scmp.eq.s32.totalorder %s18, 1
      %p41 = por %p39, %p40
      %p43 = scmp.ne.s32.totalorder %s26, %s42
      %p44 = scmp.eq.s32.totalorder %s18, 0
      %p45 = por %p43, %p44
      %s47 = sadd.s32 %s46, 1
      %p50 = scmp.eq.s32.totalorder %s12, 1
      %p51 = scmp.ne.s32.totalorder %s46, %s48
      %p52 = scmp.eq.s32.totalorder %s12, 0
      %p53 = por %p51, %p52
      %p54 = scmp.ne.s32.totalorder %s46, %s48
      %p55 = scmp.eq.s32.totalorder %s17, 1
      %p56 = por %p54, %p55
      %p57 = scmp.ne.s32.totalorder %s48, %s49
      %p58 = scmp.eq.s32.totalorder %s17, 0
      %p59 = por %p57, %p58
      %p60 = scmp.ne.s32.totalorder %s48, %s49
      %p61 = scmp.eq.s32.totalorder %s18, 1
      %p62 = por %p60, %p61
      %p64 = scmp.ne.s32.totalorder %s49, %s63
      %p65 = scmp.eq.s32.totalorder %s18, 0
      %p66 = por %p64, %p65
      %s68 = sadd.s32 %s67, 1
      %p71 = scmp.eq.s32.totalorder %s12, 1
      %p72 = scmp.ne.s32.totalorder %s67, %s69
      %p73 = scmp.eq.s32.totalorder %s12, 0
      %p74 = por %p72, %p73
      %p75 = scmp.ne.s32.totalorder %s67, %s69
      %p76 = scmp.eq.s32.totalorder %s17, 1
      %p77 = por %p75, %p76
      %p78 = scmp.ne.s32.totalorder %s69, %s70
      %p79 = scmp.eq.s32.totalorder %s17, 0
      %p80 = por %p78, %p79
      %p81 = scmp.ne.s32.totalorder %s69, %s70
      %p82 = scmp.eq.s32.totalorder %s18, 1
      %p83 = por %p81, %p82
      %p85 = scmp.ne.s32.totalorder %s70, %s84
      %p86 = scmp.eq.s32.totalorder %s18, 0
      %p87 = por %p85, %p86
      %s88 = ssub.s32 %s12, %s19
      %p89 = scmp.eq.s32.totalorder %s88, 0
      %s91 = sadd.s32 %s90, 1
      %s92 = scalar_select %p89, %s90, %s91
      %p95 = pneg %p89
      %p96 = scmp.eq.s32.totalorder %s12, 1
      %p97 = por %p95, %p96
      %p98 = scmp.ne.s32.totalorder %s90, %s93
      %p99 = scmp.eq.s32.totalorder %s12, 0
      %p100 = por %p98, %p99
      %p101 = scmp.ne.s32.totalorder %s90, %s93
      %p102 = scmp.eq.s32.totalorder %s17, 1
      %p103 = por %p101, %p102
      %p104 = scmp.ne.s32.totalorder %s93, %s94
      %p105 = scmp.eq.s32.totalorder %s17, 0
      %p106 = por %p104, %p105
      %p107 = scmp.ne.s32.totalorder %s93, %s94
      %p108 = scmp.eq.s32.totalorder %s18, 1
      %p109 = por %p107, %p108
      %p111 = scmp.ne.s32.totalorder %s94, %s110
      %p112 = scmp.eq.s32.totalorder %s18, 0
      %p113 = por %p111, %p112
      %p114 = scmp.le.s32.totalorder 1, %s12
      %p115 = scmp.lt.s32.totalorder %s12, 3
      %p116 = pnand %p114, %p115
      %p117 = pneg %p116
      // Predicated region
      $region9: #{tpu_custom_call.1} parent=5 // pred_check
        _
      $region10: #{tpu_custom_call.1} parent=5 // pred_check_branch
        %119 = sbr.rel (%p116) target = $region12
      $region11: #{tpu_custom_call.1} parent=5 // pred_region
        %s120 = ssub.s32 %s12, 1
        // Predicated region
        $region13: #{tpu_custom_call.1} parent=11 // pred_check
          %p121 = pneg %p59
        $region14: #{tpu_custom_call.1} parent=11 // pred_check_branch
          %123 = sbr.rel (%p121) target = $region16
        $region15: #{tpu_custom_call.1} parent=11 // pred_region
          _
        $region16: #{tpu_custom_call.1} parent=11 // pred_fallthru
          _
        // Predicated region
        $region17: #{tpu_custom_call.1} parent=11 // pred_check
          %p124 = pneg %p80
        $region18: #{tpu_custom_call.1} parent=11 // pred_check_branch
          %126 = sbr.rel (%p124) target = $region20
        $region19: #{tpu_custom_call.1} parent=11 // pred_region
          _
        $region20: #{tpu_custom_call.1} parent=11 // pred_fallthru
          _
      $region12: #{tpu_custom_call.1} parent=5 // pred_fallthru
        _
      %p127 = scmp.lt.s32.totalorder %s12, 2
      // Predicated region
      $region21: #{tpu_custom_call.1} parent=5 // pred_check
        %p128 = pneg %p127
      $region22: #{tpu_custom_call.1} parent=5 // pred_check_branch
        %130 = sbr.rel (%p128) target = $region24
      $region23: #{tpu_custom_call.1} parent=5 // pred_region
        // Predicated region
        $region25: #{tpu_custom_call.1} parent=23 // pred_check
          %p131 = pneg %p32
        $region26: #{tpu_custom_call.1} parent=23 // pred_check_branch
          %133 = sbr.rel (%p131) target = $region28
        $region27: #{tpu_custom_call.1} parent=23 // pred_region
          %p134 = scmp.lt.s32.totalorder %s12, 1
          %s135 = scalar_select %p134, %s12, 1
          %s136 = smul.addr %s135, 32
          %s137 = smul.addr %s136, 8
          %s138 = scalar_lea.vmem %s0, %s137
        $region28: #{tpu_custom_call.1} parent=23 // pred_fallthru
          _
      $region24: #{tpu_custom_call.1} parent=5 // pred_fallthru
        _
      %p139 = scmp.le.s32.totalorder 1, %s12
      %p140 = scmp.lt.s32.totalorder %s12, 3
      %p141 = pnand %p139, %p140
      %p142 = pneg %p141
      // Predicated region
      $region29: #{tpu_custom_call.1} parent=5 // pred_check
        _
      $region30: #{tpu_custom_call.1} parent=5 // pred_check_branch
        %144 = sbr.rel (%p141) target = $region32
      $region31: #{tpu_custom_call.1} parent=5 // pred_region
        %s145 = ssub.s32 %s12, 1
        %p146 = scmp.lt.s32.totalorder %s17, 1
        %s147 = scalar_select %p146, %s17, 1
        %s148 = smul.addr %s147, 32
        %s149 = smul.addr %s148, 8
        %s150 = scalar_lea.vmem %s0, %s149
        %p151 = pneg %p38
        %p152 = pneg %p35
        %p153 = pneg %p59
        %p154 = pneg %p56
        %p155 = pneg %p80
        %p156 = pneg %p77
        %p157 = pneg %p106
        %p158 = pneg %p103
        %s159 = sand.u32 %s93, 1
        %s160 = scalar_lea.sflag [#allocation5], %s159
        %s161 = sand.u32 %s93, 1
        %s162 = smul.addr %s161, 256
        %s163 = scalar_lea.vmem [#allocation4], %s162
        %p164 = scmp.lt.s32.totalorder %s17, 1
        %s165 = scalar_select %p164, %s17, 1
        %s166 = smul.addr %s165, 32
        %s167 = smul.addr %s166, 8
        %s168 = scalar_lea.vmem %s0, %s167
        %vm169 = vcmask 261120
        %170 = vst.msk [vmem:[#allocation2] sm:$0xff] %vm169, 0.0
        %171 = vst.msk [vmem:[#allocation2 + $0x8] sm:$0xff] %vm169, 0.0
        %vm172 = vcmask 254976
        %173 = vst.msk [vmem:[#allocation2 + $0x10] sm:$0x3] %vm172, 0.0
        %s174 = scalar_lea.vmem [#allocation2], 408
        %175 = vst.msk [vmem:[%s174] sm:$0xff] %vm169, 0.0
        %176 = vst.msk [vmem:[%s174 + $0x8] sm:$0xff] %vm169, 0.0
        %177 = vst.msk [vmem:[%s174 + $0x10] sm:$0x3] %vm172, 0.0
        %vm178 = vcmask 253952
        %179 = vst.msk [vmem:[#allocation2] sm:$0x1] %vm178, 0.0
        %180 = vst.msk [vmem:[#allocation2 + $0x18] sm:$0x1] %vm178, 0.0
        %181 = vst.msk [vmem:[#allocation2 + $0x30] sm:$0x1] %vm178, 0.0
        %182 = vst.msk [vmem:[#allocation2 + $0x48] sm:$0x1] %vm178, 0.0
        %183 = vst.msk [vmem:[#allocation2 + $0x60] sm:$0x1] %vm178, 0.0
        %184 = vst.msk [vmem:[#allocation2 + $0x78] sm:$0x1] %vm178, 0.0
        %185 = vst.msk [vmem:[#allocation2 + $0x90] sm:$0x1] %vm178, 0.0
        %186 = vst.msk [vmem:[#allocation2 + $0xa8] sm:$0x1] %vm178, 0.0
        %187 = vst.msk [vmem:[#allocation2 + $0xc0] sm:$0x1] %vm178, 0.0
        %188 = vst.msk [vmem:[#allocation2 + $0xd8] sm:$0x1] %vm178, 0.0
        %189 = vst.msk [vmem:[#allocation2 + $0xf0] sm:$0x1] %vm178, 0.0
        %190 = vst.msk [vmem:[#allocation2 + $0x108] sm:$0x1] %vm178, 0.0
        %191 = vst.msk [vmem:[#allocation2 + $0x120] sm:$0x1] %vm178, 0.0
        %192 = vst.msk [vmem:[#allocation2 + $0x138] sm:$0x1] %vm178, 0.0
        %193 = vst.msk [vmem:[#allocation2 + $0x150] sm:$0x1] %vm178, 0.0
        %194 = vst.msk [vmem:[#allocation2 + $0x168] sm:$0x1] %vm178, 0.0
        %195 = vst.msk [vmem:[#allocation2 + $0x180] sm:$0x1] %vm178, 0.0
        %196 = vst.msk [vmem:[#allocation2 + $0x198] sm:$0x1] %vm178, 0.0
        %197 = vst.msk [vmem:[#allocation2 + $0x11] sm:$0x1] %vm178, 0.0
        %198 = vst.msk [vmem:[#allocation2 + $0x29] sm:$0x1] %vm178, 0.0
        %199 = vst.msk [vmem:[#allocation2 + $0x41] sm:$0x1] %vm178, 0.0
        %200 = vst.msk [vmem:[#allocation2 + $0x59] sm:$0x1] %vm178, 0.0
        %201 = vst.msk [vmem:[#allocation2 + $0x71] sm:$0x1] %vm178, 0.0
        %202 = vst.msk [vmem:[#allocation2 + $0x89] sm:$0x1] %vm178, 0.0
        %203 = vst.msk [vmem:[#allocation2 + $0xa1] sm:$0x1] %vm178, 0.0
        %204 = vst.msk [vmem:[#allocation2 + $0xb9] sm:$0x1] %vm178, 0.0
        %205 = vst.msk [vmem:[#allocation2 + $0xd1] sm:$0x1] %vm178, 0.0
        %206 = vst.msk [vmem:[#allocation2 + $0xe9] sm:$0x1] %vm178, 0.0
        %207 = vst.msk [vmem:[#allocation2 + $0x101] sm:$0x1] %vm178, 0.0
        %208 = vst.msk [vmem:[#allocation2 + $0x119] sm:$0x1] %vm178, 0.0
        %209 = vst.msk [vmem:[#allocation2 + $0x131] sm:$0x1] %vm178, 0.0
        %210 = vst.msk [vmem:[#allocation2 + $0x149] sm:$0x1] %vm178, 0.0
        %211 = vst.msk [vmem:[#allocation2 + $0x161] sm:$0x1] %vm178, 0.0
        %212 = vst.msk [vmem:[#allocation2 + $0x179] sm:$0x1] %vm178, 0.0
        %213 = vst.msk [vmem:[#allocation2 + $0x191] sm:$0x1] %vm178, 0.0
        %214 = vst.msk [vmem:[#allocation2 + $0x1a9] sm:$0x1] %vm178, 0.0
        %v215 = vld [vmem:[%s168] sm:$0xff]
        %v216 = vld [vmem:[%s168 + $0x8] sm:$0xff]
        %v217 = vld [vmem:[%s168 + $0x10] sm:$0xff]
        %v218 = vld [vmem:[%s168 + $0x18] sm:$0xff]
        %v219 = vld [vmem:[%s168 + $0x20] sm:$0xff]
        %v220 = vld [vmem:[%s168 + $0x28] sm:$0xff]
        %v221 = vld [vmem:[%s168 + $0x30] sm:$0xff]
        %v222 = vld [vmem:[%s168 + $0x38] sm:$0xff]
        %v223 = vld [vmem:[%s168 + $0x40] sm:$0xff]
        %v224 = vld [vmem:[%s168 + $0x48] sm:$0xff]
        %v225 = vld [vmem:[%s168 + $0x50] sm:$0xff]
        %v226 = vld [vmem:[%s168 + $0x58] sm:$0xff]
        %v227 = vld [vmem:[%s168 + $0x60] sm:$0xff]
        %v228 = vld [vmem:[%s168 + $0x68] sm:$0xff]
        %v229 = vld [vmem:[%s168 + $0x70] sm:$0xff]
        %v230 = vld [vmem:[%s168 + $0x78] sm:$0xff]
        %v231 = vld [vmem:[%s168 + $0x80] sm:$0xff]
        %v232 = vld [vmem:[%s168 + $0x88] sm:$0xff]
        %v233 = vld [vmem:[%s168 + $0x90] sm:$0xff]
        %v234 = vld [vmem:[%s168 + $0x98] sm:$0xff]
        %v235 = vld [vmem:[%s168 + $0xa0] sm:$0xff]
        %v236 = vld [vmem:[%s168 + $0xa8] sm:$0xff]
        %v237 = vld [vmem:[%s168 + $0xb0] sm:$0xff]
        %v238 = vld [vmem:[%s168 + $0xb8] sm:$0xff]
        %v239 = vld [vmem:[%s168 + $0xc0] sm:$0xff]
        %v240 = vld [vmem:[%s168 + $0xc8] sm:$0xff]
        %v241 = vld [vmem:[%s168 + $0xd0] sm:$0xff]
        %v242 = vld [vmem:[%s168 + $0xd8] sm:$0xff]
        %v243 = vld [vmem:[%s168 + $0xe0] sm:$0xff]
        %v244 = vld [vmem:[%s168 + $0xe8] sm:$0xff]
        %v245 = vld [vmem:[%s168 + $0xf0] sm:$0xff]
        %v246 = vld [vmem:[%s168 + $0xf8] sm:$0xff]
        %s247 = scalar_lea.vmem [#allocation2], 24
        %248 = vst.msk [vmem:[%s247 + $0x1] sm:$0xff] %vm169, %v215
        %249 = vst.msk [vmem:[%s247 + $0x9] sm:$0xff] %vm169, %v216
        %250 = vst.msk [vmem:[%s247 + $0x19] sm:$0xff] %vm169, %v217
        %251 = vst.msk [vmem:[%s247 + $0x21] sm:$0xff] %vm169, %v218
        %252 = vst.msk [vmem:[%s247 + $0x31] sm:$0xff] %vm169, %v219
        %253 = vst.msk [vmem:[%s247 + $0x39] sm:$0xff] %vm169, %v220
        %254 = vst.msk [vmem:[%s247 + $0x49] sm:$0xff] %vm169, %v221
        %255 = vst.msk [vmem:[%s247 + $0x51] sm:$0xff] %vm169, %v222
        %256 = vst.msk [vmem:[%s247 + $0x61] sm:$0xff] %vm169, %v223
        %257 = vst.msk [vmem:[%s247 + $0x69] sm:$0xff] %vm169, %v224
        %258 = vst.msk [vmem:[%s247 + $0x79] sm:$0xff] %vm169, %v225
        %259 = vst.msk [vmem:[%s247 + $0x81] sm:$0xff] %vm169, %v226
        %260 = vst.msk [vmem:[%s247 + $0x91] sm:$0xff] %vm169, %v227
        %261 = vst.msk [vmem:[%s247 + $0x99] sm:$0xff] %vm169, %v228
        %262 = vst.msk [vmem:[%s247 + $0xa9] sm:$0xff] %vm169, %v229
        %263 = vst.msk [vmem:[%s247 + $0xb1] sm:$0xff] %vm169, %v230
        %264 = vst.msk [vmem:[%s247 + $0xc1] sm:$0xff] %vm169, %v231
        %265 = vst.msk [vmem:[%s247 + $0xc9] sm:$0xff] %vm169, %v232
        %266 = vst.msk [vmem:[%s247 + $0xd9] sm:$0xff] %vm169, %v233
        %267 = vst.msk [vmem:[%s247 + $0xe1] sm:$0xff] %vm169, %v234
        %268 = vst.msk [vmem:[%s247 + $0xf1] sm:$0xff] %vm169, %v235
        %269 = vst.msk [vmem:[%s247 + $0xf9] sm:$0xff] %vm169, %v236
        %270 = vst.msk [vmem:[%s247 + $0x109] sm:$0xff] %vm169, %v237
        %271 = vst.msk [vmem:[%s247 + $0x111] sm:$0xff] %vm169, %v238
        %272 = vst.msk [vmem:[%s247 + $0x121] sm:$0xff] %vm169, %v239
        %273 = vst.msk [vmem:[%s247 + $0x129] sm:$0xff] %vm169, %v240
        %274 = vst.msk [vmem:[%s247 + $0x139] sm:$0xff] %vm169, %v241
        %275 = vst.msk [vmem:[%s247 + $0x141] sm:$0xff] %vm169, %v242
        %276 = vst.msk [vmem:[%s247 + $0x151] sm:$0xff] %vm169, %v243
        %277 = vst.msk [vmem:[%s247 + $0x159] sm:$0xff] %vm169, %v244
        %278 = vst.msk [vmem:[%s247 + $0x169] sm:$0xff] %vm169, %v245
        %279 = vst.msk [vmem:[%s247 + $0x171] sm:$0xff] %vm169, %v246
        %v280 = vld [vmem:[#allocation2] sm:$0xff]
        %v281 = vld [vmem:[#allocation2 + $0x8] sm:$0xff]
        %v282 = vld [vmem:[#allocation2 + $0x18] sm:$0xff]
        %v283 = vld [vmem:[#allocation2 + $0x20] sm:$0xff]
        %v284 = vld [vmem:[#allocation2 + $0x30] sm:$0xff]
        %v285 = vld [vmem:[#allocation2 + $0x38] sm:$0xff]
        %v286 = vld [vmem:[#allocation2 + $0x48] sm:$0xff]
        %v287 = vld [vmem:[#allocation2 + $0x50] sm:$0xff]
        %v288 = vld [vmem:[#allocation2 + $0x60] sm:$0xff]
        %v289 = vld [vmem:[#allocation2 + $0x68] sm:$0xff]
        %v290 = vld [vmem:[#allocation2 + $0x78] sm:$0xff]
        %v291 = vld [vmem:[#allocation2 + $0x80] sm:$0xff]
        %v292 = vld [vmem:[#allocation2 + $0x90] sm:$0xff]
        %v293 = vld [vmem:[#allocation2 + $0x98] sm:$0xff]
        %v294 = vld [vmem:[#allocation2 + $0xa8] sm:$0xff]
        %v295 = vld [vmem:[#allocation2 + $0xb0] sm:$0xff]
        %v296 = vld [vmem:[#allocation2 + $0xc0] sm:$0xff]
        %v297 = vld [vmem:[#allocation2 + $0xc8] sm:$0xff]
        %v298 = vld [vmem:[#allocation2 + $0xd8] sm:$0xff]
        %v299 = vld [vmem:[#allocation2 + $0xe0] sm:$0xff]
        %v300 = vld [vmem:[#allocation2 + $0xf0] sm:$0xff]
        %v301 = vld [vmem:[#allocation2 + $0xf8] sm:$0xff]
        %v302 = vld [vmem:[#allocation2 + $0x108] sm:$0xff]
        %v303 = vld [vmem:[#allocation2 + $0x110] sm:$0xff]
        %v304 = vld [vmem:[#allocation2 + $0x120] sm:$0xff]
        %v305 = vld [vmem:[#allocation2 + $0x128] sm:$0xff]
        %v306 = vld [vmem:[#allocation2 + $0x138] sm:$0xff]
        %v307 = vld [vmem:[#allocation2 + $0x140] sm:$0xff]
        %v308 = vld [vmem:[#allocation2 + $0x150] sm:$0xff]
        %v309 = vld [vmem:[#allocation2 + $0x158] sm:$0xff]
        %v310 = vld [vmem:[#allocation2 + $0x168] sm:$0xff]
        %v311 = vld [vmem:[#allocation2 + $0x170] sm:$0xff]
        %312 = vst.msk [vmem:[#allocation3] sm:$0xff] %vm169, %v280
        %313 = vst.msk [vmem:[#allocation3 + $0x18] sm:$0xff] %vm169, %v281
        %314 = vst.msk [vmem:[#allocation3 + $0x30] sm:$0xff] %vm169, %v282
        %315 = vst.msk [vmem:[#allocation3 + $0x48] sm:$0xff] %vm169, %v283
        %316 = vst.msk [vmem:[#allocation3 + $0x60] sm:$0xff] %vm169, %v284
        %317 = vst.msk [vmem:[#allocation3 + $0x78] sm:$0xff] %vm169, %v285
        %318 = vst.msk [vmem:[#allocation3 + $0x90] sm:$0xff] %vm169, %v286
        %319 = vst.msk [vmem:[#allocation3 + $0xa8] sm:$0xff] %vm169, %v287
        %320 = vst.msk [vmem:[#allocation3 + $0xc0] sm:$0xff] %vm169, %v288
        %321 = vst.msk [vmem:[#allocation3 + $0xd8] sm:$0xff] %vm169, %v289
        %322 = vst.msk [vmem:[#allocation3 + $0xf0] sm:$0xff] %vm169, %v290
        %323 = vst.msk [vmem:[#allocation3 + $0x108] sm:$0xff] %vm169, %v291
        %324 = vst.msk [vmem:[#allocation3 + $0x120] sm:$0xff] %vm169, %v292
        %325 = vst.msk [vmem:[#allocation3 + $0x138] sm:$0xff] %vm169, %v293
        %326 = vst.msk [vmem:[#allocation3 + $0x150] sm:$0xff] %vm169, %v294
        %327 = vst.msk [vmem:[#allocation3 + $0x168] sm:$0xff] %vm169, %v295
        %328 = vst.msk [vmem:[#allocation3 + $0x180] sm:$0xff] %vm169, %v296
        %329 = vst.msk [vmem:[#allocation3 + $0x198] sm:$0xff] %vm169, %v297
        %330 = vst.msk [vmem:[#allocation3 + $0x1b0] sm:$0xff] %vm169, %v298
        %331 = vst.msk [vmem:[#allocation3 + $0x1c8] sm:$0xff] %vm169, %v299
        %332 = vst.msk [vmem:[#allocation3 + $0x1e0] sm:$0xff] %vm169, %v300
        %333 = vst.msk [vmem:[#allocation3 + $0x1f8] sm:$0xff] %vm169, %v301
        %334 = vst.msk [vmem:[#allocation3 + $0x210] sm:$0xff] %vm169, %v302
        %335 = vst.msk [vmem:[#allocation3 + $0x228] sm:$0xff] %vm169, %v303
        %336 = vst.msk [vmem:[#allocation3 + $0x240] sm:$0xff] %vm169, %v304
        %337 = vst.msk [vmem:[#allocation3 + $0x258] sm:$0xff] %vm169, %v305
        %338 = vst.msk [vmem:[#allocation3 + $0x270] sm:$0xff] %vm169, %v306
        %339 = vst.msk [vmem:[#allocation3 + $0x288] sm:$0xff] %vm169, %v307
        %340 = vst.msk [vmem:[#allocation3 + $0x2a0] sm:$0xff] %vm169, %v308
        %341 = vst.msk [vmem:[#allocation3 + $0x2b8] sm:$0xff] %vm169, %v309
        %342 = vst.msk [vmem:[#allocation3 + $0x2d0] sm:$0xff] %vm169, %v310
        %343 = vst.msk [vmem:[#allocation3 + $0x2e8] sm:$0xff] %vm169, %v311
        %v344 = vld [vmem:[#allocation2 + $0x1] sm:$0xff]
        %v345 = vld [vmem:[#allocation2 + $0x9] sm:$0xff]
        %v346 = vld [vmem:[#allocation2 + $0x19] sm:$0xff]
        %v347 = vld [vmem:[#allocation2 + $0x21] sm:$0xff]
        %v348 = vld [vmem:[#allocation2 + $0x31] sm:$0xff]
        %v349 = vld [vmem:[#allocation2 + $0x39] sm:$0xff]
        %v350 = vld [vmem:[#allocation2 + $0x49] sm:$0xff]
        %v351 = vld [vmem:[#allocation2 + $0x51] sm:$0xff]
        %v352 = vld [vmem:[#allocation2 + $0x61] sm:$0xff]
        %v353 = vld [vmem:[#allocation2 + $0x69] sm:$0xff]
        %v354 = vld [vmem:[#allocation2 + $0x79] sm:$0xff]
        %v355 = vld [vmem:[#allocation2 + $0x81] sm:$0xff]
        %v356 = vld [vmem:[#allocation2 + $0x91] sm:$0xff]
        %v357 = vld [vmem:[#allocation2 + $0x99] sm:$0xff]
        %v358 = vld [vmem:[#allocation2 + $0xa9] sm:$0xff]
        %v359 = vld [vmem:[#allocation2 + $0xb1] sm:$0xff]
        %v360 = vld [vmem:[#allocation2 + $0xc1] sm:$0xff]
        %v361 = vld [vmem:[#allocation2 + $0xc9] sm:$0xff]
        %v362 = vld [vmem:[#allocation2 + $0xd9] sm:$0xff]
        %v363 = vld [vmem:[#allocation2 + $0xe1] sm:$0xff]
        %v364 = vld [vmem:[#allocation2 + $0xf1] sm:$0xff]
        %v365 = vld [vmem:[#allocation2 + $0xf9] sm:$0xff]
        %v366 = vld [vmem:[#allocation2 + $0x109] sm:$0xff]
        %v367 = vld [vmem:[#allocation2 + $0x111] sm:$0xff]
        %v368 = vld [vmem:[#allocation2 + $0x121] sm:$0xff]
        %v369 = vld [vmem:[#allocation2 + $0x129] sm:$0xff]
        %v370 = vld [vmem:[#allocation2 + $0x139] sm:$0xff]
        %v371 = vld [vmem:[#allocation2 + $0x141] sm:$0xff]
        %v372 = vld [vmem:[#allocation2 + $0x151] sm:$0xff]
        %v373 = vld [vmem:[#allocation2 + $0x159] sm:$0xff]
        %v374 = vld [vmem:[#allocation2 + $0x169] sm:$0xff]
        %v375 = vld [vmem:[#allocation2 + $0x171] sm:$0xff]
        %408 = vrot.lane.b32.xlu0 %v344, 32
        %v409 = vpop.permute.xlu0 %408
        %410 = vrot.lane.b32.xlu0 %v345, 32
        %v411 = vpop.permute.xlu0 %410
        %412 = vrot.lane.b32.xlu0 %v346, 32
        %v413 = vpop.permute.xlu0 %412
        %414 = vrot.lane.b32.xlu0 %v347, 32
        %v415 = vpop.permute.xlu0 %414
        %416 = vrot.lane.b32.xlu0 %v348, 32
        %v417 = vpop.permute.xlu0 %416
        %418 = vrot.lane.b32.xlu0 %v349, 32
        %v419 = vpop.permute.xlu0 %418
        %420 = vrot.lane.b32.xlu0 %v350, 32
        %v421 = vpop.permute.xlu0 %420
        %422 = vrot.lane.b32.xlu0 %v351, 32
        %v423 = vpop.permute.xlu0 %422
        %424 = vrot.lane.b32.xlu0 %v352, 32
        %v425 = vpop.permute.xlu0 %424
        %426 = vrot.lane.b32.xlu0 %v353, 32
        %v427 = vpop.permute.xlu0 %426
        %428 = vrot.lane.b32.xlu0 %v354, 32
        %v429 = vpop.permute.xlu0 %428
        %430 = vrot.lane.b32.xlu0 %v355, 32
        %v431 = vpop.permute.xlu0 %430
        %432 = vrot.lane.b32.xlu0 %v356, 32
        %v433 = vpop.permute.xlu0 %432
        %434 = vrot.lane.b32.xlu0 %v357, 32
        %v435 = vpop.permute.xlu0 %434
        %436 = vrot.lane.b32.xlu0 %v358, 32
        %v437 = vpop.permute.xlu0 %436
        %438 = vrot.lane.b32.xlu0 %v359, 32
        %v439 = vpop.permute.xlu0 %438
        %440 = vrot.lane.b32.xlu0 %v360, 32
        %v441 = vpop.permute.xlu0 %440
        %442 = vrot.lane.b32.xlu0 %v361, 32
        %v443 = vpop.permute.xlu0 %442
        %444 = vrot.lane.b32.xlu0 %v362, 32
        %v445 = vpop.permute.xlu0 %444
        %446 = vrot.lane.b32.xlu0 %v363, 32
        %v447 = vpop.permute.xlu0 %446
        %448 = vrot.lane.b32.xlu0 %v364, 32
        %v449 = vpop.permute.xlu0 %448
        %450 = vrot.lane.b32.xlu0 %v365, 32
        %v451 = vpop.permute.xlu0 %450
        %452 = vrot.lane.b32.xlu0 %v366, 32
        %v453 = vpop.permute.xlu0 %452
        %454 = vrot.lane.b32.xlu0 %v367, 32
        %v455 = vpop.permute.xlu0 %454
        %456 = vrot.lane.b32.xlu0 %v368, 32
        %v457 = vpop.permute.xlu0 %456
        %458 = vrot.lane.b32.xlu0 %v369, 32
        %v459 = vpop.permute.xlu0 %458
        %460 = vrot.lane.b32.xlu0 %v370, 32
        %v461 = vpop.permute.xlu0 %460
        %462 = vrot.lane.b32.xlu0 %v371, 32
        %v463 = vpop.permute.xlu0 %462
        %464 = vrot.lane.b32.xlu0 %v372, 32
        %v465 = vpop.permute.xlu0 %464
        %466 = vrot.lane.b32.xlu0 %v373, 32
        %v467 = vpop.permute.xlu0 %466
        %468 = vrot.lane.b32.xlu0 %v374, 32
        %v469 = vpop.permute.xlu0 %468
        %470 = vrot.lane.b32.xlu0 %v375, 32
        %v471 = vpop.permute.xlu0 %470
        %vm504 = vcmask 523520
        %505 = vst.msk [vmem:[#allocation3] sm:$0xff] %vm504, %v409
        %506 = vst.msk [vmem:[#allocation3 + $0x18] sm:$0xff] %vm504, %v411
        %507 = vst.msk [vmem:[#allocation3 + $0x30] sm:$0xff] %vm504, %v413
        %508 = vst.msk [vmem:[#allocation3 + $0x48] sm:$0xff] %vm504, %v415
        %509 = vst.msk [vmem:[#allocation3 + $0x60] sm:$0xff] %vm504, %v417
        %510 = vst.msk [vmem:[#allocation3 + $0x78] sm:$0xff] %vm504, %v419
        %511 = vst.msk [vmem:[#allocation3 + $0x90] sm:$0xff] %vm504, %v421
        %512 = vst.msk [vmem:[#allocation3 + $0xa8] sm:$0xff] %vm504, %v423
        %513 = vst.msk [vmem:[#allocation3 + $0xc0] sm:$0xff] %vm504, %v425
        %514 = vst.msk [vmem:[#allocation3 + $0xd8] sm:$0xff] %vm504, %v427
        %515 = vst.msk [vmem:[#allocation3 + $0xf0] sm:$0xff] %vm504, %v429
        %516 = vst.msk [vmem:[#allocation3 + $0x108] sm:$0xff] %vm504, %v431
        %517 = vst.msk [vmem:[#allocation3 + $0x120] sm:$0xff] %vm504, %v433
        %518 = vst.msk [vmem:[#allocation3 + $0x138] sm:$0xff] %vm504, %v435
        %519 = vst.msk [vmem:[#allocation3 + $0x150] sm:$0xff] %vm504, %v437
        %520 = vst.msk [vmem:[#allocation3 + $0x168] sm:$0xff] %vm504, %v439
        %521 = vst.msk [vmem:[#allocation3 + $0x180] sm:$0xff] %vm504, %v441
        %522 = vst.msk [vmem:[#allocation3 + $0x198] sm:$0xff] %vm504, %v443
        %523 = vst.msk [vmem:[#allocation3 + $0x1b0] sm:$0xff] %vm504, %v445
        %524 = vst.msk [vmem:[#allocation3 + $0x1c8] sm:$0xff] %vm504, %v447
        %525 = vst.msk [vmem:[#allocation3 + $0x1e0] sm:$0xff] %vm504, %v449
        %526 = vst.msk [vmem:[#allocation3 + $0x1f8] sm:$0xff] %vm504, %v451
        %527 = vst.msk [vmem:[#allocation3 + $0x210] sm:$0xff] %vm504, %v453
        %528 = vst.msk [vmem:[#allocation3 + $0x228] sm:$0xff] %vm504, %v455
        %529 = vst.msk [vmem:[#allocation3 + $0x240] sm:$0xff] %vm504, %v457
        %530 = vst.msk [vmem:[#allocation3 + $0x258] sm:$0xff] %vm504, %v459
        %531 = vst.msk [vmem:[#allocation3 + $0x270] sm:$0xff] %vm504, %v461
        %532 = vst.msk [vmem:[#allocation3 + $0x288] sm:$0xff] %vm504, %v463
        %533 = vst.msk [vmem:[#allocation3 + $0x2a0] sm:$0xff] %vm504, %v465
        %534 = vst.msk [vmem:[#allocation3 + $0x2b8] sm:$0xff] %vm504, %v467
        %535 = vst.msk [vmem:[#allocation3 + $0x2d0] sm:$0xff] %vm504, %v469
        %536 = vst.msk [vmem:[#allocation3 + $0x2e8] sm:$0xff] %vm504, %v471
        %v537 = vld [vmem:[#allocation2 + $0x2] sm:$0xff]
        %v538 = vld [vmem:[#allocation2 + $0xa] sm:$0xff]
        %v539 = vld [vmem:[#allocation2 + $0x1a] sm:$0xff]
        %v540 = vld [vmem:[#allocation2 + $0x22] sm:$0xff]
        %v541 = vld [vmem:[#allocation2 + $0x32] sm:$0xff]
        %v542 = vld [vmem:[#allocation2 + $0x3a] sm:$0xff]
        %v543 = vld [vmem:[#allocation2 + $0x4a] sm:$0xff]
        %v544 = vld [vmem:[#allocation2 + $0x52] sm:$0xff]
        %v545 = vld [vmem:[#allocation2 + $0x62] sm:$0xff]
        %v546 = vld [vmem:[#allocation2 + $0x6a] sm:$0xff]
        %v547 = vld [vmem:[#allocation2 + $0x7a] sm:$0xff]
        %v548 = vld [vmem:[#allocation2 + $0x82] sm:$0xff]
        %v549 = vld [vmem:[#allocation2 + $0x92] sm:$0xff]
        %v550 = vld [vmem:[#allocation2 + $0x9a] sm:$0xff]
        %v551 = vld [vmem:[#allocation2 + $0xaa] sm:$0xff]
        %v552 = vld [vmem:[#allocation2 + $0xb2] sm:$0xff]
        %v553 = vld [vmem:[#allocation2 + $0xc2] sm:$0xff]
        %v554 = vld [vmem:[#allocation2 + $0xca] sm:$0xff]
        %v555 = vld [vmem:[#allocation2 + $0xda] sm:$0xff]
        %v556 = vld [vmem:[#allocation2 + $0xe2] sm:$0xff]
        %v557 = vld [vmem:[#allocation2 + $0xf2] sm:$0xff]
        %v558 = vld [vmem:[#allocation2 + $0xfa] sm:$0xff]
        %v559 = vld [vmem:[#allocation2 + $0x10a] sm:$0xff]
        %v560 = vld [vmem:[#allocation2 + $0x112] sm:$0xff]
        %v561 = vld [vmem:[#allocation2 + $0x122] sm:$0xff]
        %v562 = vld [vmem:[#allocation2 + $0x12a] sm:$0xff]
        %v563 = vld [vmem:[#allocation2 + $0x13a] sm:$0xff]
        %v564 = vld [vmem:[#allocation2 + $0x142] sm:$0xff]
        %v565 = vld [vmem:[#allocation2 + $0x152] sm:$0xff]
        %v566 = vld [vmem:[#allocation2 + $0x15a] sm:$0xff]
        %v567 = vld [vmem:[#allocation2 + $0x16a] sm:$0xff]
        %v568 = vld [vmem:[#allocation2 + $0x172] sm:$0xff]
        %601 = vrot.lane.b32.xlu0 %v537, 64
        %v602 = vpop.permute.xlu0 %601
        %603 = vrot.lane.b32.xlu0 %v538, 64
        %v604 = vpop.permute.xlu0 %603
        %605 = vrot.lane.b32.xlu0 %v539, 64
        %v606 = vpop.permute.xlu0 %605
        %607 = vrot.lane.b32.xlu0 %v540, 64
        %v608 = vpop.permute.xlu0 %607
        %609 = vrot.lane.b32.xlu0 %v541, 64
        %v610 = vpop.permute.xlu0 %609
        %611 = vrot.lane.b32.xlu0 %v542, 64
        %v612 = vpop.permute.xlu0 %611
        %613 = vrot.lane.b32.xlu0 %v543, 64
        %v614 = vpop.permute.xlu0 %613
        %615 = vrot.lane.b32.xlu0 %v544, 64
        %v616 = vpop.permute.xlu0 %615
        %617 = vrot.lane.b32.xlu0 %v545, 64
        %v618 = vpop.permute.xlu0 %617
        %619 = vrot.lane.b32.xlu0 %v546, 64
        %v620 = vpop.permute.xlu0 %619
        %621 = vrot.lane.b32.xlu0 %v547, 64
        %v622 = vpop.permute.xlu0 %621
        %623 = vrot.lane.b32.xlu0 %v548, 64
        %v624 = vpop.permute.xlu0 %623
        %625 = vrot.lane.b32.xlu0 %v549, 64
        %v626 = vpop.permute.xlu0 %625
        %627 = vrot.lane.b32.xlu0 %v550, 64
        %v628 = vpop.permute.xlu0 %627
        %629 = vrot.lane.b32.xlu0 %v551, 64
        %v630 = vpop.permute.xlu0 %629
        %631 = vrot.lane.b32.xlu0 %v552, 64
        %v632 = vpop.permute.xlu0 %631
        %633 = vrot.lane.b32.xlu0 %v553, 64
        %v634 = vpop.permute.xlu0 %633
        %635 = vrot.lane.b32.xlu0 %v554, 64
        %v636 = vpop.permute.xlu0 %635
        %637 = vrot.lane.b32.xlu0 %v555, 64
        %v638 = vpop.permute.xlu0 %637
        %639 = vrot.lane.b32.xlu0 %v556, 64
        %v640 = vpop.permute.xlu0 %639
        %641 = vrot.lane.b32.xlu0 %v557, 64
        %v642 = vpop.permute.xlu0 %641
        %643 = vrot.lane.b32.xlu0 %v558, 64
        %v644 = vpop.permute.xlu0 %643
        %645 = vrot.lane.b32.xlu0 %v559, 64
        %v646 = vpop.permute.xlu0 %645
        %647 = vrot.lane.b32.xlu0 %v560, 64
        %v648 = vpop.permute.xlu0 %647
        %649 = vrot.lane.b32.xlu0 %v561, 64
        %v650 = vpop.permute.xlu0 %649
        %651 = vrot.lane.b32.xlu0 %v562, 64
        %v652 = vpop.permute.xlu0 %651
        %653 = vrot.lane.b32.xlu0 %v563, 64
        %v654 = vpop.permute.xlu0 %653
        %655 = vrot.lane.b32.xlu0 %v564, 64
        %v656 = vpop.permute.xlu0 %655
        %657 = vrot.lane.b32.xlu0 %v565, 64
        %v658 = vpop.permute.xlu0 %657
        %659 = vrot.lane.b32.xlu0 %v566, 64
        %v660 = vpop.permute.xlu0 %659
        %661 = vrot.lane.b32.xlu0 %v567, 64
        %v662 = vpop.permute.xlu0 %661
        %663 = vrot.lane.b32.xlu0 %v568, 64
        %v664 = vpop.permute.xlu0 %663
        %vm697 = vcmask 785920
        %698 = vst.msk [vmem:[#allocation3] sm:$0xff] %vm697, %v602
        %699 = vst.msk [vmem:[#allocation3 + $0x18] sm:$0xff] %vm697, %v604
        %700 = vst.msk [vmem:[#allocation3 + $0x30] sm:$0xff] %vm697, %v606
        %701 = vst.msk [vmem:[#allocation3 + $0x48] sm:$0xff] %vm697, %v608
        %702 = vst.msk [vmem:[#allocation3 + $0x60] sm:$0xff] %vm697, %v610
        %703 = vst.msk [vmem:[#allocation3 + $0x78] sm:$0xff] %vm697, %v612
        %704 = vst.msk [vmem:[#allocation3 + $0x90] sm:$0xff] %vm697, %v614
        %705 = vst.msk [vmem:[#allocation3 + $0xa8] sm:$0xff] %vm697, %v616
        %706 = vst.msk [vmem:[#allocation3 + $0xc0] sm:$0xff] %vm697, %v618
        %707 = vst.msk [vmem:[#allocation3 + $0xd8] sm:$0xff] %vm697, %v620
        %708 = vst.msk [vmem:[#allocation3 + $0xf0] sm:$0xff] %vm697, %v622
        %709 = vst.msk [vmem:[#allocation3 + $0x108] sm:$0xff] %vm697, %v624
        %710 = vst.msk [vmem:[#allocation3 + $0x120] sm:$0xff] %vm697, %v626
        %711 = vst.msk [vmem:[#allocation3 + $0x138] sm:$0xff] %vm697, %v628
        %712 = vst.msk [vmem:[#allocation3 + $0x150] sm:$0xff] %vm697, %v630
        %713 = vst.msk [vmem:[#allocation3 + $0x168] sm:$0xff] %vm697, %v632
        %714 = vst.msk [vmem:[#allocation3 + $0x180] sm:$0xff] %vm697, %v634
        %715 = vst.msk [vmem:[#allocation3 + $0x198] sm:$0xff] %vm697, %v636
        %716 = vst.msk [vmem:[#allocation3 + $0x1b0] sm:$0xff] %vm697, %v638
        %717 = vst.msk [vmem:[#allocation3 + $0x1c8] sm:$0xff] %vm697, %v640
        %718 = vst.msk [vmem:[#allocation3 + $0x1e0] sm:$0xff] %vm697, %v642
        %719 = vst.msk [vmem:[#allocation3 + $0x1f8] sm:$0xff] %vm697, %v644
        %720 = vst.msk [vmem:[#allocation3 + $0x210] sm:$0xff] %vm697, %v646
        %721 = vst.msk [vmem:[#allocation3 + $0x228] sm:$0xff] %vm697, %v648
        %722 = vst.msk [vmem:[#allocation3 + $0x240] sm:$0xff] %vm697, %v650
        %723 = vst.msk [vmem:[#allocation3 + $0x258] sm:$0xff] %vm697, %v652
        %724 = vst.msk [vmem:[#allocation3 + $0x270] sm:$0xff] %vm697, %v654
        %725 = vst.msk [vmem:[#allocation3 + $0x288] sm:$0xff] %vm697, %v656
        %726 = vst.msk [vmem:[#allocation3 + $0x2a0] sm:$0xff] %vm697, %v658
        %727 = vst.msk [vmem:[#allocation3 + $0x2b8] sm:$0xff] %vm697, %v660
        %728 = vst.msk [vmem:[#allocation3 + $0x2d0] sm:$0xff] %vm697, %v662
        %729 = vst.msk [vmem:[#allocation3 + $0x2e8] sm:$0xff] %vm697, %v664
        %v730 = vld [vmem:[%s247] sm:$0xff]
        %v731 = vld [vmem:[%s247 + $0x8] sm:$0xff]
        %v732 = vld [vmem:[%s247 + $0x18] sm:$0xff]
        %v733 = vld [vmem:[%s247 + $0x20] sm:$0xff]
        %v734 = vld [vmem:[%s247 + $0x30] sm:$0xff]
        %v735 = vld [vmem:[%s247 + $0x38] sm:$0xff]
        %v736 = vld [vmem:[%s247 + $0x48] sm:$0xff]
        %v737 = vld [vmem:[%s247 + $0x50] sm:$0xff]
        %v738 = vld [vmem:[%s247 + $0x60] sm:$0xff]
        %v739 = vld [vmem:[%s247 + $0x68] sm:$0xff]
        %v740 = vld [vmem:[%s247 + $0x78] sm:$0xff]
        %v741 = vld [vmem:[%s247 + $0x80] sm:$0xff]
        %v742 = vld [vmem:[%s247 + $0x90] sm:$0xff]
        %v743 = vld [vmem:[%s247 + $0x98] sm:$0xff]
        %v744 = vld [vmem:[%s247 + $0xa8] sm:$0xff]
        %v745 = vld [vmem:[%s247 + $0xb0] sm:$0xff]
        %v746 = vld [vmem:[%s247 + $0xc0] sm:$0xff]
        %v747 = vld [vmem:[%s247 + $0xc8] sm:$0xff]
        %v748 = vld [vmem:[%s247 + $0xd8] sm:$0xff]
        %v749 = vld [vmem:[%s247 + $0xe0] sm:$0xff]
        %v750 = vld [vmem:[%s247 + $0xf0] sm:$0xff]
        %v751 = vld [vmem:[%s247 + $0xf8] sm:$0xff]
        %v752 = vld [vmem:[%s247 + $0x108] sm:$0xff]
        %v753 = vld [vmem:[%s247 + $0x110] sm:$0xff]
        %v754 = vld [vmem:[%s247 + $0x120] sm:$0xff]
        %v755 = vld [vmem:[%s247 + $0x128] sm:$0xff]
        %v756 = vld [vmem:[%s247 + $0x138] sm:$0xff]
        %v757 = vld [vmem:[%s247 + $0x140] sm:$0xff]
        %v758 = vld [vmem:[%s247 + $0x150] sm:$0xff]
        %v759 = vld [vmem:[%s247 + $0x158] sm:$0xff]
        %v760 = vld [vmem:[%s247 + $0x168] sm:$0xff]
        %v761 = vld [vmem:[%s247 + $0x170] sm:$0xff]
        %794 = vrot.lane.b32.xlu0 %v730, 96
        %v795 = vpop.permute.xlu0 %794
        %796 = vrot.lane.b32.xlu0 %v731, 96
        %v797 = vpop.permute.xlu0 %796
        %798 = vrot.lane.b32.xlu0 %v732, 96
        %v799 = vpop.permute.xlu0 %798
        %800 = vrot.lane.b32.xlu0 %v733, 96
        %v801 = vpop.permute.xlu0 %800
        %802 = vrot.lane.b32.xlu0 %v734, 96
        %v803 = vpop.permute.xlu0 %802
        %804 = vrot.lane.b32.xlu0 %v735, 96
        %v805 = vpop.permute.xlu0 %804
        %806 = vrot.lane.b32.xlu0 %v736, 96
        %v807 = vpop.permute.xlu0 %806
        %808 = vrot.lane.b32.xlu0 %v737, 96
        %v809 = vpop.permute.xlu0 %808
        %810 = vrot.lane.b32.xlu0 %v738, 96
        %v811 = vpop.permute.xlu0 %810
        %812 = vrot.lane.b32.xlu0 %v739, 96
        %v813 = vpop.permute.xlu0 %812
        %814 = vrot.lane.b32.xlu0 %v740, 96
        %v815 = vpop.permute.xlu0 %814
        %816 = vrot.lane.b32.xlu0 %v741, 96
        %v817 = vpop.permute.xlu0 %816
        %818 = vrot.lane.b32.xlu0 %v742, 96
        %v819 = vpop.permute.xlu0 %818
        %820 = vrot.lane.b32.xlu0 %v743, 96
        %v821 = vpop.permute.xlu0 %820
        %822 = vrot.lane.b32.xlu0 %v744, 96
        %v823 = vpop.permute.xlu0 %822
        %824 = vrot.lane.b32.xlu0 %v745, 96
        %v825 = vpop.permute.xlu0 %824
        %826 = vrot.lane.b32.xlu0 %v746, 96
        %v827 = vpop.permute.xlu0 %826
        %828 = vrot.lane.b32.xlu0 %v747, 96
        %v829 = vpop.permute.xlu0 %828
        %830 = vrot.lane.b32.xlu0 %v748, 96
        %v831 = vpop.permute.xlu0 %830
        %832 = vrot.lane.b32.xlu0 %v749, 96
        %v833 = vpop.permute.xlu0 %832
        %834 = vrot.lane.b32.xlu0 %v750, 96
        %v835 = vpop.permute.xlu0 %834
        %836 = vrot.lane.b32.xlu0 %v751, 96
        %v837 = vpop.permute.xlu0 %836
        %838 = vrot.lane.b32.xlu0 %v752, 96
        %v839 = vpop.permute.xlu0 %838
        %840 = vrot.lane.b32.xlu0 %v753, 96
        %v841 = vpop.permute.xlu0 %840
        %842 = vrot.lane.b32.xlu0 %v754, 96
        %v843 = vpop.permute.xlu0 %842
        %844 = vrot.lane.b32.xlu0 %v755, 96
        %v845 = vpop.permute.xlu0 %844
        %846 = vrot.lane.b32.xlu0 %v756, 96
        %v847 = vpop.permute.xlu0 %846
        %848 = vrot.lane.b32.xlu0 %v757, 96
        %v849 = vpop.permute.xlu0 %848
        %850 = vrot.lane.b32.xlu0 %v758, 96
        %v851 = vpop.permute.xlu0 %850
        %852 = vrot.lane.b32.xlu0 %v759, 96
        %v853 = vpop.permute.xlu0 %852
        %854 = vrot.lane.b32.xlu0 %v760, 96
        %v855 = vpop.permute.xlu0 %854
        %856 = vrot.lane.b32.xlu0 %v761, 96
        %v857 = vpop.permute.xlu0 %856
        %vm890 = vcmask 1048320
        %891 = vst.msk [vmem:[#allocation3] sm:$0xff] %vm890, %v795
        %892 = vst.msk [vmem:[#allocation3 + $0x18] sm:$0xff] %vm890, %v797
        %893 = vst.msk [vmem:[#allocation3 + $0x30] sm:$0xff] %vm890, %v799
        %894 = vst.msk [vmem:[#allocation3 + $0x48] sm:$0xff] %vm890, %v801
        %895 = vst.msk [vmem:[#allocation3 + $0x60] sm:$0xff] %vm890, %v803
        %896 = vst.msk [vmem:[#allocation3 + $0x78] sm:$0xff] %vm890, %v805
        %897 = vst.msk [vmem:[#allocation3 + $0x90] sm:$0xff] %vm890, %v807
        %898 = vst.msk [vmem:[#allocation3 + $0xa8] sm:$0xff] %vm890, %v809
        %899 = vst.msk [vmem:[#allocation3 + $0xc0] sm:$0xff] %vm890, %v811
        %900 = vst.msk [vmem:[#allocation3 + $0xd8] sm:$0xff] %vm890, %v813
        %901 = vst.msk [vmem:[#allocation3 + $0xf0] sm:$0xff] %vm890, %v815
        %902 = vst.msk [vmem:[#allocation3 + $0x108] sm:$0xff] %vm890, %v817
        %903 = vst.msk [vmem:[#allocation3 + $0x120] sm:$0xff] %vm890, %v819
        %904 = vst.msk [vmem:[#allocation3 + $0x138] sm:$0xff] %vm890, %v821
        %905 = vst.msk [vmem:[#allocation3 + $0x150] sm:$0xff] %vm890, %v823
        %906 = vst.msk [vmem:[#allocation3 + $0x168] sm:$0xff] %vm890, %v825
        %907 = vst.msk [vmem:[#allocation3 + $0x180] sm:$0xff] %vm890, %v827
        %908 = vst.msk [vmem:[#allocation3 + $0x198] sm:$0xff] %vm890, %v829
        %909 = vst.msk [vmem:[#allocation3 + $0x1b0] sm:$0xff] %vm890, %v831
        %910 = vst.msk [vmem:[#allocation3 + $0x1c8] sm:$0xff] %vm890, %v833
        %911 = vst.msk [vmem:[#allocation3 + $0x1e0] sm:$0xff] %vm890, %v835
        %912 = vst.msk [vmem:[#allocation3 + $0x1f8] sm:$0xff] %vm890, %v837
        %913 = vst.msk [vmem:[#allocation3 + $0x210] sm:$0xff] %vm890, %v839
        %914 = vst.msk [vmem:[#allocation3 + $0x228] sm:$0xff] %vm890, %v841
        %915 = vst.msk [vmem:[#allocation3 + $0x240] sm:$0xff] %vm890, %v843
        %916 = vst.msk [vmem:[#allocation3 + $0x258] sm:$0xff] %vm890, %v845
        %917 = vst.msk [vmem:[#allocation3 + $0x270] sm:$0xff] %vm890, %v847
        %918 = vst.msk [vmem:[#allocation3 + $0x288] sm:$0xff] %vm890, %v849
        %919 = vst.msk [vmem:[#allocation3 + $0x2a0] sm:$0xff] %vm890, %v851
        %920 = vst.msk [vmem:[#allocation3 + $0x2b8] sm:$0xff] %vm890, %v853
        %921 = vst.msk [vmem:[#allocation3 + $0x2d0] sm:$0xff] %vm890, %v855
        %922 = vst.msk [vmem:[#allocation3 + $0x2e8] sm:$0xff] %vm890, %v857
        %v923 = vld [vmem:[%s247 + $0x1] sm:$0xff]
        %v924 = vld [vmem:[%s247 + $0x9] sm:$0xff]
        %v925 = vld [vmem:[%s247 + $0x19] sm:$0xff]
        %v926 = vld [vmem:[%s247 + $0x21] sm:$0xff]
        %v927 = vld [vmem:[%s247 + $0x31] sm:$0xff]
        %v928 = vld [vmem:[%s247 + $0x39] sm:$0xff]
        %v929 = vld [vmem:[%s247 + $0x49] sm:$0xff]
        %v930 = vld [vmem:[%s247 + $0x51] sm:$0xff]
        %v931 = vld [vmem:[%s247 + $0x61] sm:$0xff]
        %v932 = vld [vmem:[%s247 + $0x69] sm:$0xff]
        %v933 = vld [vmem:[%s247 + $0x79] sm:$0xff]
        %v934 = vld [vmem:[%s247 + $0x81] sm:$0xff]
        %v935 = vld [vmem:[%s247 + $0x91] sm:$0xff]
        %v936 = vld [vmem:[%s247 + $0x99] sm:$0xff]
        %v937 = vld [vmem:[%s247 + $0xa9] sm:$0xff]
        %v938 = vld [vmem:[%s247 + $0xb1] sm:$0xff]
        %v939 = vld [vmem:[%s247 + $0xc1] sm:$0xff]
        %v940 = vld [vmem:[%s247 + $0xc9] sm:$0xff]
        %v941 = vld [vmem:[%s247 + $0xd9] sm:$0xff]
        %v942 = vld [vmem:[%s247 + $0xe1] sm:$0xff]
        %v943 = vld [vmem:[%s247 + $0xf1] sm:$0xff]
        %v944 = vld [vmem:[%s247 + $0xf9] sm:$0xff]
        %v945 = vld [vmem:[%s247 + $0x109] sm:$0xff]
        %v946 = vld [vmem:[%s247 + $0x111] sm:$0xff]
        %v947 = vld [vmem:[%s247 + $0x121] sm:$0xff]
        %v948 = vld [vmem:[%s247 + $0x129] sm:$0xff]
        %v949 = vld [vmem:[%s247 + $0x139] sm:$0xff]
        %v950 = vld [vmem:[%s247 + $0x141] sm:$0xff]
        %v951 = vld [vmem:[%s247 + $0x151] sm:$0xff]
        %v952 = vld [vmem:[%s247 + $0x159] sm:$0xff]
        %v953 = vld [vmem:[%s247 + $0x169] sm:$0xff]
        %v954 = vld [vmem:[%s247 + $0x171] sm:$0xff]
        %955 = vst.msk [vmem:[#allocation3 + $0x8] sm:$0xff] %vm169, %v923
        %956 = vst.msk [vmem:[#allocation3 + $0x20] sm:$0xff] %vm169, %v924
        %957 = vst.msk [vmem:[#allocation3 + $0x38] sm:$0xff] %vm169, %v925
        %958 = vst.msk [vmem:[#allocation3 + $0x50] sm:$0xff] %vm169, %v926
        %959 = vst.msk [vmem:[#allocation3 + $0x68] sm:$0xff] %vm169, %v927
        %960 = vst.msk [vmem:[#allocation3 + $0x80] sm:$0xff] %vm169, %v928
        %961 = vst.msk [vmem:[#allocation3 + $0x98] sm:$0xff] %vm169, %v929
        %962 = vst.msk [vmem:[#allocation3 + $0xb0] sm:$0xff] %vm169, %v930
        %963 = vst.msk [vmem:[#allocation3 + $0xc8] sm:$0xff] %vm169, %v931
        %964 = vst.msk [vmem:[#allocation3 + $0xe0] sm:$0xff] %vm169, %v932
        %965 = vst.msk [vmem:[#allocation3 + $0xf8] sm:$0xff] %vm169, %v933
        %966 = vst.msk [vmem:[#allocation3 + $0x110] sm:$0xff] %vm169, %v934
        %967 = vst.msk [vmem:[#allocation3 + $0x128] sm:$0xff] %vm169, %v935
        %968 = vst.msk [vmem:[#allocation3 + $0x140] sm:$0xff] %vm169, %v936
        %969 = vst.msk [vmem:[#allocation3 + $0x158] sm:$0xff] %vm169, %v937
        %970 = vst.msk [vmem:[#allocation3 + $0x170] sm:$0xff] %vm169, %v938
        %971 = vst.msk [vmem:[#allocation3 + $0x188] sm:$0xff] %vm169, %v939
        %972 = vst.msk [vmem:[#allocation3 + $0x1a0] sm:$0xff] %vm169, %v940
        %973 = vst.msk [vmem:[#allocation3 + $0x1b8] sm:$0xff] %vm169, %v941
        %974 = vst.msk [vmem:[#allocation3 + $0x1d0] sm:$0xff] %vm169, %v942
        %975 = vst.msk [vmem:[#allocation3 + $0x1e8] sm:$0xff] %vm169, %v943
        %976 = vst.msk [vmem:[#allocation3 + $0x200] sm:$0xff] %vm169, %v944
        %977 = vst.msk [vmem:[#allocation3 + $0x218] sm:$0xff] %vm169, %v945
        %978 = vst.msk [vmem:[#allocation3 + $0x230] sm:$0xff] %vm169, %v946
        %979 = vst.msk [vmem:[#allocation3 + $0x248] sm:$0xff] %vm169, %v947
        %980 = vst.msk [vmem:[#allocation3 + $0x260] sm:$0xff] %vm169, %v948
        %981 = vst.msk [vmem:[#allocation3 + $0x278] sm:$0xff] %vm169, %v949
        %982 = vst.msk [vmem:[#allocation3 + $0x290] sm:$0xff] %vm169, %v950
        %983 = vst.msk [vmem:[#allocation3 + $0x2a8] sm:$0xff] %vm169, %v951
        %984 = vst.msk [vmem:[#allocation3 + $0x2c0] sm:$0xff] %vm169, %v952
        %985 = vst.msk [vmem:[#allocation3 + $0x2d8] sm:$0xff] %vm169, %v953
        %986 = vst.msk [vmem:[#allocation3 + $0x2f0] sm:$0xff] %vm169, %v954
        %v987 = vld [vmem:[%s247 + $0x2] sm:$0xff]
        %v988 = vld [vmem:[%s247 + $0xa] sm:$0xff]
        %v989 = vld [vmem:[%s247 + $0x1a] sm:$0xff]
        %v990 = vld [vmem:[%s247 + $0x22] sm:$0xff]
        %v991 = vld [vmem:[%s247 + $0x32] sm:$0xff]
        %v992 = vld [vmem:[%s247 + $0x3a] sm:$0xff]
        %v993 = vld [vmem:[%s247 + $0x4a] sm:$0xff]
        %v994 = vld [vmem:[%s247 + $0x52] sm:$0xff]
        %v995 = vld [vmem:[%s247 + $0x62] sm:$0xff]
        %v996 = vld [vmem:[%s247 + $0x6a] sm:$0xff]
        %v997 = vld [vmem:[%s247 + $0x7a] sm:$0xff]
        %v998 = vld [vmem:[%s247 + $0x82] sm:$0xff]
        %v999 = vld [vmem:[%s247 + $0x92] sm:$0xff]
        %v1000 = vld [vmem:[%s247 + $0x9a] sm:$0xff]
        %v1001 = vld [vmem:[%s247 + $0xaa] sm:$0xff]
        %v1002 = vld [vmem:[%s247 + $0xb2] sm:$0xff]
        %v1003 = vld [vmem:[%s247 + $0xc2] sm:$0xff]
        %v1004 = vld [vmem:[%s247 + $0xca] sm:$0xff]
        %v1005 = vld [vmem:[%s247 + $0xda] sm:$0xff]
        %v1006 = vld [vmem:[%s247 + $0xe2] sm:$0xff]
        %v1007 = vld [vmem:[%s247 + $0xf2] sm:$0xff]
        %v1008 = vld [vmem:[%s247 + $0xfa] sm:$0xff]
        %v1009 = vld [vmem:[%s247 + $0x10a] sm:$0xff]
        %v1010 = vld [vmem:[%s247 + $0x112] sm:$0xff]
        %v1011 = vld [vmem:[%s247 + $0x122] sm:$0xff]
        %v1012 = vld [vmem:[%s247 + $0x12a] sm:$0xff]
        %v1013 = vld [vmem:[%s247 + $0x13a] sm:$0xff]
        %v1014 = vld [vmem:[%s247 + $0x142] sm:$0xff]
        %v1015 = vld [vmem:[%s247 + $0x152] sm:$0xff]
        %v1016 = vld [vmem:[%s247 + $0x15a] sm:$0xff]
        %v1017 = vld [vmem:[%s247 + $0x16a] sm:$0xff]
        %v1018 = vld [vmem:[%s247 + $0x172] sm:$0xff]
        %1051 = vrot.lane.b32.xlu0 %v987, 32
        %v1052 = vpop.permute.xlu0 %1051
        %1053 = vrot.lane.b32.xlu0 %v988, 32
        %v1054 = vpop.permute.xlu0 %1053
        %1055 = vrot.lane.b32.xlu0 %v989, 32
        %v1056 = vpop.permute.xlu0 %1055
        %1057 = vrot.lane.b32.xlu0 %v990, 32
        %v1058 = vpop.permute.xlu0 %1057
        %1059 = vrot.lane.b32.xlu0 %v991, 32
        %v1060 = vpop.permute.xlu0 %1059
        %1061 = vrot.lane.b32.xlu0 %v992, 32
        %v1062 = vpop.permute.xlu0 %1061
        %1063 = vrot.lane.b32.xlu0 %v993, 32
        %v1064 = vpop.permute.xlu0 %1063
        %1065 = vrot.lane.b32.xlu0 %v994, 32
        %v1066 = vpop.permute.xlu0 %1065
        %1067 = vrot.lane.b32.xlu0 %v995, 32
        %v1068 = vpop.permute.xlu0 %1067
        %1069 = vrot.lane.b32.xlu0 %v996, 32
        %v1070 = vpop.permute.xlu0 %1069
        %1071 = vrot.lane.b32.xlu0 %v997, 32
        %v1072 = vpop.permute.xlu0 %1071
        %1073 = vrot.lane.b32.xlu0 %v998, 32
        %v1074 = vpop.permute.xlu0 %1073
        %1075 = vrot.lane.b32.xlu0 %v999, 32
        %v1076 = vpop.permute.xlu0 %1075
        %1077 = vrot.lane.b32.xlu0 %v1000, 32
        %v1078 = vpop.permute.xlu0 %1077
        %1079 = vrot.lane.b32.xlu0 %v1001, 32
        %v1080 = vpop.permute.xlu0 %1079
        %1081 = vrot.lane.b32.xlu0 %v1002, 32
        %v1082 = vpop.permute.xlu0 %1081
        %1083 = vrot.lane.b32.xlu0 %v1003, 32
        %v1084 = vpop.permute.xlu0 %1083
        %1085 = vrot.lane.b32.xlu0 %v1004, 32
        %v1086 = vpop.permute.xlu0 %1085
        %1087 = vrot.lane.b32.xlu0 %v1005, 32
        %v1088 = vpop.permute.xlu0 %1087
        %1089 = vrot.lane.b32.xlu0 %v1006, 32
        %v1090 = vpop.permute.xlu0 %1089
        %1091 = vrot.lane.b32.xlu0 %v1007, 32
        %v1092 = vpop.permute.xlu0 %1091
        %1093 = vrot.lane.b32.xlu0 %v1008, 32
        %v1094 = vpop.permute.xlu0 %1093
        %1095 = vrot.lane.b32.xlu0 %v1009, 32
        %v1096 = vpop.permute.xlu0 %1095
        %1097 = vrot.lane.b32.xlu0 %v1010, 32
        %v1098 = vpop.permute.xlu0 %1097
        %1099 = vrot.lane.b32.xlu0 %v1011, 32
        %v1100 = vpop.permute.xlu0 %1099
        %1101 = vrot.lane.b32.xlu0 %v1012, 32
        %v1102 = vpop.permute.xlu0 %1101
        %1103 = vrot.lane.b32.xlu0 %v1013, 32
        %v1104 = vpop.permute.xlu0 %1103
        %1105 = vrot.lane.b32.xlu0 %v1014, 32
        %v1106 = vpop.permute.xlu0 %1105
        %1107 = vrot.lane.b32.xlu0 %v1015, 32
        %v1108 = vpop.permute.xlu0 %1107
        %1109 = vrot.lane.b32.xlu0 %v1016, 32
        %v1110 = vpop.permute.xlu0 %1109
        %1111 = vrot.lane.b32.xlu0 %v1017, 32
        %v1112 = vpop.permute.xlu0 %1111
        %1113 = vrot.lane.b32.xlu0 %v1018, 32
        %v1114 = vpop.permute.xlu0 %1113
        %1147 = vst.msk [vmem:[#allocation3 + $0x8] sm:$0xff] %vm504, %v1052
        %1148 = vst.msk [vmem:[#allocation3 + $0x20] sm:$0xff] %vm504, %v1054
        %1149 = vst.msk [vmem:[#allocation3 + $0x38] sm:$0xff] %vm504, %v1056
        %1150 = vst.msk [vmem:[#allocation3 + $0x50] sm:$0xff] %vm504, %v1058
        %1151 = vst.msk [vmem:[#allocation3 + $0x68] sm:$0xff] %vm504, %v1060
        %1152 = vst.msk [vmem:[#allocation3 + $0x80] sm:$0xff] %vm504, %v1062
        %1153 = vst.msk [vmem:[#allocation3 + $0x98] sm:$0xff] %vm504, %v1064
        %1154 = vst.msk [vmem:[#allocation3 + $0xb0] sm:$0xff] %vm504, %v1066
        %1155 = vst.msk [vmem:[#allocation3 + $0xc8] sm:$0xff] %vm504, %v1068
        %1156 = vst.msk [vmem:[#allocation3 + $0xe0] sm:$0xff] %vm504, %v1070
        %1157 = vst.msk [vmem:[#allocation3 + $0xf8] sm:$0xff] %vm504, %v1072
        %1158 = vst.msk [vmem:[#allocation3 + $0x110] sm:$0xff] %vm504, %v1074
        %1159 = vst.msk [vmem:[#allocation3 + $0x128] sm:$0xff] %vm504, %v1076
        %1160 = vst.msk [vmem:[#allocation3 + $0x140] sm:$0xff] %vm504, %v1078
        %1161 = vst.msk [vmem:[#allocation3 + $0x158] sm:$0xff] %vm504, %v1080
        %1162 = vst.msk [vmem:[#allocation3 + $0x170] sm:$0xff] %vm504, %v1082
        %1163 = vst.msk [vmem:[#allocation3 + $0x188] sm:$0xff] %vm504, %v1084
        %1164 = vst.msk [vmem:[#allocation3 + $0x1a0] sm:$0xff] %vm504, %v1086
        %1165 = vst.msk [vmem:[#allocation3 + $0x1b8] sm:$0xff] %vm504, %v1088
        %1166 = vst.msk [vmem:[#allocation3 + $0x1d0] sm:$0xff] %vm504, %v1090
        %1167 = vst.msk [vmem:[#allocation3 + $0x1e8] sm:$0xff] %vm504, %v1092
        %1168 = vst.msk [vmem:[#allocation3 + $0x200] sm:$0xff] %vm504, %v1094
        %1169 = vst.msk [vmem:[#allocation3 + $0x218] sm:$0xff] %vm504, %v1096
        %1170 = vst.msk [vmem:[#allocation3 + $0x230] sm:$0xff] %vm504, %v1098
        %1171 = vst.msk [vmem:[#allocation3 + $0x248] sm:$0xff] %vm504, %v1100
        %1172 = vst.msk [vmem:[#allocation3 + $0x260] sm:$0xff] %vm504, %v1102
        %1173 = vst.msk [vmem:[#allocation3 + $0x278] sm:$0xff] %vm504, %v1104
        %1174 = vst.msk [vmem:[#allocation3 + $0x290] sm:$0xff] %vm504, %v1106
        %1175 = vst.msk [vmem:[#allocation3 + $0x2a8] sm:$0xff] %vm504, %v1108
        %1176 = vst.msk [vmem:[#allocation3 + $0x2c0] sm:$0xff] %vm504, %v1110
        %1177 = vst.msk [vmem:[#allocation3 + $0x2d8] sm:$0xff] %vm504, %v1112
        %1178 = vst.msk [vmem:[#allocation3 + $0x2f0] sm:$0xff] %vm504, %v1114
        %s1179 = scalar_lea.vmem [#allocation2], 48
        %v1180 = vld [vmem:[%s1179] sm:$0xff]
        %v1181 = vld [vmem:[%s1179 + $0x8] sm:$0xff]
        %v1182 = vld [vmem:[%s1179 + $0x18] sm:$0xff]
        %v1183 = vld [vmem:[%s1179 + $0x20] sm:$0xff]
        %v1184 = vld [vmem:[%s1179 + $0x30] sm:$0xff]
        %v1185 = vld [vmem:[%s1179 + $0x38] sm:$0xff]
        %v1186 = vld [vmem:[%s1179 + $0x48] sm:$0xff]
        %v1187 = vld [vmem:[%s1179 + $0x50] sm:$0xff]
        %v1188 = vld [vmem:[%s1179 + $0x60] sm:$0xff]
        %v1189 = vld [vmem:[%s1179 + $0x68] sm:$0xff]
        %v1190 = vld [vmem:[%s1179 + $0x78] sm:$0xff]
        %v1191 = vld [vmem:[%s1179 + $0x80] sm:$0xff]
        %v1192 = vld [vmem:[%s1179 + $0x90] sm:$0xff]
        %v1193 = vld [vmem:[%s1179 + $0x98] sm:$0xff]
        %v1194 = vld [vmem:[%s1179 + $0xa8] sm:$0xff]
        %v1195 = vld [vmem:[%s1179 + $0xb0] sm:$0xff]
        %v1196 = vld [vmem:[%s1179 + $0xc0] sm:$0xff]
        %v1197 = vld [vmem:[%s1179 + $0xc8] sm:$0xff]
        %v1198 = vld [vmem:[%s1179 + $0xd8] sm:$0xff]
        %v1199 = vld [vmem:[%s1179 + $0xe0] sm:$0xff]
        %v1200 = vld [vmem:[%s1179 + $0xf0] sm:$0xff]
        %v1201 = vld [vmem:[%s1179 + $0xf8] sm:$0xff]
        %v1202 = vld [vmem:[%s1179 + $0x108] sm:$0xff]
        %v1203 = vld [vmem:[%s1179 + $0x110] sm:$0xff]
        %v1204 = vld [vmem:[%s1179 + $0x120] sm:$0xff]
        %v1205 = vld [vmem:[%s1179 + $0x128] sm:$0xff]
        %v1206 = vld [vmem:[%s1179 + $0x138] sm:$0xff]
        %v1207 = vld [vmem:[%s1179 + $0x140] sm:$0xff]
        %v1208 = vld [vmem:[%s1179 + $0x150] sm:$0xff]
        %v1209 = vld [vmem:[%s1179 + $0x158] sm:$0xff]
        %v1210 = vld [vmem:[%s1179 + $0x168] sm:$0xff]
        %v1211 = vld [vmem:[%s1179 + $0x170] sm:$0xff]
        %1244 = vrot.lane.b32.xlu0 %v1180, 64
        %v1245 = vpop.permute.xlu0 %1244
        %1246 = vrot.lane.b32.xlu0 %v1181, 64
        %v1247 = vpop.permute.xlu0 %1246
        %1248 = vrot.lane.b32.xlu0 %v1182, 64
        %v1249 = vpop.permute.xlu0 %1248
        %1250 = vrot.lane.b32.xlu0 %v1183, 64
        %v1251 = vpop.permute.xlu0 %1250
        %1252 = vrot.lane.b32.xlu0 %v1184, 64
        %v1253 = vpop.permute.xlu0 %1252
        %1254 = vrot.lane.b32.xlu0 %v1185, 64
        %v1255 = vpop.permute.xlu0 %1254
        %1256 = vrot.lane.b32.xlu0 %v1186, 64
        %v1257 = vpop.permute.xlu0 %1256
        %1258 = vrot.lane.b32.xlu0 %v1187, 64
        %v1259 = vpop.permute.xlu0 %1258
        %1260 = vrot.lane.b32.xlu0 %v1188, 64
        %v1261 = vpop.permute.xlu0 %1260
        %1262 = vrot.lane.b32.xlu0 %v1189, 64
        %v1263 = vpop.permute.xlu0 %1262
        %1264 = vrot.lane.b32.xlu0 %v1190, 64
        %v1265 = vpop.permute.xlu0 %1264
        %1266 = vrot.lane.b32.xlu0 %v1191, 64
        %v1267 = vpop.permute.xlu0 %1266
        %1268 = vrot.lane.b32.xlu0 %v1192, 64
        %v1269 = vpop.permute.xlu0 %1268
        %1270 = vrot.lane.b32.xlu0 %v1193, 64
        %v1271 = vpop.permute.xlu0 %1270
        %1272 = vrot.lane.b32.xlu0 %v1194, 64
        %v1273 = vpop.permute.xlu0 %1272
        %1274 = vrot.lane.b32.xlu0 %v1195, 64
        %v1275 = vpop.permute.xlu0 %1274
        %1276 = vrot.lane.b32.xlu0 %v1196, 64
        %v1277 = vpop.permute.xlu0 %1276
        %1278 = vrot.lane.b32.xlu0 %v1197, 64
        %v1279 = vpop.permute.xlu0 %1278
        %1280 = vrot.lane.b32.xlu0 %v1198, 64
        %v1281 = vpop.permute.xlu0 %1280
        %1282 = vrot.lane.b32.xlu0 %v1199, 64
        %v1283 = vpop.permute.xlu0 %1282
        %1284 = vrot.lane.b32.xlu0 %v1200, 64
        %v1285 = vpop.permute.xlu0 %1284
        %1286 = vrot.lane.b32.xlu0 %v1201, 64
        %v1287 = vpop.permute.xlu0 %1286
        %1288 = vrot.lane.b32.xlu0 %v1202, 64
        %v1289 = vpop.permute.xlu0 %1288
        %1290 = vrot.lane.b32.xlu0 %v1203, 64
        %v1291 = vpop.permute.xlu0 %1290
        %1292 = vrot.lane.b32.xlu0 %v1204, 64
        %v1293 = vpop.permute.xlu0 %1292
        %1294 = vrot.lane.b32.xlu0 %v1205, 64
        %v1295 = vpop.permute.xlu0 %1294
        %1296 = vrot.lane.b32.xlu0 %v1206, 64
        %v1297 = vpop.permute.xlu0 %1296
        %1298 = vrot.lane.b32.xlu0 %v1207, 64
        %v1299 = vpop.permute.xlu0 %1298
        %1300 = vrot.lane.b32.xlu0 %v1208, 64
        %v1301 = vpop.permute.xlu0 %1300
        %1302 = vrot.lane.b32.xlu0 %v1209, 64
        %v1303 = vpop.permute.xlu0 %1302
        %1304 = vrot.lane.b32.xlu0 %v1210, 64
        %v1305 = vpop.permute.xlu0 %1304
        %1306 = vrot.lane.b32.xlu0 %v1211, 64
        %v1307 = vpop.permute.xlu0 %1306
        %1340 = vst.msk [vmem:[#allocation3 + $0x8] sm:$0xff] %vm697, %v1245
        %1341 = vst.msk [vmem:[#allocation3 + $0x20] sm:$0xff] %vm697, %v1247
        %1342 = vst.msk [vmem:[#allocation3 + $0x38] sm:$0xff] %vm697, %v1249
        %1343 = vst.msk [vmem:[#allocation3 + $0x50] sm:$0xff] %vm697, %v1251
        %1344 = vst.msk [vmem:[#allocation3 + $0x68] sm:$0xff] %vm697, %v1253
        %1345 = vst.msk [vmem:[#allocation3 + $0x80] sm:$0xff] %vm697, %v1255
        %1346 = vst.msk [vmem:[#allocation3 + $0x98] sm:$0xff] %vm697, %v1257
        %1347 = vst.msk [vmem:[#allocation3 + $0xb0] sm:$0xff] %vm697, %v1259
        %1348 = vst.msk [vmem:[#allocation3 + $0xc8] sm:$0xff] %vm697, %v1261
        %1349 = vst.msk [vmem:[#allocation3 + $0xe0] sm:$0xff] %vm697, %v1263
        %1350 = vst.msk [vmem:[#allocation3 + $0xf8] sm:$0xff] %vm697, %v1265
        %1351 = vst.msk [vmem:[#allocation3 + $0x110] sm:$0xff] %vm697, %v1267
        %1352 = vst.msk [vmem:[#allocation3 + $0x128] sm:$0xff] %vm697, %v1269
        %1353 = vst.msk [vmem:[#allocation3 + $0x140] sm:$0xff] %vm697, %v1271
        %1354 = vst.msk [vmem:[#allocation3 + $0x158] sm:$0xff] %vm697, %v1273
        %1355 = vst.msk [vmem:[#allocation3 + $0x170] sm:$0xff] %vm697, %v1275
        %1356 = vst.msk [vmem:[#allocation3 + $0x188] sm:$0xff] %vm697, %v1277
        %1357 = vst.msk [vmem:[#allocation3 + $0x1a0] sm:$0xff] %vm697, %v1279
        %1358 = vst.msk [vmem:[#allocation3 + $0x1b8] sm:$0xff] %vm697, %v1281
        %1359 = vst.msk [vmem:[#allocation3 + $0x1d0] sm:$0xff] %vm697, %v1283
        %1360 = vst.msk [vmem:[#allocation3 + $0x1e8] sm:$0xff] %vm697, %v1285
        %1361 = vst.msk [vmem:[#allocation3 + $0x200] sm:$0xff] %vm697, %v1287
        %1362 = vst.msk [vmem:[#allocation3 + $0x218] sm:$0xff] %vm697, %v1289
        %1363 = vst.msk [vmem:[#allocation3 + $0x230] sm:$0xff] %vm697, %v1291
        %1364 = vst.msk [vmem:[#allocation3 + $0x248] sm:$0xff] %vm697, %v1293
        %1365 = vst.msk [vmem:[#allocation3 + $0x260] sm:$0xff] %vm697, %v1295
        %1366 = vst.msk [vmem:[#allocation3 + $0x278] sm:$0xff] %vm697, %v1297
        %1367 = vst.msk [vmem:[#allocation3 + $0x290] sm:$0xff] %vm697, %v1299
        %1368 = vst.msk [vmem:[#allocation3 + $0x2a8] sm:$0xff] %vm697, %v1301
        %1369 = vst.msk [vmem:[#allocation3 + $0x2c0] sm:$0xff] %vm697, %v1303
        %1370 = vst.msk [vmem:[#allocation3 + $0x2d8] sm:$0xff] %vm697, %v1305
        %1371 = vst.msk [vmem:[#allocation3 + $0x2f0] sm:$0xff] %vm697, %v1307
        %v1372 = vld [vmem:[%s1179 + $0x1] sm:$0xff]
        %v1373 = vld [vmem:[%s1179 + $0x9] sm:$0xff]
        %v1374 = vld [vmem:[%s1179 + $0x19] sm:$0xff]
        %v1375 = vld [vmem:[%s1179 + $0x21] sm:$0xff]
        %v1376 = vld [vmem:[%s1179 + $0x31] sm:$0xff]
        %v1377 = vld [vmem:[%s1179 + $0x39] sm:$0xff]
        %v1378 = vld [vmem:[%s1179 + $0x49] sm:$0xff]
        %v1379 = vld [vmem:[%s1179 + $0x51] sm:$0xff]
        %v1380 = vld [vmem:[%s1179 + $0x61] sm:$0xff]
        %v1381 = vld [vmem:[%s1179 + $0x69] sm:$0xff]
        %v1382 = vld [vmem:[%s1179 + $0x79] sm:$0xff]
        %v1383 = vld [vmem:[%s1179 + $0x81] sm:$0xff]
        %v1384 = vld [vmem:[%s1179 + $0x91] sm:$0xff]
        %v1385 = vld [vmem:[%s1179 + $0x99] sm:$0xff]
        %v1386 = vld [vmem:[%s1179 + $0xa9] sm:$0xff]
        %v1387 = vld [vmem:[%s1179 + $0xb1] sm:$0xff]
        %v1388 = vld [vmem:[%s1179 + $0xc1] sm:$0xff]
        %v1389 = vld [vmem:[%s1179 + $0xc9] sm:$0xff]
        %v1390 = vld [vmem:[%s1179 + $0xd9] sm:$0xff]
        %v1391 = vld [vmem:[%s1179 + $0xe1] sm:$0xff]
        %v1392 = vld [vmem:[%s1179 + $0xf1] sm:$0xff]
        %v1393 = vld [vmem:[%s1179 + $0xf9] sm:$0xff]
        %v1394 = vld [vmem:[%s1179 + $0x109] sm:$0xff]
        %v1395 = vld [vmem:[%s1179 + $0x111] sm:$0xff]
        %v1396 = vld [vmem:[%s1179 + $0x121] sm:$0xff]
        %v1397 = vld [vmem:[%s1179 + $0x129] sm:$0xff]
        %v1398 = vld [vmem:[%s1179 + $0x139] sm:$0xff]
        %v1399 = vld [vmem:[%s1179 + $0x141] sm:$0xff]
        %v1400 = vld [vmem:[%s1179 + $0x151] sm:$0xff]
        %v1401 = vld [vmem:[%s1179 + $0x159] sm:$0xff]
        %v1402 = vld [vmem:[%s1179 + $0x169] sm:$0xff]
        %v1403 = vld [vmem:[%s1179 + $0x171] sm:$0xff]
        %1436 = vrot.lane.b32.xlu0 %v1372, 96
        %v1437 = vpop.permute.xlu0 %1436
        %1438 = vrot.lane.b32.xlu0 %v1373, 96
        %v1439 = vpop.permute.xlu0 %1438
        %1440 = vrot.lane.b32.xlu0 %v1374, 96
        %v1441 = vpop.permute.xlu0 %1440
        %1442 = vrot.lane.b32.xlu0 %v1375, 96
        %v1443 = vpop.permute.xlu0 %1442
        %1444 = vrot.lane.b32.xlu0 %v1376, 96
        %v1445 = vpop.permute.xlu0 %1444
        %1446 = vrot.lane.b32.xlu0 %v1377, 96
        %v1447 = vpop.permute.xlu0 %1446
        %1448 = vrot.lane.b32.xlu0 %v1378, 96
        %v1449 = vpop.permute.xlu0 %1448
        %1450 = vrot.lane.b32.xlu0 %v1379, 96
        %v1451 = vpop.permute.xlu0 %1450
        %1452 = vrot.lane.b32.xlu0 %v1380, 96
        %v1453 = vpop.permute.xlu0 %1452
        %1454 = vrot.lane.b32.xlu0 %v1381, 96
        %v1455 = vpop.permute.xlu0 %1454
        %1456 = vrot.lane.b32.xlu0 %v1382, 96
        %v1457 = vpop.permute.xlu0 %1456
        %1458 = vrot.lane.b32.xlu0 %v1383, 96
        %v1459 = vpop.permute.xlu0 %1458
        %1460 = vrot.lane.b32.xlu0 %v1384, 96
        %v1461 = vpop.permute.xlu0 %1460
        %1462 = vrot.lane.b32.xlu0 %v1385, 96
        %v1463 = vpop.permute.xlu0 %1462
        %1464 = vrot.lane.b32.xlu0 %v1386, 96
        %v1465 = vpop.permute.xlu0 %1464
        %1466 = vrot.lane.b32.xlu0 %v1387, 96
        %v1467 = vpop.permute.xlu0 %1466
        %1468 = vrot.lane.b32.xlu0 %v1388, 96
        %v1469 = vpop.permute.xlu0 %1468
        %1470 = vrot.lane.b32.xlu0 %v1389, 96
        %v1471 = vpop.permute.xlu0 %1470
        %1472 = vrot.lane.b32.xlu0 %v1390, 96
        %v1473 = vpop.permute.xlu0 %1472
        %1474 = vrot.lane.b32.xlu0 %v1391, 96
        %v1475 = vpop.permute.xlu0 %1474
        %1476 = vrot.lane.b32.xlu0 %v1392, 96
        %v1477 = vpop.permute.xlu0 %1476
        %1478 = vrot.lane.b32.xlu0 %v1393, 96
        %v1479 = vpop.permute.xlu0 %1478
        %1480 = vrot.lane.b32.xlu0 %v1394, 96
        %v1481 = vpop.permute.xlu0 %1480
        %1482 = vrot.lane.b32.xlu0 %v1395, 96
        %v1483 = vpop.permute.xlu0 %1482
        %1484 = vrot.lane.b32.xlu0 %v1396, 96
        %v1485 = vpop.permute.xlu0 %1484
        %1486 = vrot.lane.b32.xlu0 %v1397, 96
        %v1487 = vpop.permute.xlu0 %1486
        %1488 = vrot.lane.b32.xlu0 %v1398, 96
        %v1489 = vpop.permute.xlu0 %1488
        %1490 = vrot.lane.b32.xlu0 %v1399, 96
        %v1491 = vpop.permute.xlu0 %1490
        %1492 = vrot.lane.b32.xlu0 %v1400, 96
        %v1493 = vpop.permute.xlu0 %1492
        %1494 = vrot.lane.b32.xlu0 %v1401, 96
        %v1495 = vpop.permute.xlu0 %1494
        %1496 = vrot.lane.b32.xlu0 %v1402, 96
        %v1497 = vpop.permute.xlu0 %1496
        %1498 = vrot.lane.b32.xlu0 %v1403, 96
        %v1499 = vpop.permute.xlu0 %1498
        %1532 = vst.msk [vmem:[#allocation3 + $0x8] sm:$0xff] %vm890, %v1437
        %1533 = vst.msk [vmem:[#allocation3 + $0x20] sm:$0xff] %vm890, %v1439
        %1534 = vst.msk [vmem:[#allocation3 + $0x38] sm:$0xff] %vm890, %v1441
        %1535 = vst.msk [vmem:[#allocation3 + $0x50] sm:$0xff] %vm890, %v1443
        %1536 = vst.msk [vmem:[#allocation3 + $0x68] sm:$0xff] %vm890, %v1445
        %1537 = vst.msk [vmem:[#allocation3 + $0x80] sm:$0xff] %vm890, %v1447
        %1538 = vst.msk [vmem:[#allocation3 + $0x98] sm:$0xff] %vm890, %v1449
        %1539 = vst.msk [vmem:[#allocation3 + $0xb0] sm:$0xff] %vm890, %v1451
        %1540 = vst.msk [vmem:[#allocation3 + $0xc8] sm:$0xff] %vm890, %v1453
        %1541 = vst.msk [vmem:[#allocation3 + $0xe0] sm:$0xff] %vm890, %v1455
        %1542 = vst.msk [vmem:[#allocation3 + $0xf8] sm:$0xff] %vm890, %v1457
        %1543 = vst.msk [vmem:[#allocation3 + $0x110] sm:$0xff] %vm890, %v1459
        %1544 = vst.msk [vmem:[#allocation3 + $0x128] sm:$0xff] %vm890, %v1461
        %1545 = vst.msk [vmem:[#allocation3 + $0x140] sm:$0xff] %vm890, %v1463
        %1546 = vst.msk [vmem:[#allocation3 + $0x158] sm:$0xff] %vm890, %v1465
        %1547 = vst.msk [vmem:[#allocation3 + $0x170] sm:$0xff] %vm890, %v1467
        %1548 = vst.msk [vmem:[#allocation3 + $0x188] sm:$0xff] %vm890, %v1469
        %1549 = vst.msk [vmem:[#allocation3 + $0x1a0] sm:$0xff] %vm890, %v1471
        %1550 = vst.msk [vmem:[#allocation3 + $0x1b8] sm:$0xff] %vm890, %v1473
        %1551 = vst.msk [vmem:[#allocation3 + $0x1d0] sm:$0xff] %vm890, %v1475
        %1552 = vst.msk [vmem:[#allocation3 + $0x1e8] sm:$0xff] %vm890, %v1477
        %1553 = vst.msk [vmem:[#allocation3 + $0x200] sm:$0xff] %vm890, %v1479
        %1554 = vst.msk [vmem:[#allocation3 + $0x218] sm:$0xff] %vm890, %v1481
        %1555 = vst.msk [vmem:[#allocation3 + $0x230] sm:$0xff] %vm890, %v1483
        %1556 = vst.msk [vmem:[#allocation3 + $0x248] sm:$0xff] %vm890, %v1485
        %1557 = vst.msk [vmem:[#allocation3 + $0x260] sm:$0xff] %vm890, %v1487
        %1558 = vst.msk [vmem:[#allocation3 + $0x278] sm:$0xff] %vm890, %v1489
        %1559 = vst.msk [vmem:[#allocation3 + $0x290] sm:$0xff] %vm890, %v1491
        %1560 = vst.msk [vmem:[#allocation3 + $0x2a8] sm:$0xff] %vm890, %v1493
        %1561 = vst.msk [vmem:[#allocation3 + $0x2c0] sm:$0xff] %vm890, %v1495
        %1562 = vst.msk [vmem:[#allocation3 + $0x2d8] sm:$0xff] %vm890, %v1497
        %1563 = vst.msk [vmem:[#allocation3 + $0x2f0] sm:$0xff] %vm890, %v1499
        %v1564 = vld [vmem:[%s1179 + $0x2] sm:$0xff]
        %v1565 = vld [vmem:[%s1179 + $0xa] sm:$0xff]
        %v1566 = vld [vmem:[%s1179 + $0x1a] sm:$0xff]
        %v1567 = vld [vmem:[%s1179 + $0x22] sm:$0xff]
        %v1568 = vld [vmem:[%s1179 + $0x32] sm:$0xff]
        %v1569 = vld [vmem:[%s1179 + $0x3a] sm:$0xff]
        %v1570 = vld [vmem:[%s1179 + $0x4a] sm:$0xff]
        %v1571 = vld [vmem:[%s1179 + $0x52] sm:$0xff]
        %v1572 = vld [vmem:[%s1179 + $0x62] sm:$0xff]
        %v1573 = vld [vmem:[%s1179 + $0x6a] sm:$0xff]
        %v1574 = vld [vmem:[%s1179 + $0x7a] sm:$0xff]
        %v1575 = vld [vmem:[%s1179 + $0x82] sm:$0xff]
        %v1576 = vld [vmem:[%s1179 + $0x92] sm:$0xff]
        %v1577 = vld [vmem:[%s1179 + $0x9a] sm:$0xff]
        %v1578 = vld [vmem:[%s1179 + $0xaa] sm:$0xff]
        %v1579 = vld [vmem:[%s1179 + $0xb2] sm:$0xff]
        %v1580 = vld [vmem:[%s1179 + $0xc2] sm:$0xff]
        %v1581 = vld [vmem:[%s1179 + $0xca] sm:$0xff]
        %v1582 = vld [vmem:[%s1179 + $0xda] sm:$0xff]
        %v1583 = vld [vmem:[%s1179 + $0xe2] sm:$0xff]
        %v1584 = vld [vmem:[%s1179 + $0xf2] sm:$0xff]
        %v1585 = vld [vmem:[%s1179 + $0xfa] sm:$0xff]
        %v1586 = vld [vmem:[%s1179 + $0x10a] sm:$0xff]
        %v1587 = vld [vmem:[%s1179 + $0x112] sm:$0xff]
        %v1588 = vld [vmem:[%s1179 + $0x122] sm:$0xff]
        %v1589 = vld [vmem:[%s1179 + $0x12a] sm:$0xff]
        %v1590 = vld [vmem:[%s1179 + $0x13a] sm:$0xff]
        %v1591 = vld [vmem:[%s1179 + $0x142] sm:$0xff]
        %v1592 = vld [vmem:[%s1179 + $0x152] sm:$0xff]
        %v1593 = vld [vmem:[%s1179 + $0x15a] sm:$0xff]
        %v1594 = vld [vmem:[%s1179 + $0x16a] sm:$0xff]
        %v1595 = vld [vmem:[%s1179 + $0x172] sm:$0xff]
        %1596 = vst.msk [vmem:[#allocation3 + $0x10] sm:$0xff] %vm169, %v1564
        %1597 = vst.msk [vmem:[#allocation3 + $0x28] sm:$0xff] %vm169, %v1565
        %1598 = vst.msk [vmem:[#allocation3 + $0x40] sm:$0xff] %vm169, %v1566
        %1599 = vst.msk [vmem:[#allocation3 + $0x58] sm:$0xff] %vm169, %v1567
        %1600 = vst.msk [vmem:[#allocation3 + $0x70] sm:$0xff] %vm169, %v1568
        %1601 = vst.msk [vmem:[#allocation3 + $0x88] sm:$0xff] %vm169, %v1569
        %1602 = vst.msk [vmem:[#allocation3 + $0xa0] sm:$0xff] %vm169, %v1570
        %1603 = vst.msk [vmem:[#allocation3 + $0xb8] sm:$0xff] %vm169, %v1571
        %1604 = vst.msk [vmem:[#allocation3 + $0xd0] sm:$0xff] %vm169, %v1572
        %1605 = vst.msk [vmem:[#allocation3 + $0xe8] sm:$0xff] %vm169, %v1573
        %1606 = vst.msk [vmem:[#allocation3 + $0x100] sm:$0xff] %vm169, %v1574
        %1607 = vst.msk [vmem:[#allocation3 + $0x118] sm:$0xff] %vm169, %v1575
        %1608 = vst.msk [vmem:[#allocation3 + $0x130] sm:$0xff] %vm169, %v1576
        %1609 = vst.msk [vmem:[#allocation3 + $0x148] sm:$0xff] %vm169, %v1577
        %1610 = vst.msk [vmem:[#allocation3 + $0x160] sm:$0xff] %vm169, %v1578
        %1611 = vst.msk [vmem:[#allocation3 + $0x178] sm:$0xff] %vm169, %v1579
        %1612 = vst.msk [vmem:[#allocation3 + $0x190] sm:$0xff] %vm169, %v1580
        %1613 = vst.msk [vmem:[#allocation3 + $0x1a8] sm:$0xff] %vm169, %v1581
        %1614 = vst.msk [vmem:[#allocation3 + $0x1c0] sm:$0xff] %vm169, %v1582
        %1615 = vst.msk [vmem:[#allocation3 + $0x1d8] sm:$0xff] %vm169, %v1583
        %1616 = vst.msk [vmem:[#allocation3 + $0x1f0] sm:$0xff] %vm169, %v1584
        %1617 = vst.msk [vmem:[#allocation3 + $0x208] sm:$0xff] %vm169, %v1585
        %1618 = vst.msk [vmem:[#allocation3 + $0x220] sm:$0xff] %vm169, %v1586
        %1619 = vst.msk [vmem:[#allocation3 + $0x238] sm:$0xff] %vm169, %v1587
        %1620 = vst.msk [vmem:[#allocation3 + $0x250] sm:$0xff] %vm169, %v1588
        %1621 = vst.msk [vmem:[#allocation3 + $0x268] sm:$0xff] %vm169, %v1589
        %1622 = vst.msk [vmem:[#allocation3 + $0x280] sm:$0xff] %vm169, %v1590
        %1623 = vst.msk [vmem:[#allocation3 + $0x298] sm:$0xff] %vm169, %v1591
        %1624 = vst.msk [vmem:[#allocation3 + $0x2b0] sm:$0xff] %vm169, %v1592
        %1625 = vst.msk [vmem:[#allocation3 + $0x2c8] sm:$0xff] %vm169, %v1593
        %1626 = vst.msk [vmem:[#allocation3 + $0x2e0] sm:$0xff] %vm169, %v1594
        %1627 = vst.msk [vmem:[#allocation3 + $0x2f8] sm:$0xff] %vm169, %v1595
        %v1628 = vld [vmem:[#allocation3] sm:$0xff]
        %v1629 = vld [vmem:[#allocation3 + $0x8] sm:$0xff]
        %v1630 = vld [vmem:[#allocation3 + $0x10] sm:$0xff]
        %v1631 = vld [vmem:[#allocation3 + $0x18] sm:$0xff]
        %v1632 = vld [vmem:[#allocation3 + $0x20] sm:$0xff]
        %v1633 = vld [vmem:[#allocation3 + $0x28] sm:$0xff]
        %v1634 = vld [vmem:[#allocation3 + $0x30] sm:$0xff]
        %v1635 = vld [vmem:[#allocation3 + $0x38] sm:$0xff]
        %v1636 = vld [vmem:[#allocation3 + $0x40] sm:$0xff]
        %v1637 = vld [vmem:[#allocation3 + $0x48] sm:$0xff]
        %v1638 = vld [vmem:[#allocation3 + $0x50] sm:$0xff]
        %v1639 = vld [vmem:[#allocation3 + $0x58] sm:$0xff]
        %v1640 = vld [vmem:[#allocation3 + $0x60] sm:$0xff]
        %v1641 = vld [vmem:[#allocation3 + $0x68] sm:$0xff]
        %v1642 = vld [vmem:[#allocation3 + $0x70] sm:$0xff]
        %v1643 = vld [vmem:[#allocation3 + $0x78] sm:$0xff]
        %v1644 = vld [vmem:[#allocation3 + $0x80] sm:$0xff]
        %v1645 = vld [vmem:[#allocation3 + $0x88] sm:$0xff]
        %v1646 = vld [vmem:[#allocation3 + $0x90] sm:$0xff]
        %v1647 = vld [vmem:[#allocation3 + $0x98] sm:$0xff]
        %v1648 = vld [vmem:[#allocation3 + $0xa0] sm:$0xff]
        %v1649 = vld [vmem:[#allocation3 + $0xa8] sm:$0xff]
        %v1650 = vld [vmem:[#allocation3 + $0xb0] sm:$0xff]
        %v1651 = vld [vmem:[#allocation3 + $0xb8] sm:$0xff]
        %v1652 = vld [vmem:[#allocation3 + $0xc0] sm:$0xff]
        %v1653 = vld [vmem:[#allocation3 + $0xc8] sm:$0xff]
        %v1654 = vld [vmem:[#allocation3 + $0xd0] sm:$0xff]
        %v1655 = vld [vmem:[#allocation3 + $0xd8] sm:$0xff]
        %v1656 = vld [vmem:[#allocation3 + $0xe0] sm:$0xff]
        %v1657 = vld [vmem:[#allocation3 + $0xe8] sm:$0xff]
        %v1658 = vld [vmem:[#allocation3 + $0xf0] sm:$0xff]
        %v1659 = vld [vmem:[#allocation3 + $0xf8] sm:$0xff]
        %v1660 = vld [vmem:[#allocation3 + $0x100] sm:$0xff]
        %v1661 = vld [vmem:[#allocation3 + $0x108] sm:$0xff]
        %v1662 = vld [vmem:[#allocation3 + $0x110] sm:$0xff]
        %v1663 = vld [vmem:[#allocation3 + $0x118] sm:$0xff]
        %v1664 = vld [vmem:[#allocation3 + $0x120] sm:$0xff]
        %v1665 = vld [vmem:[#allocation3 + $0x128] sm:$0xff]
        %v1666 = vld [vmem:[#allocation3 + $0x130] sm:$0xff]
        %v1667 = vld [vmem:[#allocation3 + $0x138] sm:$0xff]
        %v1668 = vld [vmem:[#allocation3 + $0x140] sm:$0xff]
        %v1669 = vld [vmem:[#allocation3 + $0x148] sm:$0xff]
        %v1670 = vld [vmem:[#allocation3 + $0x150] sm:$0xff]
        %v1671 = vld [vmem:[#allocation3 + $0x158] sm:$0xff]
        %v1672 = vld [vmem:[#allocation3 + $0x160] sm:$0xff]
        %v1673 = vld [vmem:[#allocation3 + $0x168] sm:$0xff]
        %v1674 = vld [vmem:[#allocation3 + $0x170] sm:$0xff]
        %v1675 = vld [vmem:[#allocation3 + $0x178] sm:$0xff]
        %v1676 = vld [vmem:[#allocation3 + $0x180] sm:$0xff]
        %v1677 = vld [vmem:[#allocation3 + $0x188] sm:$0xff]
        %v1678 = vld [vmem:[#allocation3 + $0x190] sm:$0xff]
        %v1679 = vld [vmem:[#allocation3 + $0x198] sm:$0xff]
        %v1680 = vld [vmem:[#allocation3 + $0x1a0] sm:$0xff]
        %v1681 = vld [vmem:[#allocation3 + $0x1a8] sm:$0xff]
        %v1682 = vld [vmem:[#allocation3 + $0x1b0] sm:$0xff]
        %v1683 = vld [vmem:[#allocation3 + $0x1b8] sm:$0xff]
        %v1684 = vld [vmem:[#allocation3 + $0x1c0] sm:$0xff]
        %v1685 = vld [vmem:[#allocation3 + $0x1c8] sm:$0xff]
        %v1686 = vld [vmem:[#allocation3 + $0x1d0] sm:$0xff]
        %v1687 = vld [vmem:[#allocation3 + $0x1d8] sm:$0xff]
        %v1688 = vld [vmem:[#allocation3 + $0x1e0] sm:$0xff]
        %v1689 = vld [vmem:[#allocation3 + $0x1e8] sm:$0xff]
        %v1690 = vld [vmem:[#allocation3 + $0x1f0] sm:$0xff]
        %v1691 = vld [vmem:[#allocation3 + $0x1f8] sm:$0xff]
        %v1692 = vld [vmem:[#allocation3 + $0x200] sm:$0xff]
        %v1693 = vld [vmem:[#allocation3 + $0x208] sm:$0xff]
        %v1694 = vld [vmem:[#allocation3 + $0x210] sm:$0xff]
        %v1695 = vld [vmem:[#allocation3 + $0x218] sm:$0xff]
        %v1696 = vld [vmem:[#allocation3 + $0x220] sm:$0xff]
        %v1697 = vld [vmem:[#allocation3 + $0x228] sm:$0xff]
        %v1698 = vld [vmem:[#allocation3 + $0x230] sm:$0xff]
        %v1699 = vld [vmem:[#allocation3 + $0x238] sm:$0xff]
        %v1700 = vld [vmem:[#allocation3 + $0x240] sm:$0xff]
        %v1701 = vld [vmem:[#allocation3 + $0x248] sm:$0xff]
        %v1702 = vld [vmem:[#allocation3 + $0x250] sm:$0xff]
        %v1703 = vld [vmem:[#allocation3 + $0x258] sm:$0xff]
        %v1704 = vld [vmem:[#allocation3 + $0x260] sm:$0xff]
        %v1705 = vld [vmem:[#allocation3 + $0x268] sm:$0xff]
        %v1706 = vld [vmem:[#allocation3 + $0x270] sm:$0xff]
        %v1707 = vld [vmem:[#allocation3 + $0x278] sm:$0xff]
        %v1708 = vld [vmem:[#allocation3 + $0x280] sm:$0xff]
        %v1709 = vld [vmem:[#allocation3 + $0x288] sm:$0xff]
        %v1710 = vld [vmem:[#allocation3 + $0x290] sm:$0xff]
        %v1711 = vld [vmem:[#allocation3 + $0x298] sm:$0xff]
        %v1712 = vld [vmem:[#allocation3 + $0x2a0] sm:$0xff]
        %v1713 = vld [vmem:[#allocation3 + $0x2a8] sm:$0xff]
        %v1714 = vld [vmem:[#allocation3 + $0x2b0] sm:$0xff]
        %v1715 = vld [vmem:[#allocation3 + $0x2b8] sm:$0xff]
        %v1716 = vld [vmem:[#allocation3 + $0x2c0] sm:$0xff]
        %v1717 = vld [vmem:[#allocation3 + $0x2c8] sm:$0xff]
        %v1718 = vld [vmem:[#allocation3 + $0x2d0] sm:$0xff]
        %v1719 = vld [vmem:[#allocation3 + $0x2d8] sm:$0xff]
        %v1720 = vld [vmem:[#allocation3 + $0x2e0] sm:$0xff]
        %v1721 = vld [vmem:[#allocation3 + $0x2e8] sm:$0xff]
        %v1722 = vld [vmem:[#allocation3 + $0x2f0] sm:$0xff]
        %v1723 = vld [vmem:[#allocation3 + $0x2f8] sm:$0xff]
        %v1724 = vld [vmem:[%s1] sm:$0xff]
        %v1725 = vld [vmem:[%s1 + $0x8] sm:$0xff]
        %v1726 = vld [vmem:[%s1 + $0x10] sm:$0xff]
        %v1727 = vld [vmem:[%s1 + $0x18] sm:$0xff]
        %v1728 = vld [vmem:[%s1 + $0x20] sm:$0xff]
        %v1729 = vld [vmem:[%s1 + $0x28] sm:$0xff]
        %v1730 = vld [vmem:[%s1 + $0x30] sm:$0xff]
        %v1731 = vld [vmem:[%s1 + $0x38] sm:$0xff]
        %v1732 = vld [vmem:[%s1 + $0x40] sm:$0xff]
        %v1733 = vld [vmem:[%s1 + $0x48] sm:$0xff]
        %v1734 = vld [vmem:[%s1 + $0x50] sm:$0xff]
        %v1735 = vld [vmem:[%s1 + $0x58] sm:$0xff]
        %v1736 = vld [vmem:[%s1 + $0x60] sm:$0xff]
        %v1737 = vld [vmem:[%s1 + $0x68] sm:$0xff]
        %v1738 = vld [vmem:[%s1 + $0x70] sm:$0xff]
        %v1739 = vld [vmem:[%s1 + $0x78] sm:$0xff]
        %v1740 = vld [vmem:[%s1 + $0x80] sm:$0xff]
        %v1741 = vld [vmem:[%s1 + $0x88] sm:$0xff]
        %v1742 = vld [vmem:[%s1 + $0x90] sm:$0xff]
        %v1743 = vld [vmem:[%s1 + $0x98] sm:$0xff]
        %v1744 = vld [vmem:[%s1 + $0xa0] sm:$0xff]
        %v1745 = vld [vmem:[%s1 + $0xa8] sm:$0xff]
        %v1746 = vld [vmem:[%s1 + $0xb0] sm:$0xff]
        %v1747 = vld [vmem:[%s1 + $0xb8] sm:$0xff]
        %v1748 = vld [vmem:[%s1 + $0xc0] sm:$0xff]
        %v1749 = vld [vmem:[%s1 + $0xc8] sm:$0xff]
        %v1750 = vld [vmem:[%s1 + $0xd0] sm:$0xff]
        %v1751 = vld [vmem:[%s1 + $0xd8] sm:$0xff]
        %v1752 = vld [vmem:[%s1 + $0xe0] sm:$0xff]
        %v1753 = vld [vmem:[%s1 + $0xe8] sm:$0xff]
        %v1754 = vld [vmem:[%s1 + $0xf0] sm:$0xff]
        %v1755 = vld [vmem:[%s1 + $0xf8] sm:$0xff]
        %v1756 = vld [vmem:[%s1 + $0x100] sm:$0xff]
        %v1757 = vld [vmem:[%s1 + $0x108] sm:$0xff]
        %v1758 = vld [vmem:[%s1 + $0x110] sm:$0xff]
        %v1759 = vld [vmem:[%s1 + $0x118] sm:$0xff]
        %v1761 = vsel %vm169, %v1630, 0
        %v1764 = vsel %vm169, %v1633, 0
        %v1767 = vsel %vm169, %v1636, 0
        %v1770 = vsel %vm169, %v1639, 0
        %v1773 = vsel %vm169, %v1642, 0
        %v1776 = vsel %vm169, %v1645, 0
        %v1779 = vsel %vm169, %v1648, 0
        %v1782 = vsel %vm169, %v1651, 0
        %v1785 = vsel %vm169, %v1654, 0
        %v1788 = vsel %vm169, %v1657, 0
        %v1791 = vsel %vm169, %v1660, 0
        %v1794 = vsel %vm169, %v1663, 0
        %v1797 = vsel %vm169, %v1666, 0
        %v1800 = vsel %vm169, %v1669, 0
        %v1803 = vsel %vm169, %v1672, 0
        %v1806 = vsel %vm169, %v1675, 0
        %v1809 = vsel %vm169, %v1678, 0
        %v1812 = vsel %vm169, %v1681, 0
        %v1815 = vsel %vm169, %v1684, 0
        %v1818 = vsel %vm169, %v1687, 0
        %v1821 = vsel %vm169, %v1690, 0
        %v1824 = vsel %vm169, %v1693, 0
        %v1827 = vsel %vm169, %v1696, 0
        %v1830 = vsel %vm169, %v1699, 0
        %v1833 = vsel %vm169, %v1702, 0
        %v1836 = vsel %vm169, %v1705, 0
        %v1839 = vsel %vm169, %v1708, 0
        %v1842 = vsel %vm169, %v1711, 0
        %v1845 = vsel %vm169, %v1714, 0
        %v1848 = vsel %vm169, %v1717, 0
        %v1851 = vsel %vm169, %v1720, 0
        %v1854 = vsel %vm169, %v1723, 0
        %1856 = vmatpush.msra.mxu0 %v1739
        %1857 = vmatpush.msra.mxu0 %v1738
        %1858 = vmatpush.msra.mxu0 %v1737
        %1859 = vmatpush.msra.mxu0 %v1736
        %1860 = vmatpush.msra.mxu0 %v1735
        %1861 = vmatpush.msra.mxu0 %v1734
        %1862 = vmatpush.msra.mxu0 %v1733
        %1863 = vmatpush.msra.mxu0 %v1732
        %1864 = vmatpush.msra.mxu0 %v1731
        %1865 = vmatpush.msra.mxu0 %v1730
        %1866 = vmatpush.msra.mxu0 %v1729
        %1867 = vmatpush.msra.mxu0 %v1728
        %1868 = vmatpush.msra.mxu0 %v1727
        %1869 = vmatpush.msra.mxu0 %v1726
        %1870 = vmatpush.msra.mxu0 %v1725
        %1871 = vmatpush.msra.mxu0 %v1724
        %1872 = vmatmul.f32.gmra.mxu0 %v1628
        %v1873 = vpop.f32.mrf.mxu0
        %v1874 = vadd.f32 0.0, %v1873
        %1875 = vmatmul.f32.gmra.mxu0 %v1631
        %v1876 = vpop.f32.mrf.mxu0
        %v1877 = vadd.f32 0.0, %v1876
        %1878 = vmatmul.f32.gmra.mxu0 %v1634
        %v1879 = vpop.f32.mrf.mxu0
        %v1880 = vadd.f32 0.0, %v1879
        %1881 = vmatmul.f32.gmra.mxu0 %v1637
        %v1882 = vpop.f32.mrf.mxu0
        %v1883 = vadd.f32 0.0, %v1882
        %1884 = vmatmul.f32.gmra.mxu0 %v1640
        %v1885 = vpop.f32.mrf.mxu0
        %v1886 = vadd.f32 0.0, %v1885
        %1887 = vmatmul.f32.gmra.mxu0 %v1643
        %v1888 = vpop.f32.mrf.mxu0
        %v1889 = vadd.f32 0.0, %v1888
        %1890 = vmatmul.f32.gmra.mxu0 %v1646
        %v1891 = vpop.f32.mrf.mxu0
        %v1892 = vadd.f32 0.0, %v1891
        %1893 = vmatmul.f32.gmra.mxu0 %v1649
        %v1894 = vpop.f32.mrf.mxu0
        %v1895 = vadd.f32 0.0, %v1894
        %1896 = vmatmul.f32.gmra.mxu0 %v1652
        %v1897 = vpop.f32.mrf.mxu0
        %v1898 = vadd.f32 0.0, %v1897
        %1899 = vmatmul.f32.gmra.mxu0 %v1655
        %v1900 = vpop.f32.mrf.mxu0
        %v1901 = vadd.f32 0.0, %v1900
        %1902 = vmatmul.f32.gmra.mxu0 %v1658
        %v1903 = vpop.f32.mrf.mxu0
        %v1904 = vadd.f32 0.0, %v1903
        %1905 = vmatmul.f32.gmra.mxu0 %v1661
        %v1906 = vpop.f32.mrf.mxu0
        %v1907 = vadd.f32 0.0, %v1906
        %1908 = vmatmul.f32.gmra.mxu0 %v1664
        %v1909 = vpop.f32.mrf.mxu0
        %v1910 = vadd.f32 0.0, %v1909
        %1911 = vmatmul.f32.gmra.mxu0 %v1667
        %v1912 = vpop.f32.mrf.mxu0
        %v1913 = vadd.f32 0.0, %v1912
        %1914 = vmatmul.f32.gmra.mxu0 %v1670
        %v1915 = vpop.f32.mrf.mxu0
        %v1916 = vadd.f32 0.0, %v1915
        %1917 = vmatmul.f32.gmra.mxu0 %v1673
        %v1918 = vpop.f32.mrf.mxu0
        %v1919 = vadd.f32 0.0, %v1918
        %1920 = vmatmul.f32.gmra.mxu0 %v1676
        %v1921 = vpop.f32.mrf.mxu0
        %v1922 = vadd.f32 0.0, %v1921
        %1923 = vmatmul.f32.gmra.mxu0 %v1679
        %v1924 = vpop.f32.mrf.mxu0
        %v1925 = vadd.f32 0.0, %v1924
        %1926 = vmatmul.f32.gmra.mxu0 %v1682
        %v1927 = vpop.f32.mrf.mxu0
        %v1928 = vadd.f32 0.0, %v1927
        %1929 = vmatmul.f32.gmra.mxu0 %v1685
        %v1930 = vpop.f32.mrf.mxu0
        %v1931 = vadd.f32 0.0, %v1930
        %1932 = vmatmul.f32.gmra.mxu0 %v1688
        %v1933 = vpop.f32.mrf.mxu0
        %v1934 = vadd.f32 0.0, %v1933
        %1935 = vmatmul.f32.gmra.mxu0 %v1691
        %v1936 = vpop.f32.mrf.mxu0
        %v1937 = vadd.f32 0.0, %v1936
        %1938 = vmatmul.f32.gmra.mxu0 %v1694
        %v1939 = vpop.f32.mrf.mxu0
        %v1940 = vadd.f32 0.0, %v1939
        %1941 = vmatmul.f32.gmra.mxu0 %v1697
        %v1942 = vpop.f32.mrf.mxu0
        %v1943 = vadd.f32 0.0, %v1942
        %1944 = vmatmul.f32.gmra.mxu0 %v1700
        %v1945 = vpop.f32.mrf.mxu0
        %v1946 = vadd.f32 0.0, %v1945
        %1947 = vmatmul.f32.gmra.mxu0 %v1703
        %v1948 = vpop.f32.mrf.mxu0
        %v1949 = vadd.f32 0.0, %v1948
        %1950 = vmatmul.f32.gmra.mxu0 %v1706
        %v1951 = vpop.f32.mrf.mxu0
        %v1952 = vadd.f32 0.0, %v1951
        %1953 = vmatmul.f32.gmra.mxu0 %v1709
        %v1954 = vpop.f32.mrf.mxu0
        %v1955 = vadd.f32 0.0, %v1954
        %1956 = vmatmul.f32.gmra.mxu0 %v1712
        %v1957 = vpop.f32.mrf.mxu0
        %v1958 = vadd.f32 0.0, %v1957
        %1959 = vmatmul.f32.gmra.mxu0 %v1715
        %v1960 = vpop.f32.mrf.mxu0
        %v1961 = vadd.f32 0.0, %v1960
        %1962 = vmatmul.f32.gmra.mxu0 %v1718
        %v1963 = vpop.f32.mrf.mxu0
        %v1964 = vadd.f32 0.0, %v1963
        %1965 = vmatmul.f32.gmra.mxu0 %v1721
        %v1966 = vpop.f32.mrf.mxu0
        %v1967 = vadd.f32 0.0, %v1966
        %1968 = vdwg.mxu0
        %1969 = vmatpush.msra.mxu0 %v1755
        %1970 = vmatpush.msra.mxu0 %v1754
        %1971 = vmatpush.msra.mxu0 %v1753
        %1972 = vmatpush.msra.mxu0 %v1752
        %1973 = vmatpush.msra.mxu0 %v1751
        %1974 = vmatpush.msra.mxu0 %v1750
        %1975 = vmatpush.msra.mxu0 %v1749
        %1976 = vmatpush.msra.mxu0 %v1748
        %1977 = vmatpush.msra.mxu0 %v1747
        %1978 = vmatpush.msra.mxu0 %v1746
        %1979 = vmatpush.msra.mxu0 %v1745
        %1980 = vmatpush.msra.mxu0 %v1744
        %1981 = vmatpush.msra.mxu0 %v1743
        %1982 = vmatpush.msra.mxu0 %v1742
        %1983 = vmatpush.msra.mxu0 %v1741
        %1984 = vmatpush.msra.mxu0 %v1740
        %1985 = vmatmul.f32.gmra.mxu0 %v1629
        %v1986 = vpop.f32.mrf.mxu0
        %v1987 = vadd.f32 %v1874, %v1986
        %1988 = vmatmul.f32.gmra.mxu0 %v1632
        %v1989 = vpop.f32.mrf.mxu0
        %v1990 = vadd.f32 %v1877, %v1989
        %1991 = vmatmul.f32.gmra.mxu0 %v1635
        %v1992 = vpop.f32.mrf.mxu0
        %v1993 = vadd.f32 %v1880, %v1992
        %1994 = vmatmul.f32.gmra.mxu0 %v1638
        %v1995 = vpop.f32.mrf.mxu0
        %v1996 = vadd.f32 %v1883, %v1995
        %1997 = vmatmul.f32.gmra.mxu0 %v1641
        %v1998 = vpop.f32.mrf.mxu0
        %v1999 = vadd.f32 %v1886, %v1998
        %2000 = vmatmul.f32.gmra.mxu0 %v1644
        %v2001 = vpop.f32.mrf.mxu0
        %v2002 = vadd.f32 %v1889, %v2001
        %2003 = vmatmul.f32.gmra.mxu0 %v1647
        %v2004 = vpop.f32.mrf.mxu0
        %v2005 = vadd.f32 %v1892, %v2004
        %2006 = vmatmul.f32.gmra.mxu0 %v1650
        %v2007 = vpop.f32.mrf.mxu0
        %v2008 = vadd.f32 %v1895, %v2007
        %2009 = vmatmul.f32.gmra.mxu0 %v1653
        %v2010 = vpop.f32.mrf.mxu0
        %v2011 = vadd.f32 %v1898, %v2010
        %2012 = vmatmul.f32.gmra.mxu0 %v1656
        %v2013 = vpop.f32.mrf.mxu0
        %v2014 = vadd.f32 %v1901, %v2013
        %2015 = vmatmul.f32.gmra.mxu0 %v1659
        %v2016 = vpop.f32.mrf.mxu0
        %v2017 = vadd.f32 %v1904, %v2016
        %2018 = vmatmul.f32.gmra.mxu0 %v1662
        %v2019 = vpop.f32.mrf.mxu0
        %v2020 = vadd.f32 %v1907, %v2019
        %2021 = vmatmul.f32.gmra.mxu0 %v1665
        %v2022 = vpop.f32.mrf.mxu0
        %v2023 = vadd.f32 %v1910, %v2022
        %2024 = vmatmul.f32.gmra.mxu0 %v1668
        %v2025 = vpop.f32.mrf.mxu0
        %v2026 = vadd.f32 %v1913, %v2025
        %2027 = vmatmul.f32.gmra.mxu0 %v1671
        %v2028 = vpop.f32.mrf.mxu0
        %v2029 = vadd.f32 %v1916, %v2028
        %2030 = vmatmul.f32.gmra.mxu0 %v1674
        %v2031 = vpop.f32.mrf.mxu0
        %v2032 = vadd.f32 %v1919, %v2031
        %2033 = vmatmul.f32.gmra.mxu0 %v1677
        %v2034 = vpop.f32.mrf.mxu0
        %v2035 = vadd.f32 %v1922, %v2034
        %2036 = vmatmul.f32.gmra.mxu0 %v1680
        %v2037 = vpop.f32.mrf.mxu0
        %v2038 = vadd.f32 %v1925, %v2037
        %2039 = vmatmul.f32.gmra.mxu0 %v1683
        %v2040 = vpop.f32.mrf.mxu0
        %v2041 = vadd.f32 %v1928, %v2040
        %2042 = vmatmul.f32.gmra.mxu0 %v1686
        %v2043 = vpop.f32.mrf.mxu0
        %v2044 = vadd.f32 %v1931, %v2043
        %2045 = vmatmul.f32.gmra.mxu0 %v1689
        %v2046 = vpop.f32.mrf.mxu0
        %v2047 = vadd.f32 %v1934, %v2046
        %2048 = vmatmul.f32.gmra.mxu0 %v1692
        %v2049 = vpop.f32.mrf.mxu0
        %v2050 = vadd.f32 %v1937, %v2049
        %2051 = vmatmul.f32.gmra.mxu0 %v1695
        %v2052 = vpop.f32.mrf.mxu0
        %v2053 = vadd.f32 %v1940, %v2052
        %2054 = vmatmul.f32.gmra.mxu0 %v1698
        %v2055 = vpop.f32.mrf.mxu0
        %v2056 = vadd.f32 %v1943, %v2055
        %2057 = vmatmul.f32.gmra.mxu0 %v1701
        %v2058 = vpop.f32.mrf.mxu0
        %v2059 = vadd.f32 %v1946, %v2058
        %2060 = vmatmul.f32.gmra.mxu0 %v1704
        %v2061 = vpop.f32.mrf.mxu0
        %v2062 = vadd.f32 %v1949, %v2061
        %2063 = vmatmul.f32.gmra.mxu0 %v1707
        %v2064 = vpop.f32.mrf.mxu0
        %v2065 = vadd.f32 %v1952, %v2064
        %2066 = vmatmul.f32.gmra.mxu0 %v1710
        %v2067 = vpop.f32.mrf.mxu0
        %v2068 = vadd.f32 %v1955, %v2067
        %2069 = vmatmul.f32.gmra.mxu0 %v1713
        %v2070 = vpop.f32.mrf.mxu0
        %v2071 = vadd.f32 %v1958, %v2070
        %2072 = vmatmul.f32.gmra.mxu0 %v1716
        %v2073 = vpop.f32.mrf.mxu0
        %v2074 = vadd.f32 %v1961, %v2073
        %2075 = vmatmul.f32.gmra.mxu0 %v1719
        %v2076 = vpop.f32.mrf.mxu0
        %v2077 = vadd.f32 %v1964, %v2076
        %2078 = vmatmul.f32.gmra.mxu0 %v1722
        %v2079 = vpop.f32.mrf.mxu0
        %v2080 = vadd.f32 %v1967, %v2079
        %2081 = vdwg.mxu0
        %2082 = vmatpush.msra.mxu0 0.0
        %2083 = vmatpush.msra.mxu0 0.0
        %2084 = vmatpush.msra.mxu0 0.0
        %2085 = vmatpush.msra.mxu0 0.0
        %2086 = vmatpush.msra.mxu0 0.0
        %2087 = vmatpush.msra.mxu0 0.0
        %2088 = vmatpush.msra.mxu0 0.0
        %2089 = vmatpush.msra.mxu0 0.0
        %2090 = vmatpush.msra.mxu0 0.0
        %2091 = vmatpush.msra.mxu0 0.0
        %2092 = vmatpush.msra.mxu0 0.0
        %2093 = vmatpush.msra.mxu0 0.0
        %2094 = vmatpush.msra.mxu0 %v1759
        %2095 = vmatpush.msra.mxu0 %v1758
        %2096 = vmatpush.msra.mxu0 %v1757
        %2097 = vmatpush.msra.mxu0 %v1756
        %2098 = vmatmul.f32.gmra.mxu0 %v1761
        %v2099 = vpop.f32.mrf.mxu0
        %v2100 = vadd.f32 %v1987, %v2099
        %2101 = vmatmul.f32.gmra.mxu0 %v1764
        %v2102 = vpop.f32.mrf.mxu0
        %v2103 = vadd.f32 %v1990, %v2102
        %2104 = vmatmul.f32.gmra.mxu0 %v1767
        %v2105 = vpop.f32.mrf.mxu0
        %v2106 = vadd.f32 %v1993, %v2105
        %2107 = vmatmul.f32.gmra.mxu0 %v1770
        %v2108 = vpop.f32.mrf.mxu0
        %v2109 = vadd.f32 %v1996, %v2108
        %2110 = vmatmul.f32.gmra.mxu0 %v1773
        %v2111 = vpop.f32.mrf.mxu0
        %v2112 = vadd.f32 %v1999, %v2111
        %2113 = vmatmul.f32.gmra.mxu0 %v1776
        %v2114 = vpop.f32.mrf.mxu0
        %v2115 = vadd.f32 %v2002, %v2114
        %2116 = vmatmul.f32.gmra.mxu0 %v1779
        %v2117 = vpop.f32.mrf.mxu0
        %v2118 = vadd.f32 %v2005, %v2117
        %2119 = vmatmul.f32.gmra.mxu0 %v1782
        %v2120 = vpop.f32.mrf.mxu0
        %v2121 = vadd.f32 %v2008, %v2120
        %2122 = vmatmul.f32.gmra.mxu0 %v1785
        %v2123 = vpop.f32.mrf.mxu0
        %v2124 = vadd.f32 %v2011, %v2123
        %2125 = vmatmul.f32.gmra.mxu0 %v1788
        %v2126 = vpop.f32.mrf.mxu0
        %v2127 = vadd.f32 %v2014, %v2126
        %2128 = vmatmul.f32.gmra.mxu0 %v1791
        %v2129 = vpop.f32.mrf.mxu0
        %v2130 = vadd.f32 %v2017, %v2129
        %2131 = vmatmul.f32.gmra.mxu0 %v1794
        %v2132 = vpop.f32.mrf.mxu0
        %v2133 = vadd.f32 %v2020, %v2132
        %2134 = vmatmul.f32.gmra.mxu0 %v1797
        %v2135 = vpop.f32.mrf.mxu0
        %v2136 = vadd.f32 %v2023, %v2135
        %2137 = vmatmul.f32.gmra.mxu0 %v1800
        %v2138 = vpop.f32.mrf.mxu0
        %v2139 = vadd.f32 %v2026, %v2138
        %2140 = vmatmul.f32.gmra.mxu0 %v1803
        %v2141 = vpop.f32.mrf.mxu0
        %v2142 = vadd.f32 %v2029, %v2141
        %2143 = vmatmul.f32.gmra.mxu0 %v1806
        %v2144 = vpop.f32.mrf.mxu0
        %v2145 = vadd.f32 %v2032, %v2144
        %2146 = vmatmul.f32.gmra.mxu0 %v1809
        %v2147 = vpop.f32.mrf.mxu0
        %v2148 = vadd.f32 %v2035, %v2147
        %2149 = vmatmul.f32.gmra.mxu0 %v1812
        %v2150 = vpop.f32.mrf.mxu0
        %v2151 = vadd.f32 %v2038, %v2150
        %2152 = vmatmul.f32.gmra.mxu0 %v1815
        %v2153 = vpop.f32.mrf.mxu0
        %v2154 = vadd.f32 %v2041, %v2153
        %2155 = vmatmul.f32.gmra.mxu0 %v1818
        %v2156 = vpop.f32.mrf.mxu0
        %v2157 = vadd.f32 %v2044, %v2156
        %2158 = vmatmul.f32.gmra.mxu0 %v1821
        %v2159 = vpop.f32.mrf.mxu0
        %v2160 = vadd.f32 %v2047, %v2159
        %2161 = vmatmul.f32.gmra.mxu0 %v1824
        %v2162 = vpop.f32.mrf.mxu0
        %v2163 = vadd.f32 %v2050, %v2162
        %2164 = vmatmul.f32.gmra.mxu0 %v1827
        %v2165 = vpop.f32.mrf.mxu0
        %v2166 = vadd.f32 %v2053, %v2165
        %2167 = vmatmul.f32.gmra.mxu0 %v1830
        %v2168 = vpop.f32.mrf.mxu0
        %v2169 = vadd.f32 %v2056, %v2168
        %2170 = vmatmul.f32.gmra.mxu0 %v1833
        %v2171 = vpop.f32.mrf.mxu0
        %v2172 = vadd.f32 %v2059, %v2171
        %2173 = vmatmul.f32.gmra.mxu0 %v1836
        %v2174 = vpop.f32.mrf.mxu0
        %v2175 = vadd.f32 %v2062, %v2174
        %2176 = vmatmul.f32.gmra.mxu0 %v1839
        %v2177 = vpop.f32.mrf.mxu0
        %v2178 = vadd.f32 %v2065, %v2177
        %2179 = vmatmul.f32.gmra.mxu0 %v1842
        %v2180 = vpop.f32.mrf.mxu0
        %v2181 = vadd.f32 %v2068, %v2180
        %2182 = vmatmul.f32.gmra.mxu0 %v1845
        %v2183 = vpop.f32.mrf.mxu0
        %v2184 = vadd.f32 %v2071, %v2183
        %2185 = vmatmul.f32.gmra.mxu0 %v1848
        %v2186 = vpop.f32.mrf.mxu0
        %v2187 = vadd.f32 %v2074, %v2186
        %2188 = vmatmul.f32.gmra.mxu0 %v1851
        %v2189 = vpop.f32.mrf.mxu0
        %v2190 = vadd.f32 %v2077, %v2189
        %2191 = vmatmul.f32.gmra.mxu0 %v1854
        %v2192 = vpop.f32.mrf.mxu0
        %v2193 = vadd.f32 %v2080, %v2192
        %2194 = vdwg.mxu0
        %v2195 = vmax.f32 %v2100, 0.0
        %v2196 = vmax.f32 %v2103, 0.0
        %v2197 = vmax.f32 %v2106, 0.0
        %v2198 = vmax.f32 %v2109, 0.0
        %v2199 = vmax.f32 %v2112, 0.0
        %v2200 = vmax.f32 %v2115, 0.0
        %v2201 = vmax.f32 %v2118, 0.0
        %v2202 = vmax.f32 %v2121, 0.0
        %v2203 = vmax.f32 %v2124, 0.0
        %v2204 = vmax.f32 %v2127, 0.0
        %v2205 = vmax.f32 %v2130, 0.0
        %v2206 = vmax.f32 %v2133, 0.0
        %v2207 = vmax.f32 %v2136, 0.0
        %v2208 = vmax.f32 %v2139, 0.0
        %v2209 = vmax.f32 %v2142, 0.0
        %v2210 = vmax.f32 %v2145, 0.0
        %v2211 = vmax.f32 %v2148, 0.0
        %v2212 = vmax.f32 %v2151, 0.0
        %v2213 = vmax.f32 %v2154, 0.0
        %v2214 = vmax.f32 %v2157, 0.0
        %v2215 = vmax.f32 %v2160, 0.0
        %v2216 = vmax.f32 %v2163, 0.0
        %v2217 = vmax.f32 %v2166, 0.0
        %v2218 = vmax.f32 %v2169, 0.0
        %v2219 = vmax.f32 %v2172, 0.0
        %v2220 = vmax.f32 %v2175, 0.0
        %v2221 = vmax.f32 %v2178, 0.0
        %v2222 = vmax.f32 %v2181, 0.0
        %v2223 = vmax.f32 %v2184, 0.0
        %v2224 = vmax.f32 %v2187, 0.0
        %v2225 = vmax.f32 %v2190, 0.0
        %v2226 = vmax.f32 %v2193, 0.0
        %2227 = vst.msk [vmem:[%s247 + $0x1] sm:$0xff] %vm169, %v2195
        %2228 = vst.msk [vmem:[%s247 + $0x9] sm:$0xff] %vm169, %v2196
        %2229 = vst.msk [vmem:[%s247 + $0x19] sm:$0xff] %vm169, %v2197
        %2230 = vst.msk [vmem:[%s247 + $0x21] sm:$0xff] %vm169, %v2198
        %2231 = vst.msk [vmem:[%s247 + $0x31] sm:$0xff] %vm169, %v2199
        %2232 = vst.msk [vmem:[%s247 + $0x39] sm:$0xff] %vm169, %v2200
        %2233 = vst.msk [vmem:[%s247 + $0x49] sm:$0xff] %vm169, %v2201
        %2234 = vst.msk [vmem:[%s247 + $0x51] sm:$0xff] %vm169, %v2202
        %2235 = vst.msk [vmem:[%s247 + $0x61] sm:$0xff] %vm169, %v2203
        %2236 = vst.msk [vmem:[%s247 + $0x69] sm:$0xff] %vm169, %v2204
        %2237 = vst.msk [vmem:[%s247 + $0x79] sm:$0xff] %vm169, %v2205
        %2238 = vst.msk [vmem:[%s247 + $0x81] sm:$0xff] %vm169, %v2206
        %2239 = vst.msk [vmem:[%s247 + $0x91] sm:$0xff] %vm169, %v2207
        %2240 = vst.msk [vmem:[%s247 + $0x99] sm:$0xff] %vm169, %v2208
        %2241 = vst.msk [vmem:[%s247 + $0xa9] sm:$0xff] %vm169, %v2209
        %2242 = vst.msk [vmem:[%s247 + $0xb1] sm:$0xff] %vm169, %v2210
        %2243 = vst.msk [vmem:[%s247 + $0xc1] sm:$0xff] %vm169, %v2211
        %2244 = vst.msk [vmem:[%s247 + $0xc9] sm:$0xff] %vm169, %v2212
        %2245 = vst.msk [vmem:[%s247 + $0xd9] sm:$0xff] %vm169, %v2213
        %2246 = vst.msk [vmem:[%s247 + $0xe1] sm:$0xff] %vm169, %v2214
        %2247 = vst.msk [vmem:[%s247 + $0xf1] sm:$0xff] %vm169, %v2215
        %2248 = vst.msk [vmem:[%s247 + $0xf9] sm:$0xff] %vm169, %v2216
        %2249 = vst.msk [vmem:[%s247 + $0x109] sm:$0xff] %vm169, %v2217
        %2250 = vst.msk [vmem:[%s247 + $0x111] sm:$0xff] %vm169, %v2218
        %2251 = vst.msk [vmem:[%s247 + $0x121] sm:$0xff] %vm169, %v2219
        %2252 = vst.msk [vmem:[%s247 + $0x129] sm:$0xff] %vm169, %v2220
        %2253 = vst.msk [vmem:[%s247 + $0x139] sm:$0xff] %vm169, %v2221
        %2254 = vst.msk [vmem:[%s247 + $0x141] sm:$0xff] %vm169, %v2222
        %2255 = vst.msk [vmem:[%s247 + $0x151] sm:$0xff] %vm169, %v2223
        %2256 = vst.msk [vmem:[%s247 + $0x159] sm:$0xff] %vm169, %v2224
        %2257 = vst.msk [vmem:[%s247 + $0x169] sm:$0xff] %vm169, %v2225
        %2258 = vst.msk [vmem:[%s247 + $0x171] sm:$0xff] %vm169, %v2226
        %v2259 = vld [vmem:[#allocation2] sm:$0xff]
        %v2260 = vld [vmem:[#allocation2 + $0x8] sm:$0xff]
        %v2261 = vld [vmem:[#allocation2 + $0x18] sm:$0xff]
        %v2262 = vld [vmem:[#allocation2 + $0x20] sm:$0xff]
        %v2263 = vld [vmem:[#allocation2 + $0x30] sm:$0xff]
        %v2264 = vld [vmem:[#allocation2 + $0x38] sm:$0xff]
        %v2265 = vld [vmem:[#allocation2 + $0x48] sm:$0xff]
        %v2266 = vld [vmem:[#allocation2 + $0x50] sm:$0xff]
        %v2267 = vld [vmem:[#allocation2 + $0x60] sm:$0xff]
        %v2268 = vld [vmem:[#allocation2 + $0x68] sm:$0xff]
        %v2269 = vld [vmem:[#allocation2 + $0x78] sm:$0xff]
        %v2270 = vld [vmem:[#allocation2 + $0x80] sm:$0xff]
        %v2271 = vld [vmem:[#allocation2 + $0x90] sm:$0xff]
        %v2272 = vld [vmem:[#allocation2 + $0x98] sm:$0xff]
        %v2273 = vld [vmem:[#allocation2 + $0xa8] sm:$0xff]
        %v2274 = vld [vmem:[#allocation2 + $0xb0] sm:$0xff]
        %v2275 = vld [vmem:[#allocation2 + $0xc0] sm:$0xff]
        %v2276 = vld [vmem:[#allocation2 + $0xc8] sm:$0xff]
        %v2277 = vld [vmem:[#allocation2 + $0xd8] sm:$0xff]
        %v2278 = vld [vmem:[#allocation2 + $0xe0] sm:$0xff]
        %v2279 = vld [vmem:[#allocation2 + $0xf0] sm:$0xff]
        %v2280 = vld [vmem:[#allocation2 + $0xf8] sm:$0xff]
        %v2281 = vld [vmem:[#allocation2 + $0x108] sm:$0xff]
        %v2282 = vld [vmem:[#allocation2 + $0x110] sm:$0xff]
        %v2283 = vld [vmem:[#allocation2 + $0x120] sm:$0xff]
        %v2284 = vld [vmem:[#allocation2 + $0x128] sm:$0xff]
        %v2285 = vld [vmem:[#allocation2 + $0x138] sm:$0xff]
        %v2286 = vld [vmem:[#allocation2 + $0x140] sm:$0xff]
        %v2287 = vld [vmem:[#allocation2 + $0x150] sm:$0xff]
        %v2288 = vld [vmem:[#allocation2 + $0x158] sm:$0xff]
        %v2289 = vld [vmem:[#allocation2 + $0x168] sm:$0xff]
        %v2290 = vld [vmem:[#allocation2 + $0x170] sm:$0xff]
        %2291 = vst.msk [vmem:[#allocation3] sm:$0xff] %vm169, %v2259
        %2292 = vst.msk [vmem:[#allocation3 + $0x18] sm:$0xff] %vm169, %v2260
        %2293 = vst.msk [vmem:[#allocation3 + $0x30] sm:$0xff] %vm169, %v2261
        %2294 = vst.msk [vmem:[#allocation3 + $0x48] sm:$0xff] %vm169, %v2262
        %2295 = vst.msk [vmem:[#allocation3 + $0x60] sm:$0xff] %vm169, %v2263
        %2296 = vst.msk [vmem:[#allocation3 + $0x78] sm:$0xff] %vm169, %v2264
        %2297 = vst.msk [vmem:[#allocation3 + $0x90] sm:$0xff] %vm169, %v2265
        %2298 = vst.msk [vmem:[#allocation3 + $0xa8] sm:$0xff] %vm169, %v2266
        %2299 = vst.msk [vmem:[#allocation3 + $0xc0] sm:$0xff] %vm169, %v2267
        %2300 = vst.msk [vmem:[#allocation3 + $0xd8] sm:$0xff] %vm169, %v2268
        %2301 = vst.msk [vmem:[#allocation3 + $0xf0] sm:$0xff] %vm169, %v2269
        %2302 = vst.msk [vmem:[#allocation3 + $0x108] sm:$0xff] %vm169, %v2270
        %2303 = vst.msk [vmem:[#allocation3 + $0x120] sm:$0xff] %vm169, %v2271
        %2304 = vst.msk [vmem:[#allocation3 + $0x138] sm:$0xff] %vm169, %v2272
        %2305 = vst.msk [vmem:[#allocation3 + $0x150] sm:$0xff] %vm169, %v2273
        %2306 = vst.msk [vmem:[#allocation3 + $0x168] sm:$0xff] %vm169, %v2274
        %2307 = vst.msk [vmem:[#allocation3 + $0x180] sm:$0xff] %vm169, %v2275
        %2308 = vst.msk [vmem:[#allocation3 + $0x198] sm:$0xff] %vm169, %v2276
        %2309 = vst.msk [vmem:[#allocation3 + $0x1b0] sm:$0xff] %vm169, %v2277
        %2310 = vst.msk [vmem:[#allocation3 + $0x1c8] sm:$0xff] %vm169, %v2278
        %2311 = vst.msk [vmem:[#allocation3 + $0x1e0] sm:$0xff] %vm169, %v2279
        %2312 = vst.msk [vmem:[#allocation3 + $0x1f8] sm:$0xff] %vm169, %v2280
        %2313 = vst.msk [vmem:[#allocation3 + $0x210] sm:$0xff] %vm169, %v2281
        %2314 = vst.msk [vmem:[#allocation3 + $0x228] sm:$0xff] %vm169, %v2282
        %2315 = vst.msk [vmem:[#allocation3 + $0x240] sm:$0xff] %vm169, %v2283
        %2316 = vst.msk [vmem:[#allocation3 + $0x258] sm:$0xff] %vm169, %v2284
        %2317 = vst.msk [vmem:[#allocation3 + $0x270] sm:$0xff] %vm169, %v2285
        %2318 = vst.msk [vmem:[#allocation3 + $0x288] sm:$0xff] %vm169, %v2286
        %2319 = vst.msk [vmem:[#allocation3 + $0x2a0] sm:$0xff] %vm169, %v2287
        %2320 = vst.msk [vmem:[#allocation3 + $0x2b8] sm:$0xff] %vm169, %v2288
        %2321 = vst.msk [vmem:[#allocation3 + $0x2d0] sm:$0xff] %vm169, %v2289
        %2322 = vst.msk [vmem:[#allocation3 + $0x2e8] sm:$0xff] %vm169, %v2290
        %v2323 = vld [vmem:[#allocation2 + $0x1] sm:$0xff]
        %v2324 = vld [vmem:[#allocation2 + $0x9] sm:$0xff]
        %v2325 = vld [vmem:[#allocation2 + $0x19] sm:$0xff]
        %v2326 = vld [vmem:[#allocation2 + $0x21] sm:$0xff]
        %v2327 = vld [vmem:[#allocation2 + $0x31] sm:$0xff]
        %v2328 = vld [vmem:[#allocation2 + $0x39] sm:$0xff]
        %v2329 = vld [vmem:[#allocation2 + $0x49] sm:$0xff]
        %v2330 = vld [vmem:[#allocation2 + $0x51] sm:$0xff]
        %v2331 = vld [vmem:[#allocation2 + $0x61] sm:$0xff]
        %v2332 = vld [vmem:[#allocation2 + $0x69] sm:$0xff]
        %v2333 = vld [vmem:[#allocation2 + $0x79] sm:$0xff]
        %v2334 = vld [vmem:[#allocation2 + $0x81] sm:$0xff]
        %v2335 = vld [vmem:[#allocation2 + $0x91] sm:$0xff]
        %v2336 = vld [vmem:[#allocation2 + $0x99] sm:$0xff]
        %v2337 = vld [vmem:[#allocation2 + $0xa9] sm:$0xff]
        %v2338 = vld [vmem:[#allocation2 + $0xb1] sm:$0xff]
        %v2339 = vld [vmem:[#allocation2 + $0xc1] sm:$0xff]
        %v2340 = vld [vmem:[#allocation2 + $0xc9] sm:$0xff]
        %v2341 = vld [vmem:[#allocation2 + $0xd9] sm:$0xff]
        %v2342 = vld [vmem:[#allocation2 + $0xe1] sm:$0xff]
        %v2343 = vld [vmem:[#allocation2 + $0xf1] sm:$0xff]
        %v2344 = vld [vmem:[#allocation2 + $0xf9] sm:$0xff]
        %v2345 = vld [vmem:[#allocation2 + $0x109] sm:$0xff]
        %v2346 = vld [vmem:[#allocation2 + $0x111] sm:$0xff]
        %v2347 = vld [vmem:[#allocation2 + $0x121] sm:$0xff]
        %v2348 = vld [vmem:[#allocation2 + $0x129] sm:$0xff]
        %v2349 = vld [vmem:[#allocation2 + $0x139] sm:$0xff]
        %v2350 = vld [vmem:[#allocation2 + $0x141] sm:$0xff]
        %v2351 = vld [vmem:[#allocation2 + $0x151] sm:$0xff]
        %v2352 = vld [vmem:[#allocation2 + $0x159] sm:$0xff]
        %v2353 = vld [vmem:[#allocation2 + $0x169] sm:$0xff]
        %v2354 = vld [vmem:[#allocation2 + $0x171] sm:$0xff]
        %2387 = vrot.lane.b32.xlu0 %v2323, 32
        %v2388 = vpop.permute.xlu0 %2387
        %2389 = vrot.lane.b32.xlu0 %v2324, 32
        %v2390 = vpop.permute.xlu0 %2389
        %2391 = vrot.lane.b32.xlu0 %v2325, 32
        %v2392 = vpop.permute.xlu0 %2391
        %2393 = vrot.lane.b32.xlu0 %v2326, 32
        %v2394 = vpop.permute.xlu0 %2393
        %2395 = vrot.lane.b32.xlu0 %v2327, 32
        %v2396 = vpop.permute.xlu0 %2395
        %2397 = vrot.lane.b32.xlu0 %v2328, 32
        %v2398 = vpop.permute.xlu0 %2397
        %2399 = vrot.lane.b32.xlu0 %v2329, 32
        %v2400 = vpop.permute.xlu0 %2399
        %2401 = vrot.lane.b32.xlu0 %v2330, 32
        %v2402 = vpop.permute.xlu0 %2401
        %2403 = vrot.lane.b32.xlu0 %v2331, 32
        %v2404 = vpop.permute.xlu0 %2403
        %2405 = vrot.lane.b32.xlu0 %v2332, 32
        %v2406 = vpop.permute.xlu0 %2405
        %2407 = vrot.lane.b32.xlu0 %v2333, 32
        %v2408 = vpop.permute.xlu0 %2407
        %2409 = vrot.lane.b32.xlu0 %v2334, 32
        %v2410 = vpop.permute.xlu0 %2409
        %2411 = vrot.lane.b32.xlu0 %v2335, 32
        %v2412 = vpop.permute.xlu0 %2411
        %2413 = vrot.lane.b32.xlu0 %v2336, 32
        %v2414 = vpop.permute.xlu0 %2413
        %2415 = vrot.lane.b32.xlu0 %v2337, 32
        %v2416 = vpop.permute.xlu0 %2415
        %2417 = vrot.lane.b32.xlu0 %v2338, 32
        %v2418 = vpop.permute.xlu0 %2417
        %2419 = vrot.lane.b32.xlu0 %v2339, 32
        %v2420 = vpop.permute.xlu0 %2419
        %2421 = vrot.lane.b32.xlu0 %v2340, 32
        %v2422 = vpop.permute.xlu0 %2421
        %2423 = vrot.lane.b32.xlu0 %v2341, 32
        %v2424 = vpop.permute.xlu0 %2423
        %2425 = vrot.lane.b32.xlu0 %v2342, 32
        %v2426 = vpop.permute.xlu0 %2425
        %2427 = vrot.lane.b32.xlu0 %v2343, 32
        %v2428 = vpop.permute.xlu0 %2427
        %2429 = vrot.lane.b32.xlu0 %v2344, 32
        %v2430 = vpop.permute.xlu0 %2429
        %2431 = vrot.lane.b32.xlu0 %v2345, 32
        %v2432 = vpop.permute.xlu0 %2431
        %2433 = vrot.lane.b32.xlu0 %v2346, 32
        %v2434 = vpop.permute.xlu0 %2433
        %2435 = vrot.lane.b32.xlu0 %v2347, 32
        %v2436 = vpop.permute.xlu0 %2435
        %2437 = vrot.lane.b32.xlu0 %v2348, 32
        %v2438 = vpop.permute.xlu0 %2437
        %2439 = vrot.lane.b32.xlu0 %v2349, 32
        %v2440 = vpop.permute.xlu0 %2439
        %2441 = vrot.lane.b32.xlu0 %v2350, 32
        %v2442 = vpop.permute.xlu0 %2441
        %2443 = vrot.lane.b32.xlu0 %v2351, 32
        %v2444 = vpop.permute.xlu0 %2443
        %2445 = vrot.lane.b32.xlu0 %v2352, 32
        %v2446 = vpop.permute.xlu0 %2445
        %2447 = vrot.lane.b32.xlu0 %v2353, 32
        %v2448 = vpop.permute.xlu0 %2447
        %2449 = vrot.lane.b32.xlu0 %v2354, 32
        %v2450 = vpop.permute.xlu0 %2449
        %2483 = vst.msk [vmem:[#allocation3] sm:$0xff] %vm504, %v2388
        %2484 = vst.msk [vmem:[#allocation3 + $0x18] sm:$0xff] %vm504, %v2390
        %2485 = vst.msk [vmem:[#allocation3 + $0x30] sm:$0xff] %vm504, %v2392
        %2486 = vst.msk [vmem:[#allocation3 + $0x48] sm:$0xff] %vm504, %v2394
        %2487 = vst.msk [vmem:[#allocation3 + $0x60] sm:$0xff] %vm504, %v2396
        %2488 = vst.msk [vmem:[#allocation3 + $0x78] sm:$0xff] %vm504, %v2398
        %2489 = vst.msk [vmem:[#allocation3 + $0x90] sm:$0xff] %vm504, %v2400
        %2490 = vst.msk [vmem:[#allocation3 + $0xa8] sm:$0xff] %vm504, %v2402
        %2491 = vst.msk [vmem:[#allocation3 + $0xc0] sm:$0xff] %vm504, %v2404
        %2492 = vst.msk [vmem:[#allocation3 + $0xd8] sm:$0xff] %vm504, %v2406
        %2493 = vst.msk [vmem:[#allocation3 + $0xf0] sm:$0xff] %vm504, %v2408
        %2494 = vst.msk [vmem:[#allocation3 + $0x108] sm:$0xff] %vm504, %v2410
        %2495 = vst.msk [vmem:[#allocation3 + $0x120] sm:$0xff] %vm504, %v2412
        %2496 = vst.msk [vmem:[#allocation3 + $0x138] sm:$0xff] %vm504, %v2414
        %2497 = vst.msk [vmem:[#allocation3 + $0x150] sm:$0xff] %vm504, %v2416
        %2498 = vst.msk [vmem:[#allocation3 + $0x168] sm:$0xff] %vm504, %v2418
        %2499 = vst.msk [vmem:[#allocation3 + $0x180] sm:$0xff] %vm504, %v2420
        %2500 = vst.msk [vmem:[#allocation3 + $0x198] sm:$0xff] %vm504, %v2422
        %2501 = vst.msk [vmem:[#allocation3 + $0x1b0] sm:$0xff] %vm504, %v2424
        %2502 = vst.msk [vmem:[#allocation3 + $0x1c8] sm:$0xff] %vm504, %v2426
        %2503 = vst.msk [vmem:[#allocation3 + $0x1e0] sm:$0xff] %vm504, %v2428
        %2504 = vst.msk [vmem:[#allocation3 + $0x1f8] sm:$0xff] %vm504, %v2430
        %2505 = vst.msk [vmem:[#allocation3 + $0x210] sm:$0xff] %vm504, %v2432
        %2506 = vst.msk [vmem:[#allocation3 + $0x228] sm:$0xff] %vm504, %v2434
        %2507 = vst.msk [vmem:[#allocation3 + $0x240] sm:$0xff] %vm504, %v2436
        %2508 = vst.msk [vmem:[#allocation3 + $0x258] sm:$0xff] %vm504, %v2438
        %2509 = vst.msk [vmem:[#allocation3 + $0x270] sm:$0xff] %vm504, %v2440
        %2510 = vst.msk [vmem:[#allocation3 + $0x288] sm:$0xff] %vm504, %v2442
        %2511 = vst.msk [vmem:[#allocation3 + $0x2a0] sm:$0xff] %vm504, %v2444
        %2512 = vst.msk [vmem:[#allocation3 + $0x2b8] sm:$0xff] %vm504, %v2446
        %2513 = vst.msk [vmem:[#allocation3 + $0x2d0] sm:$0xff] %vm504, %v2448
        %2514 = vst.msk [vmem:[#allocation3 + $0x2e8] sm:$0xff] %vm504, %v2450
        %v2515 = vld [vmem:[#allocation2 + $0x2] sm:$0xff]
        %v2516 = vld [vmem:[#allocation2 + $0xa] sm:$0xff]
        %v2517 = vld [vmem:[#allocation2 + $0x1a] sm:$0xff]
        %v2518 = vld [vmem:[#allocation2 + $0x22] sm:$0xff]
        %v2519 = vld [vmem:[#allocation2 + $0x32] sm:$0xff]
        %v2520 = vld [vmem:[#allocation2 + $0x3a] sm:$0xff]
        %v2521 = vld [vmem:[#allocation2 + $0x4a] sm:$0xff]
        %v2522 = vld [vmem:[#allocation2 + $0x52] sm:$0xff]
        %v2523 = vld [vmem:[#allocation2 + $0x62] sm:$0xff]
        %v2524 = vld [vmem:[#allocation2 + $0x6a] sm:$0xff]
        %v2525 = vld [vmem:[#allocation2 + $0x7a] sm:$0xff]
        %v2526 = vld [vmem:[#allocation2 + $0x82] sm:$0xff]
        %v2527 = vld [vmem:[#allocation2 + $0x92] sm:$0xff]
        %v2528 = vld [vmem:[#allocation2 + $0x9a] sm:$0xff]
        %v2529 = vld [vmem:[#allocation2 + $0xaa] sm:$0xff]
        %v2530 = vld [vmem:[#allocation2 + $0xb2] sm:$0xff]
        %v2531 = vld [vmem:[#allocation2 + $0xc2] sm:$0xff]
        %v2532 = vld [vmem:[#allocation2 + $0xca] sm:$0xff]
        %v2533 = vld [vmem:[#allocation2 + $0xda] sm:$0xff]
        %v2534 = vld [vmem:[#allocation2 + $0xe2] sm:$0xff]
        %v2535 = vld [vmem:[#allocation2 + $0xf2] sm:$0xff]
        %v2536 = vld [vmem:[#allocation2 + $0xfa] sm:$0xff]
        %v2537 = vld [vmem:[#allocation2 + $0x10a] sm:$0xff]
        %v2538 = vld [vmem:[#allocation2 + $0x112] sm:$0xff]
        %v2539 = vld [vmem:[#allocation2 + $0x122] sm:$0xff]
        %v2540 = vld [vmem:[#allocation2 + $0x12a] sm:$0xff]
        %v2541 = vld [vmem:[#allocation2 + $0x13a] sm:$0xff]
        %v2542 = vld [vmem:[#allocation2 + $0x142] sm:$0xff]
        %v2543 = vld [vmem:[#allocation2 + $0x152] sm:$0xff]
        %v2544 = vld [vmem:[#allocation2 + $0x15a] sm:$0xff]
        %v2545 = vld [vmem:[#allocation2 + $0x16a] sm:$0xff]
        %v2546 = vld [vmem:[#allocation2 + $0x172] sm:$0xff]
        %2579 = vrot.lane.b32.xlu0 %v2515, 64
        %v2580 = vpop.permute.xlu0 %2579
        %2581 = vrot.lane.b32.xlu0 %v2516, 64
        %v2582 = vpop.permute.xlu0 %2581
        %2583 = vrot.lane.b32.xlu0 %v2517, 64
        %v2584 = vpop.permute.xlu0 %2583
        %2585 = vrot.lane.b32.xlu0 %v2518, 64
        %v2586 = vpop.permute.xlu0 %2585
        %2587 = vrot.lane.b32.xlu0 %v2519, 64
        %v2588 = vpop.permute.xlu0 %2587
        %2589 = vrot.lane.b32.xlu0 %v2520, 64
        %v2590 = vpop.permute.xlu0 %2589
        %2591 = vrot.lane.b32.xlu0 %v2521, 64
        %v2592 = vpop.permute.xlu0 %2591
        %2593 = vrot.lane.b32.xlu0 %v2522, 64
        %v2594 = vpop.permute.xlu0 %2593
        %2595 = vrot.lane.b32.xlu0 %v2523, 64
        %v2596 = vpop.permute.xlu0 %2595
        %2597 = vrot.lane.b32.xlu0 %v2524, 64
        %v2598 = vpop.permute.xlu0 %2597
        %2599 = vrot.lane.b32.xlu0 %v2525, 64
        %v2600 = vpop.permute.xlu0 %2599
        %2601 = vrot.lane.b32.xlu0 %v2526, 64
        %v2602 = vpop.permute.xlu0 %2601
        %2603 = vrot.lane.b32.xlu0 %v2527, 64
        %v2604 = vpop.permute.xlu0 %2603
        %2605 = vrot.lane.b32.xlu0 %v2528, 64
        %v2606 = vpop.permute.xlu0 %2605
        %2607 = vrot.lane.b32.xlu0 %v2529, 64
        %v2608 = vpop.permute.xlu0 %2607
        %2609 = vrot.lane.b32.xlu0 %v2530, 64
        %v2610 = vpop.permute.xlu0 %2609
        %2611 = vrot.lane.b32.xlu0 %v2531, 64
        %v2612 = vpop.permute.xlu0 %2611
        %2613 = vrot.lane.b32.xlu0 %v2532, 64
        %v2614 = vpop.permute.xlu0 %2613
        %2615 = vrot.lane.b32.xlu0 %v2533, 64
        %v2616 = vpop.permute.xlu0 %2615
        %2617 = vrot.lane.b32.xlu0 %v2534, 64
        %v2618 = vpop.permute.xlu0 %2617
        %2619 = vrot.lane.b32.xlu0 %v2535, 64
        %v2620 = vpop.permute.xlu0 %2619
        %2621 = vrot.lane.b32.xlu0 %v2536, 64
        %v2622 = vpop.permute.xlu0 %2621
        %2623 = vrot.lane.b32.xlu0 %v2537, 64
        %v2624 = vpop.permute.xlu0 %2623
        %2625 = vrot.lane.b32.xlu0 %v2538, 64
        %v2626 = vpop.permute.xlu0 %2625
        %2627 = vrot.lane.b32.xlu0 %v2539, 64
        %v2628 = vpop.permute.xlu0 %2627
        %2629 = vrot.lane.b32.xlu0 %v2540, 64
        %v2630 = vpop.permute.xlu0 %2629
        %2631 = vrot.lane.b32.xlu0 %v2541, 64
        %v2632 = vpop.permute.xlu0 %2631
        %2633 = vrot.lane.b32.xlu0 %v2542, 64
        %v2634 = vpop.permute.xlu0 %2633
        %2635 = vrot.lane.b32.xlu0 %v2543, 64
        %v2636 = vpop.permute.xlu0 %2635
        %2637 = vrot.lane.b32.xlu0 %v2544, 64
        %v2638 = vpop.permute.xlu0 %2637
        %2639 = vrot.lane.b32.xlu0 %v2545, 64
        %v2640 = vpop.permute.xlu0 %2639
        %2641 = vrot.lane.b32.xlu0 %v2546, 64
        %v2642 = vpop.permute.xlu0 %2641
        %2675 = vst.msk [vmem:[#allocation3] sm:$0xff] %vm697, %v2580
        %2676 = vst.msk [vmem:[#allocation3 + $0x18] sm:$0xff] %vm697, %v2582
        %2677 = vst.msk [vmem:[#allocation3 + $0x30] sm:$0xff] %vm697, %v2584
        %2678 = vst.msk [vmem:[#allocation3 + $0x48] sm:$0xff] %vm697, %v2586
        %2679 = vst.msk [vmem:[#allocation3 + $0x60] sm:$0xff] %vm697, %v2588
        %2680 = vst.msk [vmem:[#allocation3 + $0x78] sm:$0xff] %vm697, %v2590
        %2681 = vst.msk [vmem:[#allocation3 + $0x90] sm:$0xff] %vm697, %v2592
        %2682 = vst.msk [vmem:[#allocation3 + $0xa8] sm:$0xff] %vm697, %v2594
        %2683 = vst.msk [vmem:[#allocation3 + $0xc0] sm:$0xff] %vm697, %v2596
        %2684 = vst.msk [vmem:[#allocation3 + $0xd8] sm:$0xff] %vm697, %v2598
        %2685 = vst.msk [vmem:[#allocation3 + $0xf0] sm:$0xff] %vm697, %v2600
        %2686 = vst.msk [vmem:[#allocation3 + $0x108] sm:$0xff] %vm697, %v2602
        %2687 = vst.msk [vmem:[#allocation3 + $0x120] sm:$0xff] %vm697, %v2604
        %2688 = vst.msk [vmem:[#allocation3 + $0x138] sm:$0xff] %vm697, %v2606
        %2689 = vst.msk [vmem:[#allocation3 + $0x150] sm:$0xff] %vm697, %v2608
        %2690 = vst.msk [vmem:[#allocation3 + $0x168] sm:$0xff] %vm697, %v2610
        %2691 = vst.msk [vmem:[#allocation3 + $0x180] sm:$0xff] %vm697, %v2612
        %2692 = vst.msk [vmem:[#allocation3 + $0x198] sm:$0xff] %vm697, %v2614
        %2693 = vst.msk [vmem:[#allocation3 + $0x1b0] sm:$0xff] %vm697, %v2616
        %2694 = vst.msk [vmem:[#allocation3 + $0x1c8] sm:$0xff] %vm697, %v2618
        %2695 = vst.msk [vmem:[#allocation3 + $0x1e0] sm:$0xff] %vm697, %v2620
        %2696 = vst.msk [vmem:[#allocation3 + $0x1f8] sm:$0xff] %vm697, %v2622
        %2697 = vst.msk [vmem:[#allocation3 + $0x210] sm:$0xff] %vm697, %v2624
        %2698 = vst.msk [vmem:[#allocation3 + $0x228] sm:$0xff] %vm697, %v2626
        %2699 = vst.msk [vmem:[#allocation3 + $0x240] sm:$0xff] %vm697, %v2628
        %2700 = vst.msk [vmem:[#allocation3 + $0x258] sm:$0xff] %vm697, %v2630
        %2701 = vst.msk [vmem:[#allocation3 + $0x270] sm:$0xff] %vm697, %v2632
        %2702 = vst.msk [vmem:[#allocation3 + $0x288] sm:$0xff] %vm697, %v2634
        %2703 = vst.msk [vmem:[#allocation3 + $0x2a0] sm:$0xff] %vm697, %v2636
        %2704 = vst.msk [vmem:[#allocation3 + $0x2b8] sm:$0xff] %vm697, %v2638
        %2705 = vst.msk [vmem:[#allocation3 + $0x2d0] sm:$0xff] %vm697, %v2640
        %2706 = vst.msk [vmem:[#allocation3 + $0x2e8] sm:$0xff] %vm697, %v2642
        %v2707 = vld [vmem:[%s247] sm:$0xff]
        %v2708 = vld [vmem:[%s247 + $0x8] sm:$0xff]
        %v2709 = vld [vmem:[%s247 + $0x18] sm:$0xff]
        %v2710 = vld [vmem:[%s247 + $0x20] sm:$0xff]
        %v2711 = vld [vmem:[%s247 + $0x30] sm:$0xff]
        %v2712 = vld [vmem:[%s247 + $0x38] sm:$0xff]
        %v2713 = vld [vmem:[%s247 + $0x48] sm:$0xff]
        %v2714 = vld [vmem:[%s247 + $0x50] sm:$0xff]
        %v2715 = vld [vmem:[%s247 + $0x60] sm:$0xff]
        %v2716 = vld [vmem:[%s247 + $0x68] sm:$0xff]
        %v2717 = vld [vmem:[%s247 + $0x78] sm:$0xff]
        %v2718 = vld [vmem:[%s247 + $0x80] sm:$0xff]
        %v2719 = vld [vmem:[%s247 + $0x90] sm:$0xff]
        %v2720 = vld [vmem:[%s247 + $0x98] sm:$0xff]
        %v2721 = vld [vmem:[%s247 + $0xa8] sm:$0xff]
        %v2722 = vld [vmem:[%s247 + $0xb0] sm:$0xff]
        %v2723 = vld [vmem:[%s247 + $0xc0] sm:$0xff]
        %v2724 = vld [vmem:[%s247 + $0xc8] sm:$0xff]
        %v2725 = vld [vmem:[%s247 + $0xd8] sm:$0xff]
        %v2726 = vld [vmem:[%s247 + $0xe0] sm:$0xff]
        %v2727 = vld [vmem:[%s247 + $0xf0] sm:$0xff]
        %v2728 = vld [vmem:[%s247 + $0xf8] sm:$0xff]
        %v2729 = vld [vmem:[%s247 + $0x108] sm:$0xff]
        %v2730 = vld [vmem:[%s247 + $0x110] sm:$0xff]
        %v2731 = vld [vmem:[%s247 + $0x120] sm:$0xff]
        %v2732 = vld [vmem:[%s247 + $0x128] sm:$0xff]
        %v2733 = vld [vmem:[%s247 + $0x138] sm:$0xff]
        %v2734 = vld [vmem:[%s247 + $0x140] sm:$0xff]
        %v2735 = vld [vmem:[%s247 + $0x150] sm:$0xff]
        %v2736 = vld [vmem:[%s247 + $0x158] sm:$0xff]
        %v2737 = vld [vmem:[%s247 + $0x168] sm:$0xff]
        %v2738 = vld [vmem:[%s247 + $0x170] sm:$0xff]
        %2771 = vrot.lane.b32.xlu0 %v2707, 96
        %v2772 = vpop.permute.xlu0 %2771
        %2773 = vrot.lane.b32.xlu0 %v2708, 96
        %v2774 = vpop.permute.xlu0 %2773
        %2775 = vrot.lane.b32.xlu0 %v2709, 96
        %v2776 = vpop.permute.xlu0 %2775
        %2777 = vrot.lane.b32.xlu0 %v2710, 96
        %v2778 = vpop.permute.xlu0 %2777
        %2779 = vrot.lane.b32.xlu0 %v2711, 96
        %v2780 = vpop.permute.xlu0 %2779
        %2781 = vrot.lane.b32.xlu0 %v2712, 96
        %v2782 = vpop.permute.xlu0 %2781
        %2783 = vrot.lane.b32.xlu0 %v2713, 96
        %v2784 = vpop.permute.xlu0 %2783
        %2785 = vrot.lane.b32.xlu0 %v2714, 96
        %v2786 = vpop.permute.xlu0 %2785
        %2787 = vrot.lane.b32.xlu0 %v2715, 96
        %v2788 = vpop.permute.xlu0 %2787
        %2789 = vrot.lane.b32.xlu0 %v2716, 96
        %v2790 = vpop.permute.xlu0 %2789
        %2791 = vrot.lane.b32.xlu0 %v2717, 96
        %v2792 = vpop.permute.xlu0 %2791
        %2793 = vrot.lane.b32.xlu0 %v2718, 96
        %v2794 = vpop.permute.xlu0 %2793
        %2795 = vrot.lane.b32.xlu0 %v2719, 96
        %v2796 = vpop.permute.xlu0 %2795
        %2797 = vrot.lane.b32.xlu0 %v2720, 96
        %v2798 = vpop.permute.xlu0 %2797
        %2799 = vrot.lane.b32.xlu0 %v2721, 96
        %v2800 = vpop.permute.xlu0 %2799
        %2801 = vrot.lane.b32.xlu0 %v2722, 96
        %v2802 = vpop.permute.xlu0 %2801
        %2803 = vrot.lane.b32.xlu0 %v2723, 96
        %v2804 = vpop.permute.xlu0 %2803
        %2805 = vrot.lane.b32.xlu0 %v2724, 96
        %v2806 = vpop.permute.xlu0 %2805
        %2807 = vrot.lane.b32.xlu0 %v2725, 96
        %v2808 = vpop.permute.xlu0 %2807
        %2809 = vrot.lane.b32.xlu0 %v2726, 96
        %v2810 = vpop.permute.xlu0 %2809
        %2811 = vrot.lane.b32.xlu0 %v2727, 96
        %v2812 = vpop.permute.xlu0 %2811
        %2813 = vrot.lane.b32.xlu0 %v2728, 96
        %v2814 = vpop.permute.xlu0 %2813
        %2815 = vrot.lane.b32.xlu0 %v2729, 96
        %v2816 = vpop.permute.xlu0 %2815
        %2817 = vrot.lane.b32.xlu0 %v2730, 96
        %v2818 = vpop.permute.xlu0 %2817
        %2819 = vrot.lane.b32.xlu0 %v2731, 96
        %v2820 = vpop.permute.xlu0 %2819
        %2821 = vrot.lane.b32.xlu0 %v2732, 96
        %v2822 = vpop.permute.xlu0 %2821
        %2823 = vrot.lane.b32.xlu0 %v2733, 96
        %v2824 = vpop.permute.xlu0 %2823
        %2825 = vrot.lane.b32.xlu0 %v2734, 96
        %v2826 = vpop.permute.xlu0 %2825
        %2827 = vrot.lane.b32.xlu0 %v2735, 96
        %v2828 = vpop.permute.xlu0 %2827
        %2829 = vrot.lane.b32.xlu0 %v2736, 96
        %v2830 = vpop.permute.xlu0 %2829
        %2831 = vrot.lane.b32.xlu0 %v2737, 96
        %v2832 = vpop.permute.xlu0 %2831
        %2833 = vrot.lane.b32.xlu0 %v2738, 96
        %v2834 = vpop.permute.xlu0 %2833
        %2867 = vst.msk [vmem:[#allocation3] sm:$0xff] %vm890, %v2772
        %2868 = vst.msk [vmem:[#allocation3 + $0x18] sm:$0xff] %vm890, %v2774
        %2869 = vst.msk [vmem:[#allocation3 + $0x30] sm:$0xff] %vm890, %v2776
        %2870 = vst.msk [vmem:[#allocation3 + $0x48] sm:$0xff] %vm890, %v2778
        %2871 = vst.msk [vmem:[#allocation3 + $0x60] sm:$0xff] %vm890, %v2780
        %2872 = vst.msk [vmem:[#allocation3 + $0x78] sm:$0xff] %vm890, %v2782
        %2873 = vst.msk [vmem:[#allocation3 + $0x90] sm:$0xff] %vm890, %v2784
        %2874 = vst.msk [vmem:[#allocation3 + $0xa8] sm:$0xff] %vm890, %v2786
        %2875 = vst.msk [vmem:[#allocation3 + $0xc0] sm:$0xff] %vm890, %v2788
        %2876 = vst.msk [vmem:[#allocation3 + $0xd8] sm:$0xff] %vm890, %v2790
        %2877 = vst.msk [vmem:[#allocation3 + $0xf0] sm:$0xff] %vm890, %v2792
        %2878 = vst.msk [vmem:[#allocation3 + $0x108] sm:$0xff] %vm890, %v2794
        %2879 = vst.msk [vmem:[#allocation3 + $0x120] sm:$0xff] %vm890, %v2796
        %2880 = vst.msk [vmem:[#allocation3 + $0x138] sm:$0xff] %vm890, %v2798
        %2881 = vst.msk [vmem:[#allocation3 + $0x150] sm:$0xff] %vm890, %v2800
        %2882 = vst.msk [vmem:[#allocation3 + $0x168] sm:$0xff] %vm890, %v2802
        %2883 = vst.msk [vmem:[#allocation3 + $0x180] sm:$0xff] %vm890, %v2804
        %2884 = vst.msk [vmem:[#allocation3 + $0x198] sm:$0xff] %vm890, %v2806
        %2885 = vst.msk [vmem:[#allocation3 + $0x1b0] sm:$0xff] %vm890, %v2808
        %2886 = vst.msk [vmem:[#allocation3 + $0x1c8] sm:$0xff] %vm890, %v2810
        %2887 = vst.msk [vmem:[#allocation3 + $0x1e0] sm:$0xff] %vm890, %v2812
        %2888 = vst.msk [vmem:[#allocation3 + $0x1f8] sm:$0xff] %vm890, %v2814
        %2889 = vst.msk [vmem:[#allocation3 + $0x210] sm:$0xff] %vm890, %v2816
        %2890 = vst.msk [vmem:[#allocation3 + $0x228] sm:$0xff] %vm890, %v2818
        %2891 = vst.msk [vmem:[#allocation3 + $0x240] sm:$0xff] %vm890, %v2820
        %2892 = vst.msk [vmem:[#allocation3 + $0x258] sm:$0xff] %vm890, %v2822
        %2893 = vst.msk [vmem:[#allocation3 + $0x270] sm:$0xff] %vm890, %v2824
        %2894 = vst.msk [vmem:[#allocation3 + $0x288] sm:$0xff] %vm890, %v2826
        %2895 = vst.msk [vmem:[#allocation3 + $0x2a0] sm:$0xff] %vm890, %v2828
        %2896 = vst.msk [vmem:[#allocation3 + $0x2b8] sm:$0xff] %vm890, %v2830
        %2897 = vst.msk [vmem:[#allocation3 + $0x2d0] sm:$0xff] %vm890, %v2832
        %2898 = vst.msk [vmem:[#allocation3 + $0x2e8] sm:$0xff] %vm890, %v2834
        %v2899 = vld [vmem:[%s247 + $0x1] sm:$0xff]
        %v2900 = vld [vmem:[%s247 + $0x9] sm:$0xff]
        %v2901 = vld [vmem:[%s247 + $0x19] sm:$0xff]
        %v2902 = vld [vmem:[%s247 + $0x21] sm:$0xff]
        %v2903 = vld [vmem:[%s247 + $0x31] sm:$0xff]
        %v2904 = vld [vmem:[%s247 + $0x39] sm:$0xff]
        %v2905 = vld [vmem:[%s247 + $0x49] sm:$0xff]
        %v2906 = vld [vmem:[%s247 + $0x51] sm:$0xff]
        %v2907 = vld [vmem:[%s247 + $0x61] sm:$0xff]
        %v2908 = vld [vmem:[%s247 + $0x69] sm:$0xff]
        %v2909 = vld [vmem:[%s247 + $0x79] sm:$0xff]
        %v2910 = vld [vmem:[%s247 + $0x81] sm:$0xff]
        %v2911 = vld [vmem:[%s247 + $0x91] sm:$0xff]
        %v2912 = vld [vmem:[%s247 + $0x99] sm:$0xff]
        %v2913 = vld [vmem:[%s247 + $0xa9] sm:$0xff]
        %v2914 = vld [vmem:[%s247 + $0xb1] sm:$0xff]
        %v2915 = vld [vmem:[%s247 + $0xc1] sm:$0xff]
        %v2916 = vld [vmem:[%s247 + $0xc9] sm:$0xff]
        %v2917 = vld [vmem:[%s247 + $0xd9] sm:$0xff]
        %v2918 = vld [vmem:[%s247 + $0xe1] sm:$0xff]
        %v2919 = vld [vmem:[%s247 + $0xf1] sm:$0xff]
        %v2920 = vld [vmem:[%s247 + $0xf9] sm:$0xff]
        %v2921 = vld [vmem:[%s247 + $0x109] sm:$0xff]
        %v2922 = vld [vmem:[%s247 + $0x111] sm:$0xff]
        %v2923 = vld [vmem:[%s247 + $0x121] sm:$0xff]
        %v2924 = vld [vmem:[%s247 + $0x129] sm:$0xff]
        %v2925 = vld [vmem:[%s247 + $0x139] sm:$0xff]
        %v2926 = vld [vmem:[%s247 + $0x141] sm:$0xff]
        %v2927 = vld [vmem:[%s247 + $0x151] sm:$0xff]
        %v2928 = vld [vmem:[%s247 + $0x159] sm:$0xff]
        %v2929 = vld [vmem:[%s247 + $0x169] sm:$0xff]
        %v2930 = vld [vmem:[%s247 + $0x171] sm:$0xff]
        %2931 = vst.msk [vmem:[#allocation3 + $0x8] sm:$0xff] %vm169, %v2899
        %2932 = vst.msk [vmem:[#allocation3 + $0x20] sm:$0xff] %vm169, %v2900
        %2933 = vst.msk [vmem:[#allocation3 + $0x38] sm:$0xff] %vm169, %v2901
        %2934 = vst.msk [vmem:[#allocation3 + $0x50] sm:$0xff] %vm169, %v2902
        %2935 = vst.msk [vmem:[#allocation3 + $0x68] sm:$0xff] %vm169, %v2903
        %2936 = vst.msk [vmem:[#allocation3 + $0x80] sm:$0xff] %vm169, %v2904
        %2937 = vst.msk [vmem:[#allocation3 + $0x98] sm:$0xff] %vm169, %v2905
        %2938 = vst.msk [vmem:[#allocation3 + $0xb0] sm:$0xff] %vm169, %v2906
        %2939 = vst.msk [vmem:[#allocation3 + $0xc8] sm:$0xff] %vm169, %v2907
        %2940 = vst.msk [vmem:[#allocation3 + $0xe0] sm:$0xff] %vm169, %v2908
        %2941 = vst.msk [vmem:[#allocation3 + $0xf8] sm:$0xff] %vm169, %v2909
        %2942 = vst.msk [vmem:[#allocation3 + $0x110] sm:$0xff] %vm169, %v2910
        %2943 = vst.msk [vmem:[#allocation3 + $0x128] sm:$0xff] %vm169, %v2911
        %2944 = vst.msk [vmem:[#allocation3 + $0x140] sm:$0xff] %vm169, %v2912
        %2945 = vst.msk [vmem:[#allocation3 + $0x158] sm:$0xff] %vm169, %v2913
        %2946 = vst.msk [vmem:[#allocation3 + $0x170] sm:$0xff] %vm169, %v2914
        %2947 = vst.msk [vmem:[#allocation3 + $0x188] sm:$0xff] %vm169, %v2915
        %2948 = vst.msk [vmem:[#allocation3 + $0x1a0] sm:$0xff] %vm169, %v2916
        %2949 = vst.msk [vmem:[#allocation3 + $0x1b8] sm:$0xff] %vm169, %v2917
        %2950 = vst.msk [vmem:[#allocation3 + $0x1d0] sm:$0xff] %vm169, %v2918
        %2951 = vst.msk [vmem:[#allocation3 + $0x1e8] sm:$0xff] %vm169, %v2919
        %2952 = vst.msk [vmem:[#allocation3 + $0x200] sm:$0xff] %vm169, %v2920
        %2953 = vst.msk [vmem:[#allocation3 + $0x218] sm:$0xff] %vm169, %v2921
        %2954 = vst.msk [vmem:[#allocation3 + $0x230] sm:$0xff] %vm169, %v2922
        %2955 = vst.msk [vmem:[#allocation3 + $0x248] sm:$0xff] %vm169, %v2923
        %2956 = vst.msk [vmem:[#allocation3 + $0x260] sm:$0xff] %vm169, %v2924
        %2957 = vst.msk [vmem:[#allocation3 + $0x278] sm:$0xff] %vm169, %v2925
        %2958 = vst.msk [vmem:[#allocation3 + $0x290] sm:$0xff] %vm169, %v2926
        %2959 = vst.msk [vmem:[#allocation3 + $0x2a8] sm:$0xff] %vm169, %v2927
        %2960 = vst.msk [vmem:[#allocation3 + $0x2c0] sm:$0xff] %vm169, %v2928
        %2961 = vst.msk [vmem:[#allocation3 + $0x2d8] sm:$0xff] %vm169, %v2929
        %2962 = vst.msk [vmem:[#allocation3 + $0x2f0] sm:$0xff] %vm169, %v2930
        %v2963 = vld [vmem:[%s247 + $0x2] sm:$0xff]
        %v2964 = vld [vmem:[%s247 + $0xa] sm:$0xff]
        %v2965 = vld [vmem:[%s247 + $0x1a] sm:$0xff]
        %v2966 = vld [vmem:[%s247 + $0x22] sm:$0xff]
        %v2967 = vld [vmem:[%s247 + $0x32] sm:$0xff]
        %v2968 = vld [vmem:[%s247 + $0x3a] sm:$0xff]
        %v2969 = vld [vmem:[%s247 + $0x4a] sm:$0xff]
        %v2970 = vld [vmem:[%s247 + $0x52] sm:$0xff]
        %v2971 = vld [vmem:[%s247 + $0x62] sm:$0xff]
        %v2972 = vld [vmem:[%s247 + $0x6a] sm:$0xff]
        %v2973 = vld [vmem:[%s247 + $0x7a] sm:$0xff]
        %v2974 = vld [vmem:[%s247 + $0x82] sm:$0xff]
        %v2975 = vld [vmem:[%s247 + $0x92] sm:$0xff]
        %v2976 = vld [vmem:[%s247 + $0x9a] sm:$0xff]
        %v2977 = vld [vmem:[%s247 + $0xaa] sm:$0xff]
        %v2978 = vld [vmem:[%s247 + $0xb2] sm:$0xff]
        %v2979 = vld [vmem:[%s247 + $0xc2] sm:$0xff]
        %v2980 = vld [vmem:[%s247 + $0xca] sm:$0xff]
        %v2981 = vld [vmem:[%s247 + $0xda] sm:$0xff]
        %v2982 = vld [vmem:[%s247 + $0xe2] sm:$0xff]
        %v2983 = vld [vmem:[%s247 + $0xf2] sm:$0xff]
        %v2984 = vld [vmem:[%s247 + $0xfa] sm:$0xff]
        %v2985 = vld [vmem:[%s247 + $0x10a] sm:$0xff]
        %v2986 = vld [vmem:[%s247 + $0x112] sm:$0xff]
        %v2987 = vld [vmem:[%s247 + $0x122] sm:$0xff]
        %v2988 = vld [vmem:[%s247 + $0x12a] sm:$0xff]
        %v2989 = vld [vmem:[%s247 + $0x13a] sm:$0xff]
        %v2990 = vld [vmem:[%s247 + $0x142] sm:$0xff]
        %v2991 = vld [vmem:[%s247 + $0x152] sm:$0xff]
        %v2992 = vld [vmem:[%s247 + $0x15a] sm:$0xff]
        %v2993 = vld [vmem:[%s247 + $0x16a] sm:$0xff]
        %v2994 = vld [vmem:[%s247 + $0x172] sm:$0xff]
        %3027 = vrot.lane.b32.xlu0 %v2963, 32
        %v3028 = vpop.permute.xlu0 %3027
        %3029 = vrot.lane.b32.xlu0 %v2964, 32
        %v3030 = vpop.permute.xlu0 %3029
        %3031 = vrot.lane.b32.xlu0 %v2965, 32
        %v3032 = vpop.permute.xlu0 %3031
        %3033 = vrot.lane.b32.xlu0 %v2966, 32
        %v3034 = vpop.permute.xlu0 %3033
        %3035 = vrot.lane.b32.xlu0 %v2967, 32
        %v3036 = vpop.permute.xlu0 %3035
        %3037 = vrot.lane.b32.xlu0 %v2968, 32
        %v3038 = vpop.permute.xlu0 %3037
        %3039 = vrot.lane.b32.xlu0 %v2969, 32
        %v3040 = vpop.permute.xlu0 %3039
        %3041 = vrot.lane.b32.xlu0 %v2970, 32
        %v3042 = vpop.permute.xlu0 %3041
        %3043 = vrot.lane.b32.xlu0 %v2971, 32
        %v3044 = vpop.permute.xlu0 %3043
        %3045 = vrot.lane.b32.xlu0 %v2972, 32
        %v3046 = vpop.permute.xlu0 %3045
        %3047 = vrot.lane.b32.xlu0 %v2973, 32
        %v3048 = vpop.permute.xlu0 %3047
        %3049 = vrot.lane.b32.xlu0 %v2974, 32
        %v3050 = vpop.permute.xlu0 %3049
        %3051 = vrot.lane.b32.xlu0 %v2975, 32
        %v3052 = vpop.permute.xlu0 %3051
        %3053 = vrot.lane.b32.xlu0 %v2976, 32
        %v3054 = vpop.permute.xlu0 %3053
        %3055 = vrot.lane.b32.xlu0 %v2977, 32
        %v3056 = vpop.permute.xlu0 %3055
        %3057 = vrot.lane.b32.xlu0 %v2978, 32
        %v3058 = vpop.permute.xlu0 %3057
        %3059 = vrot.lane.b32.xlu0 %v2979, 32
        %v3060 = vpop.permute.xlu0 %3059
        %3061 = vrot.lane.b32.xlu0 %v2980, 32
        %v3062 = vpop.permute.xlu0 %3061
        %3063 = vrot.lane.b32.xlu0 %v2981, 32
        %v3064 = vpop.permute.xlu0 %3063
        %3065 = vrot.lane.b32.xlu0 %v2982, 32
        %v3066 = vpop.permute.xlu0 %3065
        %3067 = vrot.lane.b32.xlu0 %v2983, 32
        %v3068 = vpop.permute.xlu0 %3067
        %3069 = vrot.lane.b32.xlu0 %v2984, 32
        %v3070 = vpop.permute.xlu0 %3069
        %3071 = vrot.lane.b32.xlu0 %v2985, 32
        %v3072 = vpop.permute.xlu0 %3071
        %3073 = vrot.lane.b32.xlu0 %v2986, 32
        %v3074 = vpop.permute.xlu0 %3073
        %3075 = vrot.lane.b32.xlu0 %v2987, 32
        %v3076 = vpop.permute.xlu0 %3075
        %3077 = vrot.lane.b32.xlu0 %v2988, 32
        %v3078 = vpop.permute.xlu0 %3077
        %3079 = vrot.lane.b32.xlu0 %v2989, 32
        %v3080 = vpop.permute.xlu0 %3079
        %3081 = vrot.lane.b32.xlu0 %v2990, 32
        %v3082 = vpop.permute.xlu0 %3081
        %3083 = vrot.lane.b32.xlu0 %v2991, 32
        %v3084 = vpop.permute.xlu0 %3083
        %3085 = vrot.lane.b32.xlu0 %v2992, 32
        %v3086 = vpop.permute.xlu0 %3085
        %3087 = vrot.lane.b32.xlu0 %v2993, 32
        %v3088 = vpop.permute.xlu0 %3087
        %3089 = vrot.lane.b32.xlu0 %v2994, 32
        %v3090 = vpop.permute.xlu0 %3089
        %3123 = vst.msk [vmem:[#allocation3 + $0x8] sm:$0xff] %vm504, %v3028
        %3124 = vst.msk [vmem:[#allocation3 + $0x20] sm:$0xff] %vm504, %v3030
        %3125 = vst.msk [vmem:[#allocation3 + $0x38] sm:$0xff] %vm504, %v3032
        %3126 = vst.msk [vmem:[#allocation3 + $0x50] sm:$0xff] %vm504, %v3034
        %3127 = vst.msk [vmem:[#allocation3 + $0x68] sm:$0xff] %vm504, %v3036
        %3128 = vst.msk [vmem:[#allocation3 + $0x80] sm:$0xff] %vm504, %v3038
        %3129 = vst.msk [vmem:[#allocation3 + $0x98] sm:$0xff] %vm504, %v3040
        %3130 = vst.msk [vmem:[#allocation3 + $0xb0] sm:$0xff] %vm504, %v3042
        %3131 = vst.msk [vmem:[#allocation3 + $0xc8] sm:$0xff] %vm504, %v3044
        %3132 = vst.msk [vmem:[#allocation3 + $0xe0] sm:$0xff] %vm504, %v3046
        %3133 = vst.msk [vmem:[#allocation3 + $0xf8] sm:$0xff] %vm504, %v3048
        %3134 = vst.msk [vmem:[#allocation3 + $0x110] sm:$0xff] %vm504, %v3050
        %3135 = vst.msk [vmem:[#allocation3 + $0x128] sm:$0xff] %vm504, %v3052
        %3136 = vst.msk [vmem:[#allocation3 + $0x140] sm:$0xff] %vm504, %v3054
        %3137 = vst.msk [vmem:[#allocation3 + $0x158] sm:$0xff] %vm504, %v3056
        %3138 = vst.msk [vmem:[#allocation3 + $0x170] sm:$0xff] %vm504, %v3058
        %3139 = vst.msk [vmem:[#allocation3 + $0x188] sm:$0xff] %vm504, %v3060
        %3140 = vst.msk [vmem:[#allocation3 + $0x1a0] sm:$0xff] %vm504, %v3062
        %3141 = vst.msk [vmem:[#allocation3 + $0x1b8] sm:$0xff] %vm504, %v3064
        %3142 = vst.msk [vmem:[#allocation3 + $0x1d0] sm:$0xff] %vm504, %v3066
        %3143 = vst.msk [vmem:[#allocation3 + $0x1e8] sm:$0xff] %vm504, %v3068
        %3144 = vst.msk [vmem:[#allocation3 + $0x200] sm:$0xff] %vm504, %v3070
        %3145 = vst.msk [vmem:[#allocation3 + $0x218] sm:$0xff] %vm504, %v3072
        %3146 = vst.msk [vmem:[#allocation3 + $0x230] sm:$0xff] %vm504, %v3074
        %3147 = vst.msk [vmem:[#allocation3 + $0x248] sm:$0xff] %vm504, %v3076
        %3148 = vst.msk [vmem:[#allocation3 + $0x260] sm:$0xff] %vm504, %v3078
        %3149 = vst.msk [vmem:[#allocation3 + $0x278] sm:$0xff] %vm504, %v3080
        %3150 = vst.msk [vmem:[#allocation3 + $0x290] sm:$0xff] %vm504, %v3082
        %3151 = vst.msk [vmem:[#allocation3 + $0x2a8] sm:$0xff] %vm504, %v3084
        %3152 = vst.msk [vmem:[#allocation3 + $0x2c0] sm:$0xff] %vm504, %v3086
        %3153 = vst.msk [vmem:[#allocation3 + $0x2d8] sm:$0xff] %vm504, %v3088
        %3154 = vst.msk [vmem:[#allocation3 + $0x2f0] sm:$0xff] %vm504, %v3090
        %v3155 = vld [vmem:[%s1179] sm:$0xff]
        %v3156 = vld [vmem:[%s1179 + $0x8] sm:$0xff]
        %v3157 = vld [vmem:[%s1179 + $0x18] sm:$0xff]
        %v3158 = vld [vmem:[%s1179 + $0x20] sm:$0xff]
        %v3159 = vld [vmem:[%s1179 + $0x30] sm:$0xff]
        %v3160 = vld [vmem:[%s1179 + $0x38] sm:$0xff]
        %v3161 = vld [vmem:[%s1179 + $0x48] sm:$0xff]
        %v3162 = vld [vmem:[%s1179 + $0x50] sm:$0xff]
        %v3163 = vld [vmem:[%s1179 + $0x60] sm:$0xff]
        %v3164 = vld [vmem:[%s1179 + $0x68] sm:$0xff]
        %v3165 = vld [vmem:[%s1179 + $0x78] sm:$0xff]
        %v3166 = vld [vmem:[%s1179 + $0x80] sm:$0xff]
        %v3167 = vld [vmem:[%s1179 + $0x90] sm:$0xff]
        %v3168 = vld [vmem:[%s1179 + $0x98] sm:$0xff]
        %v3169 = vld [vmem:[%s1179 + $0xa8] sm:$0xff]
        %v3170 = vld [vmem:[%s1179 + $0xb0] sm:$0xff]
        %v3171 = vld [vmem:[%s1179 + $0xc0] sm:$0xff]
        %v3172 = vld [vmem:[%s1179 + $0xc8] sm:$0xff]
        %v3173 = vld [vmem:[%s1179 + $0xd8] sm:$0xff]
        %v3174 = vld [vmem:[%s1179 + $0xe0] sm:$0xff]
        %v3175 = vld [vmem:[%s1179 + $0xf0] sm:$0xff]
        %v3176 = vld [vmem:[%s1179 + $0xf8] sm:$0xff]
        %v3177 = vld [vmem:[%s1179 + $0x108] sm:$0xff]
        %v3178 = vld [vmem:[%s1179 + $0x110] sm:$0xff]
        %v3179 = vld [vmem:[%s1179 + $0x120] sm:$0xff]
        %v3180 = vld [vmem:[%s1179 + $0x128] sm:$0xff]
        %v3181 = vld [vmem:[%s1179 + $0x138] sm:$0xff]
        %v3182 = vld [vmem:[%s1179 + $0x140] sm:$0xff]
        %v3183 = vld [vmem:[%s1179 + $0x150] sm:$0xff]
        %v3184 = vld [vmem:[%s1179 + $0x158] sm:$0xff]
        %v3185 = vld [vmem:[%s1179 + $0x168] sm:$0xff]
        %v3186 = vld [vmem:[%s1179 + $0x170] sm:$0xff]
        %3219 = vrot.lane.b32.xlu0 %v3155, 64
        %v3220 = vpop.permute.xlu0 %3219
        %3221 = vrot.lane.b32.xlu0 %v3156, 64
        %v3222 = vpop.permute.xlu0 %3221
        %3223 = vrot.lane.b32.xlu0 %v3157, 64
        %v3224 = vpop.permute.xlu0 %3223
        %3225 = vrot.lane.b32.xlu0 %v3158, 64
        %v3226 = vpop.permute.xlu0 %3225
        %3227 = vrot.lane.b32.xlu0 %v3159, 64
        %v3228 = vpop.permute.xlu0 %3227
        %3229 = vrot.lane.b32.xlu0 %v3160, 64
        %v3230 = vpop.permute.xlu0 %3229
        %3231 = vrot.lane.b32.xlu0 %v3161, 64
        %v3232 = vpop.permute.xlu0 %3231
        %3233 = vrot.lane.b32.xlu0 %v3162, 64
        %v3234 = vpop.permute.xlu0 %3233
        %3235 = vrot.lane.b32.xlu0 %v3163, 64
        %v3236 = vpop.permute.xlu0 %3235
        %3237 = vrot.lane.b32.xlu0 %v3164, 64
        %v3238 = vpop.permute.xlu0 %3237
        %3239 = vrot.lane.b32.xlu0 %v3165, 64
        %v3240 = vpop.permute.xlu0 %3239
        %3241 = vrot.lane.b32.xlu0 %v3166, 64
        %v3242 = vpop.permute.xlu0 %3241
        %3243 = vrot.lane.b32.xlu0 %v3167, 64
        %v3244 = vpop.permute.xlu0 %3243
        %3245 = vrot.lane.b32.xlu0 %v3168, 64
        %v3246 = vpop.permute.xlu0 %3245
        %3247 = vrot.lane.b32.xlu0 %v3169, 64
        %v3248 = vpop.permute.xlu0 %3247
        %3249 = vrot.lane.b32.xlu0 %v3170, 64
        %v3250 = vpop.permute.xlu0 %3249
        %3251 = vrot.lane.b32.xlu0 %v3171, 64
        %v3252 = vpop.permute.xlu0 %3251
        %3253 = vrot.lane.b32.xlu0 %v3172, 64
        %v3254 = vpop.permute.xlu0 %3253
        %3255 = vrot.lane.b32.xlu0 %v3173, 64
        %v3256 = vpop.permute.xlu0 %3255
        %3257 = vrot.lane.b32.xlu0 %v3174, 64
        %v3258 = vpop.permute.xlu0 %3257
        %3259 = vrot.lane.b32.xlu0 %v3175, 64
        %v3260 = vpop.permute.xlu0 %3259
        %3261 = vrot.lane.b32.xlu0 %v3176, 64
        %v3262 = vpop.permute.xlu0 %3261
        %3263 = vrot.lane.b32.xlu0 %v3177, 64
        %v3264 = vpop.permute.xlu0 %3263
        %3265 = vrot.lane.b32.xlu0 %v3178, 64
        %v3266 = vpop.permute.xlu0 %3265
        %3267 = vrot.lane.b32.xlu0 %v3179, 64
        %v3268 = vpop.permute.xlu0 %3267
        %3269 = vrot.lane.b32.xlu0 %v3180, 64
        %v3270 = vpop.permute.xlu0 %3269
        %3271 = vrot.lane.b32.xlu0 %v3181, 64
        %v3272 = vpop.permute.xlu0 %3271
        %3273 = vrot.lane.b32.xlu0 %v3182, 64
        %v3274 = vpop.permute.xlu0 %3273
        %3275 = vrot.lane.b32.xlu0 %v3183, 64
        %v3276 = vpop.permute.xlu0 %3275
        %3277 = vrot.lane.b32.xlu0 %v3184, 64
        %v3278 = vpop.permute.xlu0 %3277
        %3279 = vrot.lane.b32.xlu0 %v3185, 64
        %v3280 = vpop.permute.xlu0 %3279
        %3281 = vrot.lane.b32.xlu0 %v3186, 64
        %v3282 = vpop.permute.xlu0 %3281
        %3315 = vst.msk [vmem:[#allocation3 + $0x8] sm:$0xff] %vm697, %v3220
        %3316 = vst.msk [vmem:[#allocation3 + $0x20] sm:$0xff] %vm697, %v3222
        %3317 = vst.msk [vmem:[#allocation3 + $0x38] sm:$0xff] %vm697, %v3224
        %3318 = vst.msk [vmem:[#allocation3 + $0x50] sm:$0xff] %vm697, %v3226
        %3319 = vst.msk [vmem:[#allocation3 + $0x68] sm:$0xff] %vm697, %v3228
        %3320 = vst.msk [vmem:[#allocation3 + $0x80] sm:$0xff] %vm697, %v3230
        %3321 = vst.msk [vmem:[#allocation3 + $0x98] sm:$0xff] %vm697, %v3232
        %3322 = vst.msk [vmem:[#allocation3 + $0xb0] sm:$0xff] %vm697, %v3234
        %3323 = vst.msk [vmem:[#allocation3 + $0xc8] sm:$0xff] %vm697, %v3236
        %3324 = vst.msk [vmem:[#allocation3 + $0xe0] sm:$0xff] %vm697, %v3238
        %3325 = vst.msk [vmem:[#allocation3 + $0xf8] sm:$0xff] %vm697, %v3240
        %3326 = vst.msk [vmem:[#allocation3 + $0x110] sm:$0xff] %vm697, %v3242
        %3327 = vst.msk [vmem:[#allocation3 + $0x128] sm:$0xff] %vm697, %v3244
        %3328 = vst.msk [vmem:[#allocation3 + $0x140] sm:$0xff] %vm697, %v3246
        %3329 = vst.msk [vmem:[#allocation3 + $0x158] sm:$0xff] %vm697, %v3248
        %3330 = vst.msk [vmem:[#allocation3 + $0x170] sm:$0xff] %vm697, %v3250
        %3331 = vst.msk [vmem:[#allocation3 + $0x188] sm:$0xff] %vm697, %v3252
        %3332 = vst.msk [vmem:[#allocation3 + $0x1a0] sm:$0xff] %vm697, %v3254
        %3333 = vst.msk [vmem:[#allocation3 + $0x1b8] sm:$0xff] %vm697, %v3256
        %3334 = vst.msk [vmem:[#allocation3 + $0x1d0] sm:$0xff] %vm697, %v3258
        %3335 = vst.msk [vmem:[#allocation3 + $0x1e8] sm:$0xff] %vm697, %v3260
        %3336 = vst.msk [vmem:[#allocation3 + $0x200] sm:$0xff] %vm697, %v3262
        %3337 = vst.msk [vmem:[#allocation3 + $0x218] sm:$0xff] %vm697, %v3264
        %3338 = vst.msk [vmem:[#allocation3 + $0x230] sm:$0xff] %vm697, %v3266
        %3339 = vst.msk [vmem:[#allocation3 + $0x248] sm:$0xff] %vm697, %v3268
        %3340 = vst.msk [vmem:[#allocation3 + $0x260] sm:$0xff] %vm697, %v3270
        %3341 = vst.msk [vmem:[#allocation3 + $0x278] sm:$0xff] %vm697, %v3272
        %3342 = vst.msk [vmem:[#allocation3 + $0x290] sm:$0xff] %vm697, %v3274
        %3343 = vst.msk [vmem:[#allocation3 + $0x2a8] sm:$0xff] %vm697, %v3276
        %3344 = vst.msk [vmem:[#allocation3 + $0x2c0] sm:$0xff] %vm697, %v3278
        %3345 = vst.msk [vmem:[#allocation3 + $0x2d8] sm:$0xff] %vm697, %v3280
        %3346 = vst.msk [vmem:[#allocation3 + $0x2f0] sm:$0xff] %vm697, %v3282
        %v3347 = vld [vmem:[%s1179 + $0x1] sm:$0xff]
        %v3348 = vld [vmem:[%s1179 + $0x9] sm:$0xff]
        %v3349 = vld [vmem:[%s1179 + $0x19] sm:$0xff]
        %v3350 = vld [vmem:[%s1179 + $0x21] sm:$0xff]
        %v3351 = vld [vmem:[%s1179 + $0x31] sm:$0xff]
        %v3352 = vld [vmem:[%s1179 + $0x39] sm:$0xff]
        %v3353 = vld [vmem:[%s1179 + $0x49] sm:$0xff]
        %v3354 = vld [vmem:[%s1179 + $0x51] sm:$0xff]
        %v3355 = vld [vmem:[%s1179 + $0x61] sm:$0xff]
        %v3356 = vld [vmem:[%s1179 + $0x69] sm:$0xff]
        %v3357 = vld [vmem:[%s1179 + $0x79] sm:$0xff]
        %v3358 = vld [vmem:[%s1179 + $0x81] sm:$0xff]
        %v3359 = vld [vmem:[%s1179 + $0x91] sm:$0xff]
        %v3360 = vld [vmem:[%s1179 + $0x99] sm:$0xff]
        %v3361 = vld [vmem:[%s1179 + $0xa9] sm:$0xff]
        %v3362 = vld [vmem:[%s1179 + $0xb1] sm:$0xff]
        %v3363 = vld [vmem:[%s1179 + $0xc1] sm:$0xff]
        %v3364 = vld [vmem:[%s1179 + $0xc9] sm:$0xff]
        %v3365 = vld [vmem:[%s1179 + $0xd9] sm:$0xff]
        %v3366 = vld [vmem:[%s1179 + $0xe1] sm:$0xff]
        %v3367 = vld [vmem:[%s1179 + $0xf1] sm:$0xff]
        %v3368 = vld [vmem:[%s1179 + $0xf9] sm:$0xff]
        %v3369 = vld [vmem:[%s1179 + $0x109] sm:$0xff]
        %v3370 = vld [vmem:[%s1179 + $0x111] sm:$0xff]
        %v3371 = vld [vmem:[%s1179 + $0x121] sm:$0xff]
        %v3372 = vld [vmem:[%s1179 + $0x129] sm:$0xff]
        %v3373 = vld [vmem:[%s1179 + $0x139] sm:$0xff]
        %v3374 = vld [vmem:[%s1179 + $0x141] sm:$0xff]
        %v3375 = vld [vmem:[%s1179 + $0x151] sm:$0xff]
        %v3376 = vld [vmem:[%s1179 + $0x159] sm:$0xff]
        %v3377 = vld [vmem:[%s1179 + $0x169] sm:$0xff]
        %v3378 = vld [vmem:[%s1179 + $0x171] sm:$0xff]
        %3411 = vrot.lane.b32.xlu0 %v3347, 96
        %v3412 = vpop.permute.xlu0 %3411
        %3413 = vrot.lane.b32.xlu0 %v3348, 96
        %v3414 = vpop.permute.xlu0 %3413
        %3415 = vrot.lane.b32.xlu0 %v3349, 96
        %v3416 = vpop.permute.xlu0 %3415
        %3417 = vrot.lane.b32.xlu0 %v3350, 96
        %v3418 = vpop.permute.xlu0 %3417
        %3419 = vrot.lane.b32.xlu0 %v3351, 96
        %v3420 = vpop.permute.xlu0 %3419
        %3421 = vrot.lane.b32.xlu0 %v3352, 96
        %v3422 = vpop.permute.xlu0 %3421
        %3423 = vrot.lane.b32.xlu0 %v3353, 96
        %v3424 = vpop.permute.xlu0 %3423
        %3425 = vrot.lane.b32.xlu0 %v3354, 96
        %v3426 = vpop.permute.xlu0 %3425
        %3427 = vrot.lane.b32.xlu0 %v3355, 96
        %v3428 = vpop.permute.xlu0 %3427
        %3429 = vrot.lane.b32.xlu0 %v3356, 96
        %v3430 = vpop.permute.xlu0 %3429
        %3431 = vrot.lane.b32.xlu0 %v3357, 96
        %v3432 = vpop.permute.xlu0 %3431
        %3433 = vrot.lane.b32.xlu0 %v3358, 96
        %v3434 = vpop.permute.xlu0 %3433
        %3435 = vrot.lane.b32.xlu0 %v3359, 96
        %v3436 = vpop.permute.xlu0 %3435
        %3437 = vrot.lane.b32.xlu0 %v3360, 96
        %v3438 = vpop.permute.xlu0 %3437
        %3439 = vrot.lane.b32.xlu0 %v3361, 96
        %v3440 = vpop.permute.xlu0 %3439
        %3441 = vrot.lane.b32.xlu0 %v3362, 96
        %v3442 = vpop.permute.xlu0 %3441
        %3443 = vrot.lane.b32.xlu0 %v3363, 96
        %v3444 = vpop.permute.xlu0 %3443
        %3445 = vrot.lane.b32.xlu0 %v3364, 96
        %v3446 = vpop.permute.xlu0 %3445
        %3447 = vrot.lane.b32.xlu0 %v3365, 96
        %v3448 = vpop.permute.xlu0 %3447
        %3449 = vrot.lane.b32.xlu0 %v3366, 96
        %v3450 = vpop.permute.xlu0 %3449
        %3451 = vrot.lane.b32.xlu0 %v3367, 96
        %v3452 = vpop.permute.xlu0 %3451
        %3453 = vrot.lane.b32.xlu0 %v3368, 96
        %v3454 = vpop.permute.xlu0 %3453
        %3455 = vrot.lane.b32.xlu0 %v3369, 96
        %v3456 = vpop.permute.xlu0 %3455
        %3457 = vrot.lane.b32.xlu0 %v3370, 96
        %v3458 = vpop.permute.xlu0 %3457
        %3459 = vrot.lane.b32.xlu0 %v3371, 96
        %v3460 = vpop.permute.xlu0 %3459
        %3461 = vrot.lane.b32.xlu0 %v3372, 96
        %v3462 = vpop.permute.xlu0 %3461
        %3463 = vrot.lane.b32.xlu0 %v3373, 96
        %v3464 = vpop.permute.xlu0 %3463
        %3465 = vrot.lane.b32.xlu0 %v3374, 96
        %v3466 = vpop.permute.xlu0 %3465
        %3467 = vrot.lane.b32.xlu0 %v3375, 96
        %v3468 = vpop.permute.xlu0 %3467
        %3469 = vrot.lane.b32.xlu0 %v3376, 96
        %v3470 = vpop.permute.xlu0 %3469
        %3471 = vrot.lane.b32.xlu0 %v3377, 96
        %v3472 = vpop.permute.xlu0 %3471
        %3473 = vrot.lane.b32.xlu0 %v3378, 96
        %v3474 = vpop.permute.xlu0 %3473
        %3507 = vst.msk [vmem:[#allocation3 + $0x8] sm:$0xff] %vm890, %v3412
        %3508 = vst.msk [vmem:[#allocation3 + $0x20] sm:$0xff] %vm890, %v3414
        %3509 = vst.msk [vmem:[#allocation3 + $0x38] sm:$0xff] %vm890, %v3416
        %3510 = vst.msk [vmem:[#allocation3 + $0x50] sm:$0xff] %vm890, %v3418
        %3511 = vst.msk [vmem:[#allocation3 + $0x68] sm:$0xff] %vm890, %v3420
        %3512 = vst.msk [vmem:[#allocation3 + $0x80] sm:$0xff] %vm890, %v3422
        %3513 = vst.msk [vmem:[#allocation3 + $0x98] sm:$0xff] %vm890, %v3424
        %3514 = vst.msk [vmem:[#allocation3 + $0xb0] sm:$0xff] %vm890, %v3426
        %3515 = vst.msk [vmem:[#allocation3 + $0xc8] sm:$0xff] %vm890, %v3428
        %3516 = vst.msk [vmem:[#allocation3 + $0xe0] sm:$0xff] %vm890, %v3430
        %3517 = vst.msk [vmem:[#allocation3 + $0xf8] sm:$0xff] %vm890, %v3432
        %3518 = vst.msk [vmem:[#allocation3 + $0x110] sm:$0xff] %vm890, %v3434
        %3519 = vst.msk [vmem:[#allocation3 + $0x128] sm:$0xff] %vm890, %v3436
        %3520 = vst.msk [vmem:[#allocation3 + $0x140] sm:$0xff] %vm890, %v3438
        %3521 = vst.msk [vmem:[#allocation3 + $0x158] sm:$0xff] %vm890, %v3440
        %3522 = vst.msk [vmem:[#allocation3 + $0x170] sm:$0xff] %vm890, %v3442
        %3523 = vst.msk [vmem:[#allocation3 + $0x188] sm:$0xff] %vm890, %v3444
        %3524 = vst.msk [vmem:[#allocation3 + $0x1a0] sm:$0xff] %vm890, %v3446
        %3525 = vst.msk [vmem:[#allocation3 + $0x1b8] sm:$0xff] %vm890, %v3448
        %3526 = vst.msk [vmem:[#allocation3 + $0x1d0] sm:$0xff] %vm890, %v3450
        %3527 = vst.msk [vmem:[#allocation3 + $0x1e8] sm:$0xff] %vm890, %v3452
        %3528 = vst.msk [vmem:[#allocation3 + $0x200] sm:$0xff] %vm890, %v3454
        %3529 = vst.msk [vmem:[#allocation3 + $0x218] sm:$0xff] %vm890, %v3456
        %3530 = vst.msk [vmem:[#allocation3 + $0x230] sm:$0xff] %vm890, %v3458
        %3531 = vst.msk [vmem:[#allocation3 + $0x248] sm:$0xff] %vm890, %v3460
        %3532 = vst.msk [vmem:[#allocation3 + $0x260] sm:$0xff] %vm890, %v3462
        %3533 = vst.msk [vmem:[#allocation3 + $0x278] sm:$0xff] %vm890, %v3464
        %3534 = vst.msk [vmem:[#allocation3 + $0x290] sm:$0xff] %vm890, %v3466
        %3535 = vst.msk [vmem:[#allocation3 + $0x2a8] sm:$0xff] %vm890, %v3468
        %3536 = vst.msk [vmem:[#allocation3 + $0x2c0] sm:$0xff] %vm890, %v3470
        %3537 = vst.msk [vmem:[#allocation3 + $0x2d8] sm:$0xff] %vm890, %v3472
        %3538 = vst.msk [vmem:[#allocation3 + $0x2f0] sm:$0xff] %vm890, %v3474
        %v3539 = vld [vmem:[%s1179 + $0x2] sm:$0xff]
        %v3540 = vld [vmem:[%s1179 + $0xa] sm:$0xff]
        %v3541 = vld [vmem:[%s1179 + $0x1a] sm:$0xff]
        %v3542 = vld [vmem:[%s1179 + $0x22] sm:$0xff]
        %v3543 = vld [vmem:[%s1179 + $0x32] sm:$0xff]
        %v3544 = vld [vmem:[%s1179 + $0x3a] sm:$0xff]
        %v3545 = vld [vmem:[%s1179 + $0x4a] sm:$0xff]
        %v3546 = vld [vmem:[%s1179 + $0x52] sm:$0xff]
        %v3547 = vld [vmem:[%s1179 + $0x62] sm:$0xff]
        %v3548 = vld [vmem:[%s1179 + $0x6a] sm:$0xff]
        %v3549 = vld [vmem:[%s1179 + $0x7a] sm:$0xff]
        %v3550 = vld [vmem:[%s1179 + $0x82] sm:$0xff]
        %v3551 = vld [vmem:[%s1179 + $0x92] sm:$0xff]
        %v3552 = vld [vmem:[%s1179 + $0x9a] sm:$0xff]
        %v3553 = vld [vmem:[%s1179 + $0xaa] sm:$0xff]
        %v3554 = vld [vmem:[%s1179 + $0xb2] sm:$0xff]
        %v3555 = vld [vmem:[%s1179 + $0xc2] sm:$0xff]
        %v3556 = vld [vmem:[%s1179 + $0xca] sm:$0xff]
        %v3557 = vld [vmem:[%s1179 + $0xda] sm:$0xff]
        %v3558 = vld [vmem:[%s1179 + $0xe2] sm:$0xff]
        %v3559 = vld [vmem:[%s1179 + $0xf2] sm:$0xff]
        %v3560 = vld [vmem:[%s1179 + $0xfa] sm:$0xff]
        %v3561 = vld [vmem:[%s1179 + $0x10a] sm:$0xff]
        %v3562 = vld [vmem:[%s1179 + $0x112] sm:$0xff]
        %v3563 = vld [vmem:[%s1179 + $0x122] sm:$0xff]
        %v3564 = vld [vmem:[%s1179 + $0x12a] sm:$0xff]
        %v3565 = vld [vmem:[%s1179 + $0x13a] sm:$0xff]
        %v3566 = vld [vmem:[%s1179 + $0x142] sm:$0xff]
        %v3567 = vld [vmem:[%s1179 + $0x152] sm:$0xff]
        %v3568 = vld [vmem:[%s1179 + $0x15a] sm:$0xff]
        %v3569 = vld [vmem:[%s1179 + $0x16a] sm:$0xff]
        %v3570 = vld [vmem:[%s1179 + $0x172] sm:$0xff]
        %3571 = vst.msk [vmem:[#allocation3 + $0x10] sm:$0xff] %vm169, %v3539
        %3572 = vst.msk [vmem:[#allocation3 + $0x28] sm:$0xff] %vm169, %v3540
        %3573 = vst.msk [vmem:[#allocation3 + $0x40] sm:$0xff] %vm169, %v3541
        %3574 = vst.msk [vmem:[#allocation3 + $0x58] sm:$0xff] %vm169, %v3542
        %3575 = vst.msk [vmem:[#allocation3 + $0x70] sm:$0xff] %vm169, %v3543
        %3576 = vst.msk [vmem:[#allocation3 + $0x88] sm:$0xff] %vm169, %v3544
        %3577 = vst.msk [vmem:[#allocation3 + $0xa0] sm:$0xff] %vm169, %v3545
        %3578 = vst.msk [vmem:[#allocation3 + $0xb8] sm:$0xff] %vm169, %v3546
        %3579 = vst.msk [vmem:[#allocation3 + $0xd0] sm:$0xff] %vm169, %v3547
        %3580 = vst.msk [vmem:[#allocation3 + $0xe8] sm:$0xff] %vm169, %v3548
        %3581 = vst.msk [vmem:[#allocation3 + $0x100] sm:$0xff] %vm169, %v3549
        %3582 = vst.msk [vmem:[#allocation3 + $0x118] sm:$0xff] %vm169, %v3550
        %3583 = vst.msk [vmem:[#allocation3 + $0x130] sm:$0xff] %vm169, %v3551
        %3584 = vst.msk [vmem:[#allocation3 + $0x148] sm:$0xff] %vm169, %v3552
        %3585 = vst.msk [vmem:[#allocation3 + $0x160] sm:$0xff] %vm169, %v3553
        %3586 = vst.msk [vmem:[#allocation3 + $0x178] sm:$0xff] %vm169, %v3554
        %3587 = vst.msk [vmem:[#allocation3 + $0x190] sm:$0xff] %vm169, %v3555
        %3588 = vst.msk [vmem:[#allocation3 + $0x1a8] sm:$0xff] %vm169, %v3556
        %3589 = vst.msk [vmem:[#allocation3 + $0x1c0] sm:$0xff] %vm169, %v3557
        %3590 = vst.msk [vmem:[#allocation3 + $0x1d8] sm:$0xff] %vm169, %v3558
        %3591 = vst.msk [vmem:[#allocation3 + $0x1f0] sm:$0xff] %vm169, %v3559
        %3592 = vst.msk [vmem:[#allocation3 + $0x208] sm:$0xff] %vm169, %v3560
        %3593 = vst.msk [vmem:[#allocation3 + $0x220] sm:$0xff] %vm169, %v3561
        %3594 = vst.msk [vmem:[#allocation3 + $0x238] sm:$0xff] %vm169, %v3562
        %3595 = vst.msk [vmem:[#allocation3 + $0x250] sm:$0xff] %vm169, %v3563
        %3596 = vst.msk [vmem:[#allocation3 + $0x268] sm:$0xff] %vm169, %v3564
        %3597 = vst.msk [vmem:[#allocation3 + $0x280] sm:$0xff] %vm169, %v3565
        %3598 = vst.msk [vmem:[#allocation3 + $0x298] sm:$0xff] %vm169, %v3566
        %3599 = vst.msk [vmem:[#allocation3 + $0x2b0] sm:$0xff] %vm169, %v3567
        %3600 = vst.msk [vmem:[#allocation3 + $0x2c8] sm:$0xff] %vm169, %v3568
        %3601 = vst.msk [vmem:[#allocation3 + $0x2e0] sm:$0xff] %vm169, %v3569
        %3602 = vst.msk [vmem:[#allocation3 + $0x2f8] sm:$0xff] %vm169, %v3570
        %v3603 = vld [vmem:[#allocation3] sm:$0xff]
        %v3604 = vld [vmem:[#allocation3 + $0x8] sm:$0xff]
        %v3605 = vld [vmem:[#allocation3 + $0x10] sm:$0xff]
        %v3606 = vld [vmem:[#allocation3 + $0x18] sm:$0xff]
        %v3607 = vld [vmem:[#allocation3 + $0x20] sm:$0xff]
        %v3608 = vld [vmem:[#allocation3 + $0x28] sm:$0xff]
        %v3609 = vld [vmem:[#allocation3 + $0x30] sm:$0xff]
        %v3610 = vld [vmem:[#allocation3 + $0x38] sm:$0xff]
        %v3611 = vld [vmem:[#allocation3 + $0x40] sm:$0xff]
        %v3612 = vld [vmem:[#allocation3 + $0x48] sm:$0xff]
        %v3613 = vld [vmem:[#allocation3 + $0x50] sm:$0xff]
        %v3614 = vld [vmem:[#allocation3 + $0x58] sm:$0xff]
        %v3615 = vld [vmem:[#allocation3 + $0x60] sm:$0xff]
        %v3616 = vld [vmem:[#allocation3 + $0x68] sm:$0xff]
        %v3617 = vld [vmem:[#allocation3 + $0x70] sm:$0xff]
        %v3618 = vld [vmem:[#allocation3 + $0x78] sm:$0xff]
        %v3619 = vld [vmem:[#allocation3 + $0x80] sm:$0xff]
        %v3620 = vld [vmem:[#allocation3 + $0x88] sm:$0xff]
        %v3621 = vld [vmem:[#allocation3 + $0x90] sm:$0xff]
        %v3622 = vld [vmem:[#allocation3 + $0x98] sm:$0xff]
        %v3623 = vld [vmem:[#allocation3 + $0xa0] sm:$0xff]
        %v3624 = vld [vmem:[#allocation3 + $0xa8] sm:$0xff]
        %v3625 = vld [vmem:[#allocation3 + $0xb0] sm:$0xff]
        %v3626 = vld [vmem:[#allocation3 + $0xb8] sm:$0xff]
        %v3627 = vld [vmem:[#allocation3 + $0xc0] sm:$0xff]
        %v3628 = vld [vmem:[#allocation3 + $0xc8] sm:$0xff]
        %v3629 = vld [vmem:[#allocation3 + $0xd0] sm:$0xff]
        %v3630 = vld [vmem:[#allocation3 + $0xd8] sm:$0xff]
        %v3631 = vld [vmem:[#allocation3 + $0xe0] sm:$0xff]
        %v3632 = vld [vmem:[#allocation3 + $0xe8] sm:$0xff]
        %v3633 = vld [vmem:[#allocation3 + $0xf0] sm:$0xff]
        %v3634 = vld [vmem:[#allocation3 + $0xf8] sm:$0xff]
        %v3635 = vld [vmem:[#allocation3 + $0x100] sm:$0xff]
        %v3636 = vld [vmem:[#allocation3 + $0x108] sm:$0xff]
        %v3637 = vld [vmem:[#allocation3 + $0x110] sm:$0xff]
        %v3638 = vld [vmem:[#allocation3 + $0x118] sm:$0xff]
        %v3639 = vld [vmem:[#allocation3 + $0x120] sm:$0xff]
        %v3640 = vld [vmem:[#allocation3 + $0x128] sm:$0xff]
        %v3641 = vld [vmem:[#allocation3 + $0x130] sm:$0xff]
        %v3642 = vld [vmem:[#allocation3 + $0x138] sm:$0xff]
        %v3643 = vld [vmem:[#allocation3 + $0x140] sm:$0xff]
        %v3644 = vld [vmem:[#allocation3 + $0x148] sm:$0xff]
        %v3645 = vld [vmem:[#allocation3 + $0x150] sm:$0xff]
        %v3646 = vld [vmem:[#allocation3 + $0x158] sm:$0xff]
        %v3647 = vld [vmem:[#allocation3 + $0x160] sm:$0xff]
        %v3648 = vld [vmem:[#allocation3 + $0x168] sm:$0xff]
        %v3649 = vld [vmem:[#allocation3 + $0x170] sm:$0xff]
        %v3650 = vld [vmem:[#allocation3 + $0x178] sm:$0xff]
        %v3651 = vld [vmem:[#allocation3 + $0x180] sm:$0xff]
        %v3652 = vld [vmem:[#allocation3 + $0x188] sm:$0xff]
        %v3653 = vld [vmem:[#allocation3 + $0x190] sm:$0xff]
        %v3654 = vld [vmem:[#allocation3 + $0x198] sm:$0xff]
        %v3655 = vld [vmem:[#allocation3 + $0x1a0] sm:$0xff]
        %v3656 = vld [vmem:[#allocation3 + $0x1a8] sm:$0xff]
        %v3657 = vld [vmem:[#allocation3 + $0x1b0] sm:$0xff]
        %v3658 = vld [vmem:[#allocation3 + $0x1b8] sm:$0xff]
        %v3659 = vld [vmem:[#allocation3 + $0x1c0] sm:$0xff]
        %v3660 = vld [vmem:[#allocation3 + $0x1c8] sm:$0xff]
        %v3661 = vld [vmem:[#allocation3 + $0x1d0] sm:$0xff]
        %v3662 = vld [vmem:[#allocation3 + $0x1d8] sm:$0xff]
        %v3663 = vld [vmem:[#allocation3 + $0x1e0] sm:$0xff]
        %v3664 = vld [vmem:[#allocation3 + $0x1e8] sm:$0xff]
        %v3665 = vld [vmem:[#allocation3 + $0x1f0] sm:$0xff]
        %v3666 = vld [vmem:[#allocation3 + $0x1f8] sm:$0xff]
        %v3667 = vld [vmem:[#allocation3 + $0x200] sm:$0xff]
        %v3668 = vld [vmem:[#allocation3 + $0x208] sm:$0xff]
        %v3669 = vld [vmem:[#allocation3 + $0x210] sm:$0xff]
        %v3670 = vld [vmem:[#allocation3 + $0x218] sm:$0xff]
        %v3671 = vld [vmem:[#allocation3 + $0x220] sm:$0xff]
        %v3672 = vld [vmem:[#allocation3 + $0x228] sm:$0xff]
        %v3673 = vld [vmem:[#allocation3 + $0x230] sm:$0xff]
        %v3674 = vld [vmem:[#allocation3 + $0x238] sm:$0xff]
        %v3675 = vld [vmem:[#allocation3 + $0x240] sm:$0xff]
        %v3676 = vld [vmem:[#allocation3 + $0x248] sm:$0xff]
        %v3677 = vld [vmem:[#allocation3 + $0x250] sm:$0xff]
        %v3678 = vld [vmem:[#allocation3 + $0x258] sm:$0xff]
        %v3679 = vld [vmem:[#allocation3 + $0x260] sm:$0xff]
        %v3680 = vld [vmem:[#allocation3 + $0x268] sm:$0xff]
        %v3681 = vld [vmem:[#allocation3 + $0x270] sm:$0xff]
        %v3682 = vld [vmem:[#allocation3 + $0x278] sm:$0xff]
        %v3683 = vld [vmem:[#allocation3 + $0x280] sm:$0xff]
        %v3684 = vld [vmem:[#allocation3 + $0x288] sm:$0xff]
        %v3685 = vld [vmem:[#allocation3 + $0x290] sm:$0xff]
        %v3686 = vld [vmem:[#allocation3 + $0x298] sm:$0xff]
        %v3687 = vld [vmem:[#allocation3 + $0x2a0] sm:$0xff]
        %v3688 = vld [vmem:[#allocation3 + $0x2a8] sm:$0xff]
        %v3689 = vld [vmem:[#allocation3 + $0x2b0] sm:$0xff]
        %v3690 = vld [vmem:[#allocation3 + $0x2b8] sm:$0xff]
        %v3691 = vld [vmem:[#allocation3 + $0x2c0] sm:$0xff]
        %v3692 = vld [vmem:[#allocation3 + $0x2c8] sm:$0xff]
        %v3693 = vld [vmem:[#allocation3 + $0x2d0] sm:$0xff]
        %v3694 = vld [vmem:[#allocation3 + $0x2d8] sm:$0xff]
        %v3695 = vld [vmem:[#allocation3 + $0x2e0] sm:$0xff]
        %v3696 = vld [vmem:[#allocation3 + $0x2e8] sm:$0xff]
        %v3697 = vld [vmem:[#allocation3 + $0x2f0] sm:$0xff]
        %v3698 = vld [vmem:[#allocation3 + $0x2f8] sm:$0xff]
        %v3699 = vld [vmem:[%s2] sm:$0xff]
        %v3700 = vld [vmem:[%s2 + $0x8] sm:$0xff]
        %v3701 = vld [vmem:[%s2 + $0x10] sm:$0xff]
        %v3702 = vld [vmem:[%s2 + $0x18] sm:$0xff]
        %v3703 = vld [vmem:[%s2 + $0x20] sm:$0xff]
        %v3704 = vld [vmem:[%s2 + $0x28] sm:$0xff]
        %v3705 = vld [vmem:[%s2 + $0x30] sm:$0xff]
        %v3706 = vld [vmem:[%s2 + $0x38] sm:$0xff]
        %v3707 = vld [vmem:[%s2 + $0x40] sm:$0xff]
        %v3708 = vld [vmem:[%s2 + $0x48] sm:$0xff]
        %v3709 = vld [vmem:[%s2 + $0x50] sm:$0xff]
        %v3710 = vld [vmem:[%s2 + $0x58] sm:$0xff]
        %v3711 = vld [vmem:[%s2 + $0x60] sm:$0xff]
        %v3712 = vld [vmem:[%s2 + $0x68] sm:$0xff]
        %v3713 = vld [vmem:[%s2 + $0x70] sm:$0xff]
        %v3714 = vld [vmem:[%s2 + $0x78] sm:$0xff]
        %v3715 = vld [vmem:[%s2 + $0x80] sm:$0xff]
        %v3716 = vld [vmem:[%s2 + $0x88] sm:$0xff]
        %v3717 = vld [vmem:[%s2 + $0x90] sm:$0xff]
        %v3718 = vld [vmem:[%s2 + $0x98] sm:$0xff]
        %v3719 = vld [vmem:[%s2 + $0xa0] sm:$0xff]
        %v3720 = vld [vmem:[%s2 + $0xa8] sm:$0xff]
        %v3721 = vld [vmem:[%s2 + $0xb0] sm:$0xff]
        %v3722 = vld [vmem:[%s2 + $0xb8] sm:$0xff]
        %v3723 = vld [vmem:[%s2 + $0xc0] sm:$0xff]
        %v3724 = vld [vmem:[%s2 + $0xc8] sm:$0xff]
        %v3725 = vld [vmem:[%s2 + $0xd0] sm:$0xff]
        %v3726 = vld [vmem:[%s2 + $0xd8] sm:$0xff]
        %v3727 = vld [vmem:[%s2 + $0xe0] sm:$0xff]
        %v3728 = vld [vmem:[%s2 + $0xe8] sm:$0xff]
        %v3729 = vld [vmem:[%s2 + $0xf0] sm:$0xff]
        %v3730 = vld [vmem:[%s2 + $0xf8] sm:$0xff]
        %v3731 = vld [vmem:[%s2 + $0x100] sm:$0xff]
        %v3732 = vld [vmem:[%s2 + $0x108] sm:$0xff]
        %v3733 = vld [vmem:[%s2 + $0x110] sm:$0xff]
        %v3734 = vld [vmem:[%s2 + $0x118] sm:$0xff]
        %v3735 = vld [vmem:[%s168] sm:$0xff]
        %v3736 = vld [vmem:[%s168 + $0x8] sm:$0xff]
        %v3737 = vld [vmem:[%s168 + $0x10] sm:$0xff]
        %v3738 = vld [vmem:[%s168 + $0x18] sm:$0xff]
        %v3739 = vld [vmem:[%s168 + $0x20] sm:$0xff]
        %v3740 = vld [vmem:[%s168 + $0x28] sm:$0xff]
        %v3741 = vld [vmem:[%s168 + $0x30] sm:$0xff]
        %v3742 = vld [vmem:[%s168 + $0x38] sm:$0xff]
        %v3743 = vld [vmem:[%s168 + $0x40] sm:$0xff]
        %v3744 = vld [vmem:[%s168 + $0x48] sm:$0xff]
        %v3745 = vld [vmem:[%s168 + $0x50] sm:$0xff]
        %v3746 = vld [vmem:[%s168 + $0x58] sm:$0xff]
        %v3747 = vld [vmem:[%s168 + $0x60] sm:$0xff]
        %v3748 = vld [vmem:[%s168 + $0x68] sm:$0xff]
        %v3749 = vld [vmem:[%s168 + $0x70] sm:$0xff]
        %v3750 = vld [vmem:[%s168 + $0x78] sm:$0xff]
        %v3751 = vld [vmem:[%s168 + $0x80] sm:$0xff]
        %v3752 = vld [vmem:[%s168 + $0x88] sm:$0xff]
        %v3753 = vld [vmem:[%s168 + $0x90] sm:$0xff]
        %v3754 = vld [vmem:[%s168 + $0x98] sm:$0xff]
        %v3755 = vld [vmem:[%s168 + $0xa0] sm:$0xff]
        %v3756 = vld [vmem:[%s168 + $0xa8] sm:$0xff]
        %v3757 = vld [vmem:[%s168 + $0xb0] sm:$0xff]
        %v3758 = vld [vmem:[%s168 + $0xb8] sm:$0xff]
        %v3759 = vld [vmem:[%s168 + $0xc0] sm:$0xff]
        %v3760 = vld [vmem:[%s168 + $0xc8] sm:$0xff]
        %v3761 = vld [vmem:[%s168 + $0xd0] sm:$0xff]
        %v3762 = vld [vmem:[%s168 + $0xd8] sm:$0xff]
        %v3763 = vld [vmem:[%s168 + $0xe0] sm:$0xff]
        %v3764 = vld [vmem:[%s168 + $0xe8] sm:$0xff]
        %v3765 = vld [vmem:[%s168 + $0xf0] sm:$0xff]
        %v3766 = vld [vmem:[%s168 + $0xf8] sm:$0xff]
        %v3768 = vsel %vm169, %v3605, 0
        %v3771 = vsel %vm169, %v3608, 0
        %v3774 = vsel %vm169, %v3611, 0
        %v3777 = vsel %vm169, %v3614, 0
        %v3780 = vsel %vm169, %v3617, 0
        %v3783 = vsel %vm169, %v3620, 0
        %v3786 = vsel %vm169, %v3623, 0
        %v3789 = vsel %vm169, %v3626, 0
        %v3792 = vsel %vm169, %v3629, 0
        %v3795 = vsel %vm169, %v3632, 0
        %v3798 = vsel %vm169, %v3635, 0
        %v3801 = vsel %vm169, %v3638, 0
        %v3804 = vsel %vm169, %v3641, 0
        %v3807 = vsel %vm169, %v3644, 0
        %v3810 = vsel %vm169, %v3647, 0
        %v3813 = vsel %vm169, %v3650, 0
        %v3816 = vsel %vm169, %v3653, 0
        %v3819 = vsel %vm169, %v3656, 0
        %v3822 = vsel %vm169, %v3659, 0
        %v3825 = vsel %vm169, %v3662, 0
        %v3828 = vsel %vm169, %v3665, 0
        %v3831 = vsel %vm169, %v3668, 0
        %v3834 = vsel %vm169, %v3671, 0
        %v3837 = vsel %vm169, %v3674, 0
        %v3840 = vsel %vm169, %v3677, 0
        %v3843 = vsel %vm169, %v3680, 0
        %v3846 = vsel %vm169, %v3683, 0
        %v3849 = vsel %vm169, %v3686, 0
        %v3852 = vsel %vm169, %v3689, 0
        %v3855 = vsel %vm169, %v3692, 0
        %v3858 = vsel %vm169, %v3695, 0
        %v3861 = vsel %vm169, %v3698, 0
        %3863 = vmatpush.msra.mxu0 %v3714
        %3864 = vmatpush.msra.mxu0 %v3713
        %3865 = vmatpush.msra.mxu0 %v3712
        %3866 = vmatpush.msra.mxu0 %v3711
        %3867 = vmatpush.msra.mxu0 %v3710
        %3868 = vmatpush.msra.mxu0 %v3709
        %3869 = vmatpush.msra.mxu0 %v3708
        %3870 = vmatpush.msra.mxu0 %v3707
        %3871 = vmatpush.msra.mxu0 %v3706
        %3872 = vmatpush.msra.mxu0 %v3705
        %3873 = vmatpush.msra.mxu0 %v3704
        %3874 = vmatpush.msra.mxu0 %v3703
        %3875 = vmatpush.msra.mxu0 %v3702
        %3876 = vmatpush.msra.mxu0 %v3701
        %3877 = vmatpush.msra.mxu0 %v3700
        %3878 = vmatpush.msra.mxu0 %v3699
        %3879 = vmatmul.f32.gmra.mxu0 %v3603
        %v3880 = vpop.f32.mrf.mxu0
        %v3881 = vadd.f32 %v3735, %v3880
        %3882 = vmatmul.f32.gmra.mxu0 %v3606
        %v3883 = vpop.f32.mrf.mxu0
        %v3884 = vadd.f32 %v3736, %v3883
        %3885 = vmatmul.f32.gmra.mxu0 %v3609
        %v3886 = vpop.f32.mrf.mxu0
        %v3887 = vadd.f32 %v3737, %v3886
        %3888 = vmatmul.f32.gmra.mxu0 %v3612
        %v3889 = vpop.f32.mrf.mxu0
        %v3890 = vadd.f32 %v3738, %v3889
        %3891 = vmatmul.f32.gmra.mxu0 %v3615
        %v3892 = vpop.f32.mrf.mxu0
        %v3893 = vadd.f32 %v3739, %v3892
        %3894 = vmatmul.f32.gmra.mxu0 %v3618
        %v3895 = vpop.f32.mrf.mxu0
        %v3896 = vadd.f32 %v3740, %v3895
        %3897 = vmatmul.f32.gmra.mxu0 %v3621
        %v3898 = vpop.f32.mrf.mxu0
        %v3899 = vadd.f32 %v3741, %v3898
        %3900 = vmatmul.f32.gmra.mxu0 %v3624
        %v3901 = vpop.f32.mrf.mxu0
        %v3902 = vadd.f32 %v3742, %v3901
        %3903 = vmatmul.f32.gmra.mxu0 %v3627
        %v3904 = vpop.f32.mrf.mxu0
        %v3905 = vadd.f32 %v3743, %v3904
        %3906 = vmatmul.f32.gmra.mxu0 %v3630
        %v3907 = vpop.f32.mrf.mxu0
        %v3908 = vadd.f32 %v3744, %v3907
        %3909 = vmatmul.f32.gmra.mxu0 %v3633
        %v3910 = vpop.f32.mrf.mxu0
        %v3911 = vadd.f32 %v3745, %v3910
        %3912 = vmatmul.f32.gmra.mxu0 %v3636
        %v3913 = vpop.f32.mrf.mxu0
        %v3914 = vadd.f32 %v3746, %v3913
        %3915 = vmatmul.f32.gmra.mxu0 %v3639
        %v3916 = vpop.f32.mrf.mxu0
        %v3917 = vadd.f32 %v3747, %v3916
        %3918 = vmatmul.f32.gmra.mxu0 %v3642
        %v3919 = vpop.f32.mrf.mxu0
        %v3920 = vadd.f32 %v3748, %v3919
        %3921 = vmatmul.f32.gmra.mxu0 %v3645
        %v3922 = vpop.f32.mrf.mxu0
        %v3923 = vadd.f32 %v3749, %v3922
        %3924 = vmatmul.f32.gmra.mxu0 %v3648
        %v3925 = vpop.f32.mrf.mxu0
        %v3926 = vadd.f32 %v3750, %v3925
        %3927 = vmatmul.f32.gmra.mxu0 %v3651
        %v3928 = vpop.f32.mrf.mxu0
        %v3929 = vadd.f32 %v3751, %v3928
        %3930 = vmatmul.f32.gmra.mxu0 %v3654
        %v3931 = vpop.f32.mrf.mxu0
        %v3932 = vadd.f32 %v3752, %v3931
        %3933 = vmatmul.f32.gmra.mxu0 %v3657
        %v3934 = vpop.f32.mrf.mxu0
        %v3935 = vadd.f32 %v3753, %v3934
        %3936 = vmatmul.f32.gmra.mxu0 %v3660
        %v3937 = vpop.f32.mrf.mxu0
        %v3938 = vadd.f32 %v3754, %v3937
        %3939 = vmatmul.f32.gmra.mxu0 %v3663
        %v3940 = vpop.f32.mrf.mxu0
        %v3941 = vadd.f32 %v3755, %v3940
        %3942 = vmatmul.f32.gmra.mxu0 %v3666
        %v3943 = vpop.f32.mrf.mxu0
        %v3944 = vadd.f32 %v3756, %v3943
        %3945 = vmatmul.f32.gmra.mxu0 %v3669
        %v3946 = vpop.f32.mrf.mxu0
        %v3947 = vadd.f32 %v3757, %v3946
        %3948 = vmatmul.f32.gmra.mxu0 %v3672
        %v3949 = vpop.f32.mrf.mxu0
        %v3950 = vadd.f32 %v3758, %v3949
        %3951 = vmatmul.f32.gmra.mxu0 %v3675
        %v3952 = vpop.f32.mrf.mxu0
        %v3953 = vadd.f32 %v3759, %v3952
        %3954 = vmatmul.f32.gmra.mxu0 %v3678
        %v3955 = vpop.f32.mrf.mxu0
        %v3956 = vadd.f32 %v3760, %v3955
        %3957 = vmatmul.f32.gmra.mxu0 %v3681
        %v3958 = vpop.f32.mrf.mxu0
        %v3959 = vadd.f32 %v3761, %v3958
        %3960 = vmatmul.f32.gmra.mxu0 %v3684
        %v3961 = vpop.f32.mrf.mxu0
        %v3962 = vadd.f32 %v3762, %v3961
        %3963 = vmatmul.f32.gmra.mxu0 %v3687
        %v3964 = vpop.f32.mrf.mxu0
        %v3965 = vadd.f32 %v3763, %v3964
        %3966 = vmatmul.f32.gmra.mxu0 %v3690
        %v3967 = vpop.f32.mrf.mxu0
        %v3968 = vadd.f32 %v3764, %v3967
        %3969 = vmatmul.f32.gmra.mxu0 %v3693
        %v3970 = vpop.f32.mrf.mxu0
        %v3971 = vadd.f32 %v3765, %v3970
        %3972 = vmatmul.f32.gmra.mxu0 %v3696
        %v3973 = vpop.f32.mrf.mxu0
        %v3974 = vadd.f32 %v3766, %v3973
        %3975 = vdwg.mxu0
        %3976 = vmatpush.msra.mxu0 %v3730
        %3977 = vmatpush.msra.mxu0 %v3729
        %3978 = vmatpush.msra.mxu0 %v3728
        %3979 = vmatpush.msra.mxu0 %v3727
        %3980 = vmatpush.msra.mxu0 %v3726
        %3981 = vmatpush.msra.mxu0 %v3725
        %3982 = vmatpush.msra.mxu0 %v3724
        %3983 = vmatpush.msra.mxu0 %v3723
        %3984 = vmatpush.msra.mxu0 %v3722
        %3985 = vmatpush.msra.mxu0 %v3721
        %3986 = vmatpush.msra.mxu0 %v3720
        %3987 = vmatpush.msra.mxu0 %v3719
        %3988 = vmatpush.msra.mxu0 %v3718
        %3989 = vmatpush.msra.mxu0 %v3717
        %3990 = vmatpush.msra.mxu0 %v3716
        %3991 = vmatpush.msra.mxu0 %v3715
        %3992 = vmatmul.f32.gmra.mxu0 %v3604
        %v3993 = vpop.f32.mrf.mxu0
        %v3994 = vadd.f32 %v3881, %v3993
        %3995 = vmatmul.f32.gmra.mxu0 %v3607
        %v3996 = vpop.f32.mrf.mxu0
        %v3997 = vadd.f32 %v3884, %v3996
        %3998 = vmatmul.f32.gmra.mxu0 %v3610
        %v3999 = vpop.f32.mrf.mxu0
        %v4000 = vadd.f32 %v3887, %v3999
        %4001 = vmatmul.f32.gmra.mxu0 %v3613
        %v4002 = vpop.f32.mrf.mxu0
        %v4003 = vadd.f32 %v3890, %v4002
        %4004 = vmatmul.f32.gmra.mxu0 %v3616
        %v4005 = vpop.f32.mrf.mxu0
        %v4006 = vadd.f32 %v3893, %v4005
        %4007 = vmatmul.f32.gmra.mxu0 %v3619
        %v4008 = vpop.f32.mrf.mxu0
        %v4009 = vadd.f32 %v3896, %v4008
        %4010 = vmatmul.f32.gmra.mxu0 %v3622
        %v4011 = vpop.f32.mrf.mxu0
        %v4012 = vadd.f32 %v3899, %v4011
        %4013 = vmatmul.f32.gmra.mxu0 %v3625
        %v4014 = vpop.f32.mrf.mxu0
        %v4015 = vadd.f32 %v3902, %v4014
        %4016 = vmatmul.f32.gmra.mxu0 %v3628
        %v4017 = vpop.f32.mrf.mxu0
        %v4018 = vadd.f32 %v3905, %v4017
        %4019 = vmatmul.f32.gmra.mxu0 %v3631
        %v4020 = vpop.f32.mrf.mxu0
        %v4021 = vadd.f32 %v3908, %v4020
        %4022 = vmatmul.f32.gmra.mxu0 %v3634
        %v4023 = vpop.f32.mrf.mxu0
        %v4024 = vadd.f32 %v3911, %v4023
        %4025 = vmatmul.f32.gmra.mxu0 %v3637
        %v4026 = vpop.f32.mrf.mxu0
        %v4027 = vadd.f32 %v3914, %v4026
        %4028 = vmatmul.f32.gmra.mxu0 %v3640
        %v4029 = vpop.f32.mrf.mxu0
        %v4030 = vadd.f32 %v3917, %v4029
        %4031 = vmatmul.f32.gmra.mxu0 %v3643
        %v4032 = vpop.f32.mrf.mxu0
        %v4033 = vadd.f32 %v3920, %v4032
        %4034 = vmatmul.f32.gmra.mxu0 %v3646
        %v4035 = vpop.f32.mrf.mxu0
        %v4036 = vadd.f32 %v3923, %v4035
        %4037 = vmatmul.f32.gmra.mxu0 %v3649
        %v4038 = vpop.f32.mrf.mxu0
        %v4039 = vadd.f32 %v3926, %v4038
        %4040 = vmatmul.f32.gmra.mxu0 %v3652
        %v4041 = vpop.f32.mrf.mxu0
        %v4042 = vadd.f32 %v3929, %v4041
        %4043 = vmatmul.f32.gmra.mxu0 %v3655
        %v4044 = vpop.f32.mrf.mxu0
        %v4045 = vadd.f32 %v3932, %v4044
        %4046 = vmatmul.f32.gmra.mxu0 %v3658
        %v4047 = vpop.f32.mrf.mxu0
        %v4048 = vadd.f32 %v3935, %v4047
        %4049 = vmatmul.f32.gmra.mxu0 %v3661
        %v4050 = vpop.f32.mrf.mxu0
        %v4051 = vadd.f32 %v3938, %v4050
        %4052 = vmatmul.f32.gmra.mxu0 %v3664
        %v4053 = vpop.f32.mrf.mxu0
        %v4054 = vadd.f32 %v3941, %v4053
        %4055 = vmatmul.f32.gmra.mxu0 %v3667
        %v4056 = vpop.f32.mrf.mxu0
        %v4057 = vadd.f32 %v3944, %v4056
        %4058 = vmatmul.f32.gmra.mxu0 %v3670
        %v4059 = vpop.f32.mrf.mxu0
        %v4060 = vadd.f32 %v3947, %v4059
        %4061 = vmatmul.f32.gmra.mxu0 %v3673
        %v4062 = vpop.f32.mrf.mxu0
        %v4063 = vadd.f32 %v3950, %v4062
        %4064 = vmatmul.f32.gmra.mxu0 %v3676
        %v4065 = vpop.f32.mrf.mxu0
        %v4066 = vadd.f32 %v3953, %v4065
        %4067 = vmatmul.f32.gmra.mxu0 %v3679
        %v4068 = vpop.f32.mrf.mxu0
        %v4069 = vadd.f32 %v3956, %v4068
        %4070 = vmatmul.f32.gmra.mxu0 %v3682
        %v4071 = vpop.f32.mrf.mxu0
        %v4072 = vadd.f32 %v3959, %v4071
        %4073 = vmatmul.f32.gmra.mxu0 %v3685
        %v4074 = vpop.f32.mrf.mxu0
        %v4075 = vadd.f32 %v3962, %v4074
        %4076 = vmatmul.f32.gmra.mxu0 %v3688
        %v4077 = vpop.f32.mrf.mxu0
        %v4078 = vadd.f32 %v3965, %v4077
        %4079 = vmatmul.f32.gmra.mxu0 %v3691
        %v4080 = vpop.f32.mrf.mxu0
        %v4081 = vadd.f32 %v3968, %v4080
        %4082 = vmatmul.f32.gmra.mxu0 %v3694
        %v4083 = vpop.f32.mrf.mxu0
        %v4084 = vadd.f32 %v3971, %v4083
        %4085 = vmatmul.f32.gmra.mxu0 %v3697
        %v4086 = vpop.f32.mrf.mxu0
        %v4087 = vadd.f32 %v3974, %v4086
        %4088 = vdwg.mxu0
        %4089 = vmatpush.msra.mxu0 0.0
        %4090 = vmatpush.msra.mxu0 0.0
        %4091 = vmatpush.msra.mxu0 0.0
        %4092 = vmatpush.msra.mxu0 0.0
        %4093 = vmatpush.msra.mxu0 0.0
        %4094 = vmatpush.msra.mxu0 0.0
        %4095 = vmatpush.msra.mxu0 0.0
        %4096 = vmatpush.msra.mxu0 0.0
        %4097 = vmatpush.msra.mxu0 0.0
        %4098 = vmatpush.msra.mxu0 0.0
        %4099 = vmatpush.msra.mxu0 0.0
        %4100 = vmatpush.msra.mxu0 0.0
        %4101 = vmatpush.msra.mxu0 %v3734
        %4102 = vmatpush.msra.mxu0 %v3733
        %4103 = vmatpush.msra.mxu0 %v3732
        %4104 = vmatpush.msra.mxu0 %v3731
        %4105 = vmatmul.f32.gmra.mxu0 %v3768
        %v4106 = vpop.f32.mrf.mxu0
        %v4107 = vadd.f32 %v3994, %v4106
        %4108 = vmatmul.f32.gmra.mxu0 %v3771
        %v4109 = vpop.f32.mrf.mxu0
        %v4110 = vadd.f32 %v3997, %v4109
        %4111 = vmatmul.f32.gmra.mxu0 %v3774
        %v4112 = vpop.f32.mrf.mxu0
        %v4113 = vadd.f32 %v4000, %v4112
        %4114 = vmatmul.f32.gmra.mxu0 %v3777
        %v4115 = vpop.f32.mrf.mxu0
        %v4116 = vadd.f32 %v4003, %v4115
        %4117 = vmatmul.f32.gmra.mxu0 %v3780
        %v4118 = vpop.f32.mrf.mxu0
        %v4119 = vadd.f32 %v4006, %v4118
        %4120 = vmatmul.f32.gmra.mxu0 %v3783
        %v4121 = vpop.f32.mrf.mxu0
        %v4122 = vadd.f32 %v4009, %v4121
        %4123 = vmatmul.f32.gmra.mxu0 %v3786
        %v4124 = vpop.f32.mrf.mxu0
        %v4125 = vadd.f32 %v4012, %v4124
        %4126 = vmatmul.f32.gmra.mxu0 %v3789
        %v4127 = vpop.f32.mrf.mxu0
        %v4128 = vadd.f32 %v4015, %v4127
        %4129 = vmatmul.f32.gmra.mxu0 %v3792
        %v4130 = vpop.f32.mrf.mxu0
        %v4131 = vadd.f32 %v4018, %v4130
        %4132 = vmatmul.f32.gmra.mxu0 %v3795
        %v4133 = vpop.f32.mrf.mxu0
        %v4134 = vadd.f32 %v4021, %v4133
        %4135 = vmatmul.f32.gmra.mxu0 %v3798
        %v4136 = vpop.f32.mrf.mxu0
        %v4137 = vadd.f32 %v4024, %v4136
        %4138 = vmatmul.f32.gmra.mxu0 %v3801
        %v4139 = vpop.f32.mrf.mxu0
        %v4140 = vadd.f32 %v4027, %v4139
        %4141 = vmatmul.f32.gmra.mxu0 %v3804
        %v4142 = vpop.f32.mrf.mxu0
        %v4143 = vadd.f32 %v4030, %v4142
        %4144 = vmatmul.f32.gmra.mxu0 %v3807
        %v4145 = vpop.f32.mrf.mxu0
        %v4146 = vadd.f32 %v4033, %v4145
        %4147 = vmatmul.f32.gmra.mxu0 %v3810
        %v4148 = vpop.f32.mrf.mxu0
        %v4149 = vadd.f32 %v4036, %v4148
        %4150 = vmatmul.f32.gmra.mxu0 %v3813
        %v4151 = vpop.f32.mrf.mxu0
        %v4152 = vadd.f32 %v4039, %v4151
        %4153 = vmatmul.f32.gmra.mxu0 %v3816
        %v4154 = vpop.f32.mrf.mxu0
        %v4155 = vadd.f32 %v4042, %v4154
        %4156 = vmatmul.f32.gmra.mxu0 %v3819
        %v4157 = vpop.f32.mrf.mxu0
        %v4158 = vadd.f32 %v4045, %v4157
        %4159 = vmatmul.f32.gmra.mxu0 %v3822
        %v4160 = vpop.f32.mrf.mxu0
        %v4161 = vadd.f32 %v4048, %v4160
        %4162 = vmatmul.f32.gmra.mxu0 %v3825
        %v4163 = vpop.f32.mrf.mxu0
        %v4164 = vadd.f32 %v4051, %v4163
        %4165 = vmatmul.f32.gmra.mxu0 %v3828
        %v4166 = vpop.f32.mrf.mxu0
        %v4167 = vadd.f32 %v4054, %v4166
        %4168 = vmatmul.f32.gmra.mxu0 %v3831
        %v4169 = vpop.f32.mrf.mxu0
        %v4170 = vadd.f32 %v4057, %v4169
        %4171 = vmatmul.f32.gmra.mxu0 %v3834
        %v4172 = vpop.f32.mrf.mxu0
        %v4173 = vadd.f32 %v4060, %v4172
        %4174 = vmatmul.f32.gmra.mxu0 %v3837
        %v4175 = vpop.f32.mrf.mxu0
        %v4176 = vadd.f32 %v4063, %v4175
        %4177 = vmatmul.f32.gmra.mxu0 %v3840
        %v4178 = vpop.f32.mrf.mxu0
        %v4179 = vadd.f32 %v4066, %v4178
        %4180 = vmatmul.f32.gmra.mxu0 %v3843
        %v4181 = vpop.f32.mrf.mxu0
        %v4182 = vadd.f32 %v4069, %v4181
        %4183 = vmatmul.f32.gmra.mxu0 %v3846
        %v4184 = vpop.f32.mrf.mxu0
        %v4185 = vadd.f32 %v4072, %v4184
        %4186 = vmatmul.f32.gmra.mxu0 %v3849
        %v4187 = vpop.f32.mrf.mxu0
        %v4188 = vadd.f32 %v4075, %v4187
        %4189 = vmatmul.f32.gmra.mxu0 %v3852
        %v4190 = vpop.f32.mrf.mxu0
        %v4191 = vadd.f32 %v4078, %v4190
        %4192 = vmatmul.f32.gmra.mxu0 %v3855
        %v4193 = vpop.f32.mrf.mxu0
        %v4194 = vadd.f32 %v4081, %v4193
        %4195 = vmatmul.f32.gmra.mxu0 %v3858
        %v4196 = vpop.f32.mrf.mxu0
        %v4197 = vadd.f32 %v4084, %v4196
        %4198 = vmatmul.f32.gmra.mxu0 %v3861
        %v4199 = vpop.f32.mrf.mxu0
        %v4200 = vadd.f32 %v4087, %v4199
        %4201 = vdwg.mxu0
        %v4202 = vmax.f32 %v4107, 0.0
        %v4203 = vmax.f32 %v4110, 0.0
        %v4204 = vmax.f32 %v4113, 0.0
        %v4205 = vmax.f32 %v4116, 0.0
        %v4206 = vmax.f32 %v4119, 0.0
        %v4207 = vmax.f32 %v4122, 0.0
        %v4208 = vmax.f32 %v4125, 0.0
        %v4209 = vmax.f32 %v4128, 0.0
        %v4210 = vmax.f32 %v4131, 0.0
        %v4211 = vmax.f32 %v4134, 0.0
        %v4212 = vmax.f32 %v4137, 0.0
        %v4213 = vmax.f32 %v4140, 0.0
        %v4214 = vmax.f32 %v4143, 0.0
        %v4215 = vmax.f32 %v4146, 0.0
        %v4216 = vmax.f32 %v4149, 0.0
        %v4217 = vmax.f32 %v4152, 0.0
        %v4218 = vmax.f32 %v4155, 0.0
        %v4219 = vmax.f32 %v4158, 0.0
        %v4220 = vmax.f32 %v4161, 0.0
        %v4221 = vmax.f32 %v4164, 0.0
        %v4222 = vmax.f32 %v4167, 0.0
        %v4223 = vmax.f32 %v4170, 0.0
        %v4224 = vmax.f32 %v4173, 0.0
        %v4225 = vmax.f32 %v4176, 0.0
        %v4226 = vmax.f32 %v4179, 0.0
        %v4227 = vmax.f32 %v4182, 0.0
        %v4228 = vmax.f32 %v4185, 0.0
        %v4229 = vmax.f32 %v4188, 0.0
        %v4230 = vmax.f32 %v4191, 0.0
        %v4231 = vmax.f32 %v4194, 0.0
        %v4232 = vmax.f32 %v4197, 0.0
        %v4233 = vmax.f32 %v4200, 0.0
        %4234 = vst.msk [vmem:[%s163] sm:$0xff] %vm169, %v4202
        %4235 = vst.msk [vmem:[%s163 + $0x8] sm:$0xff] %vm169, %v4203
        %4236 = vst.msk [vmem:[%s163 + $0x10] sm:$0xff] %vm169, %v4204
        %4237 = vst.msk [vmem:[%s163 + $0x18] sm:$0xff] %vm169, %v4205
        %4238 = vst.msk [vmem:[%s163 + $0x20] sm:$0xff] %vm169, %v4206
        %4239 = vst.msk [vmem:[%s163 + $0x28] sm:$0xff] %vm169, %v4207
        %4240 = vst.msk [vmem:[%s163 + $0x30] sm:$0xff] %vm169, %v4208
        %4241 = vst.msk [vmem:[%s163 + $0x38] sm:$0xff] %vm169, %v4209
        %4242 = vst.msk [vmem:[%s163 + $0x40] sm:$0xff] %vm169, %v4210
        %4243 = vst.msk [vmem:[%s163 + $0x48] sm:$0xff] %vm169, %v4211
        %4244 = vst.msk [vmem:[%s163 + $0x50] sm:$0xff] %vm169, %v4212
        %4245 = vst.msk [vmem:[%s163 + $0x58] sm:$0xff] %vm169, %v4213
        %4246 = vst.msk [vmem:[%s163 + $0x60] sm:$0xff] %vm169, %v4214
        %4247 = vst.msk [vmem:[%s163 + $0x68] sm:$0xff] %vm169, %v4215
        %4248 = vst.msk [vmem:[%s163 + $0x70] sm:$0xff] %vm169, %v4216
        %4249 = vst.msk [vmem:[%s163 + $0x78] sm:$0xff] %vm169, %v4217
        %4250 = vst.msk [vmem:[%s163 + $0x80] sm:$0xff] %vm169, %v4218
        %4251 = vst.msk [vmem:[%s163 + $0x88] sm:$0xff] %vm169, %v4219
        %4252 = vst.msk [vmem:[%s163 + $0x90] sm:$0xff] %vm169, %v4220
        %4253 = vst.msk [vmem:[%s163 + $0x98] sm:$0xff] %vm169, %v4221
        %4254 = vst.msk [vmem:[%s163 + $0xa0] sm:$0xff] %vm169, %v4222
        %4255 = vst.msk [vmem:[%s163 + $0xa8] sm:$0xff] %vm169, %v4223
        %4256 = vst.msk [vmem:[%s163 + $0xb0] sm:$0xff] %vm169, %v4224
        %4257 = vst.msk [vmem:[%s163 + $0xb8] sm:$0xff] %vm169, %v4225
        %4258 = vst.msk [vmem:[%s163 + $0xc0] sm:$0xff] %vm169, %v4226
        %4259 = vst.msk [vmem:[%s163 + $0xc8] sm:$0xff] %vm169, %v4227
        %4260 = vst.msk [vmem:[%s163 + $0xd0] sm:$0xff] %vm169, %v4228
        %4261 = vst.msk [vmem:[%s163 + $0xd8] sm:$0xff] %vm169, %v4229
        %4262 = vst.msk [vmem:[%s163 + $0xe0] sm:$0xff] %vm169, %v4230
        %4263 = vst.msk [vmem:[%s163 + $0xe8] sm:$0xff] %vm169, %v4231
        %4264 = vst.msk [vmem:[%s163 + $0xf0] sm:$0xff] %vm169, %v4232
        %4265 = vst.msk [vmem:[%s163 + $0xf8] sm:$0xff] %vm169, %v4233
        %s4266 = sand.u32 %s93, 1
        %s4267 = scalar_lea.sflag [#allocation5], %s4266
        %s4268 = sand.u32 %s93, 1
        %s4269 = smul.addr %s4268, 256
        %s4270 = scalar_lea.vmem [#allocation4], %s4269
        // Predicated region
        $region33: #{tpu_custom_call.1} parent=31 // pred_check
          %p4271 = pneg %p103
        $region34: #{tpu_custom_call.1} parent=31 // pred_check_branch
          %4273 = sbr.rel (%p4271) target = $region36
        $region35: #{tpu_custom_call.1} parent=31 // pred_region
          %4275 = vsyncadd %s4267, 0
          %s4276 = smul.addr %s17, 32
          %s4277 = smul.addr %s4276, 8
          %s4278 = scalar_lea.hbm %s3, %s4277
          %s4279 = sshll.u32 %s4270, 4
          %s4280 = int_to_ptr.vmem [resolvable:$true] %s4279
          %s4281 = sshll.u32 %s4278, 4
          %s4282 = int_to_ptr.hbm [resolvable:$true] %s4281
          %4287 = dma.vmem_to_hbm [thread:$0]  %s4280, 4096, %s4282, %s4267, 128, 128, 8
        $region36: #{tpu_custom_call.1} parent=31 // pred_fallthru
          _
      $region32: #{tpu_custom_call.1} parent=5 // pred_fallthru
        _
      %p4288 = scmp.le.s32.totalorder 2, %s12
      // Predicated region
      $region37: #{tpu_custom_call.1} parent=5 // pred_check
        %p4289 = pneg %p4288
      $region38: #{tpu_custom_call.1} parent=5 // pred_check_branch
        %4291 = sbr.rel (%p4289) target = $region40
      $region39: #{tpu_custom_call.1} parent=5 // pred_region
        %s4292 = ssub.s32 %s12, 2
        // Predicated region
        $region41: #{tpu_custom_call.1} parent=39 // pred_check
          %p4293 = pneg %p109
        $region42: #{tpu_custom_call.1} parent=39 // pred_check_branch
          %4295 = sbr.rel (%p4293) target = $region44
        $region43: #{tpu_custom_call.1} parent=39 // pred_region
          %s4296 = sand.u32 %s94, 1
          %s4297 = scalar_lea.sflag [#allocation5], %s4296
          %s4298 = sand.u32 %s94, 1
          %s4299 = smul.addr %s4298, 256
          %s4300 = scalar_lea.vmem [#allocation4], %s4299
          %4302 = dma.done %s4297, 4096
        $region44: #{tpu_custom_call.1} parent=39 // pred_fallthru
          _
      $region40: #{tpu_custom_call.1} parent=5 // pred_fallthru
        _
    $region6: #{tpu_custom_call.1} parent=1 // loop_footer
      %s16 = sadd.s32 1, %s12
    $region7: #{tpu_custom_call.1} parent=1 // loop_footer_branch
      %11 = sbr.rel target = $region3
    $region8: #{tpu_custom_call.1} parent=1 // loop_exit
      _
    %4303 = vsyncpa [#allocation5], 1
    %s4304 = scalar_lea.sflag [#allocation5], 1
    %4305 = vsyncpa %s4304, 1

</llo_original>
